<compile_context>
chip_gen: v7x
topology: tpu7x:2x2x1
jax: 0.10.0
libtpu: 0.0.40
codegen_flags: <defaults>
</compile_context>

<pallas_src>
import functools
import math

import jax
import jax.numpy as jnp
from jax import lax
from jax.experimental import pallas as pl
from jax.experimental.pallas import tpu as pltpu


def _attention_block_kernel(x_ref, wqkv_ref, bqkv_ref, w1_ref, b1_ref, w2_ref, b2_ref,
                            out_ref, *, num_heads: int, eps: float):
    x = x_ref[...]                                   # (S, D), kernel compute dtype
    S, D = x.shape
    dims = D // num_heads
    cdt = x.dtype                                    # MXU operand dtype (bf16-native if input bf16)

    # Fused QKV projection: one lane-dense (S, D) @ (D, 3D) MXU call, f32 accumulation.
    qkv = jnp.dot(x, wqkv_ref[...], preferred_element_type=jnp.float32)
    qkv = (qkv + bqkv_ref[...]).astype(cdt)          # (S, 3D); 1/sqrt(dims) pre-folded into Q cols

    def heads(a):                                    # (S, D) -> (H, S, dims)
        return pltpu.einshape("mhd->hmd", a.reshape(S, num_heads, dims))

    q = heads(qkv[:, :D])
    k = heads(qkv[:, D:2 * D])
    v = heads(qkv[:, 2 * D:])

    # Batched attention: H is the batch dim of a single dot chain ('hqd,hkd->hqk').
    s = lax.dot_general(q, k, (((2,), (2,)), ((0,), (0,))),
                        preferred_element_type=jnp.float32)           # (H, S, S)
    s = s - jnp.max(s, axis=-1, keepdims=True)
    e = jnp.exp(s)                                                    # f32 (v5e has no bf16 EUP)
    denom = jnp.sum(e, axis=-1, keepdims=True)                        # (H, S, 1)

    o = lax.dot_general(e.astype(cdt), v, (((2,), (1,)), ((0,), (0,))),
                        preferred_element_type=jnp.float32)           # (H, S, dims)
    o = o * pl.reciprocal(denom)                                      # exact; tiny tensor
    attn = pltpu.einshape("hmd->mhd", o).reshape(S, D)                # head-major == torch.cat(dim=2)

    # Residual + LayerNorm over the whole (S, D) block: F.layer_norm(x, (N, dims)), no affine.
    y = x.astype(jnp.float32) + attn
    mu = jnp.mean(y, keepdims=True)
    var = jnp.mean(jnp.square(y - mu), keepdims=True)
    y = (y - mu) * lax.rsqrt(var + eps)

    # FeedForward: linear -> relu -> linear, residual, second joint LayerNorm.
    h1 = jnp.dot(y.astype(cdt), w1_ref[...], preferred_element_type=jnp.float32)
    h1 = jnp.maximum(h1 + b1_ref[...], 0.0)
    ff = jnp.dot(h1.astype(cdt), w2_ref[...], preferred_element_type=jnp.float32)
    ff = ff + b2_ref[...]

    z = y + ff
    mu2 = jnp.mean(z, keepdims=True)
    var2 = jnp.mean(jnp.square(z - mu2), keepdims=True)
    out_ref[...] = ((z - mu2) * lax.rsqrt(var2 + eps)).astype(out_ref.dtype)


def _vmem_budget_bytes(S, D, inner, H, itemsize):
    """Explicit scoped-VMEM budget from the real per-step footprint (+50% headroom)."""
    weights = (D * 3 * D + 3 * D + 2 * D * inner + inner + D) * itemsize     # single-buffered
    io = 2 * 2 * S * D * itemsize                                            # double-buffered x / out
    acts = 4 * (S * 3 * D + 2 * H * S * S + 3 * H * S * max(D // H, 1)
                + 4 * S * D + 2 * S * inner)                                 # f32 intermediates
    want = int(1.5 * (weights + io + acts))
    try:
        cap = int(pltpu.get_tpu_info().vmem_capacity_bytes)
    except Exception:
        cap = 64 * 1024 * 1024                       # v7x per-TensorCore VMEM (smallest current gen)
    return max(32 * 1024 * 1024, min(want, int(0.9 * cap)))


def attention_block(x, wq, wk, wv, bq, bk, bv, w1, b1, w2, b2, *, eps=1e-5):
    """x: (B, S, d_model); wq/wk/wv: (H, d_model, dims); bq/bk/bv: (H, dims)
       w1: (d_model, inner), b1: (inner,), w2: (inner, d_model), b2: (d_model,)
       returns: (B, S, d_model)"""
    B, S, D = x.shape
    H, _, dims = wq.shape
    inner = w1.shape[1]
    scale = dims ** (-0.5)
    cdt = x.dtype

    # Stack per-head weights head-major along the last dim -> (D, H*dims), then
    # concatenate Q|K|V -> (D, 3D).  Column layout matches torch.cat(..., dim=2).
    def fuse(w):                                     # (H, D, dims) -> (D, H*dims)
        return w.transpose(1, 0, 2).reshape(D, H * dims)

    # Fold 1/sqrt(dims) into the Q projection (free, trace-time constant fold).
    wqkv = jnp.concatenate([fuse(wq) * scale, fuse(wk), fuse(wv)], axis=1).astype(cdt)
    bqkv = jnp.concatenate([bq.reshape(-1) * scale, bk.reshape(-1), bv.reshape(-1)]
                           ).reshape(1, 3 * D).astype(jnp.float32)
    w1c = w1.astype(cdt)
    w2c = w2.astype(cdt)
    b1_2d = b1.reshape(1, inner).astype(jnp.float32)
    b2_2d = b2.reshape(1, D).astype(jnp.float32)

    kernel = functools.partial(_attention_block_kernel, num_heads=H, eps=eps)
    vmem_budget = _vmem_budget_bytes(S, D, inner, H, jnp.dtype(cdt).itemsize)

    def build(single_buffer_weights):
        def const_spec(shape):
            idx = lambda b: (0,) * len(shape)
            if single_buffer_weights:
                return pl.BlockSpec(shape, idx, pipeline_mode=pl.Buffered(1))
            return pl.BlockSpec(shape, idx)

        return pl.pallas_call(
            kernel,
            out_shape=jax.ShapeDtypeStruct((B, S, D), x.dtype),
            grid=(B,),
            in_specs=[
                pl.BlockSpec((None, S, D), lambda b: (b, 0, 0)),   # x (batch dim squeezed)
                const_spec((D, 3 * D)),                            # fused Wqkv (Q pre-scaled)
                const_spec((1, 3 * D)),                            # fused bqkv
                const_spec((D, inner)),                            # W1
                const_spec((1, inner)),                            # b1
                const_spec((inner, D)),                            # W2
                const_spec((1, D)),                                # b2
            ],
            out_specs=pl.BlockSpec((None, S, D), lambda b: (b, 0, 0)),
            compiler_params=pltpu.CompilerParams(
                dimension_semantics=("parallel",),
                vmem_limit_bytes=vmem_budget),
        )

    args = (x, wqkv, bqkv, w1c, b1_2d, w2c, b2_2d)
    # TODO(synk): at production sizes on v7x (64 MiB VMEM) this needs a flash-style
    # S/KV-tiled multi-pass restructure; the module's joint (S, D) LayerNorm couples
    # the whole sequence per batch element, so the block is kept resident here.
    try:
        return build(single_buffer_weights=True)(*args)
    except Exception:
        # Fallback for jax versions without single-buffer pipeline_mode support.
        return build(single_buffer_weights=False)(*args)


def _layer_norm_joint(y, eps=1e-5):
    mu = jnp.mean(y, axis=(1, 2), keepdims=True)
    var = jnp.mean((y - mu) ** 2, axis=(1, 2), keepdims=True)
    return (y - mu) * lax.rsqrt(var + eps)


def _reference(x, wq, wk, wv, bq, bk, bv, w1, b1, w2, b2):
    """Pure-JAX reference mirroring the PyTorch AttentionBlock forward."""
    H, _, dims = wq.shape
    outs = []
    for h in range(H):
        q = x @ wq[h] + bq[h]
        k = x @ wk[h] + bk[h]
        v = x @ wv[h] + bv[h]
        s = jnp.einsum("bqd,bkd->bqk", q, k) * (dims ** -0.5)
        p = jax.nn.softmax(s, axis=-1)
        outs.append(jnp.einsum("bqk,bkd->bqd", p, v))
    y = x + jnp.concatenate(outs, axis=2)            # x += MHA(x)
    y = _layer_norm_joint(y)                         # layer_norm over (N, dims)
    ff = jnp.maximum(y @ w1 + b1, 0.0) @ w2 + b2
    y = y + ff                                       # x += FF(x)
    return _layer_norm_joint(y)


if __name__ == "__main__":
    # Small shapes: batch=2, seq=8, d_model=32, num_heads=4 (dims=8), inner_dim=64
    B, S, d_model, num_heads, inner_dim = 2, 8, 32, 4, 64
    dims = d_model // num_heads

    key = jax.random.PRNGKey(0)
    ks = jax.random.split(key, 11)

    x = jax.random.normal(ks[0], (B, S, d_model), jnp.float32)

    # nn.Linear(d_model, dims) init: uniform(-1/sqrt(fan_in), 1/sqrt(fan_in))
    bound = 1.0 / math.sqrt(d_model)
    wq = jax.random.uniform(ks[1], (num_heads, d_model, dims), jnp.float32, -bound, bound)
    wk = jax.random.uniform(ks[2], (num_heads, d_model, dims), jnp.float32, -bound, bound)
    wv = jax.random.uniform(ks[3], (num_heads, d_model, dims), jnp.float32, -bound, bound)
    bq = jax.random.uniform(ks[4], (num_heads, dims), jnp.float32, -bound, bound)
    bk = jax.random.uniform(ks[5], (num_heads, dims), jnp.float32, -bound, bound)
    bv = jax.random.uniform(ks[6], (num_heads, dims), jnp.float32, -bound, bound)

    w1 = jax.random.uniform(ks[7], (d_model, inner_dim), jnp.float32, -bound, bound)
    b1 = jax.random.uniform(ks[8], (inner_dim,), jnp.float32, -bound, bound)
    bound2 = 1.0 / math.sqrt(inner_dim)
    w2 = jax.random.uniform(ks[9], (inner_dim, d_model), jnp.float32, -bound2, bound2)
    b2 = jax.random.uniform(ks[10], (d_model,), jnp.float32, -bound2, bound2)

    out = attention_block(x, wq, wk, wv, bq, bk, bv, w1, b1, w2, b2)
    out = jax.block_until_ready(out)

    ref = _reference(x, wq, wk, wv, bq, bk, bv, w1, b1, w2, b2)
    assert out.shape == (B, S, d_model), out.shape
    err = jnp.max(jnp.abs(out - ref))
    assert jnp.allclose(out, ref, atol=2e-4, rtol=2e-4), f"max err {err}"

    print("KERNEL_OK")
</pallas_src>

<mosaic_0001>
module attributes {stable_mosaic.version = 11 : i64} {
  func.func @_attention_block_kernel(%arg0: i32, %arg1: memref<1x8x32xf32, #tpu.memory_space<vmem>>, %arg2: memref<32x96xf32, #tpu.memory_space<vmem>>, %arg3: memref<1x96xf32, #tpu.memory_space<vmem>>, %arg4: memref<32x64xf32, #tpu.memory_space<vmem>>, %arg5: memref<1x64xf32, #tpu.memory_space<vmem>>, %arg6: memref<64x32xf32, #tpu.memory_space<vmem>>, %arg7: memref<1x32xf32, #tpu.memory_space<vmem>>, %arg8: memref<1x8x32xf32, #tpu.memory_space<vmem>>) attributes {dimension_semantics = [#tpu.dimension_semantics<parallel>], iteration_bounds = array<i64: 2>, scalar_prefetch = 0 : i64, scratch_operands = 0 : i64, tpu.core_type = #tpu.core_type<tc>, window_params = [{transform_indices = @transform_0, window_bounds = array<i64: 1, 8, 32>}, {pipeline_mode = #tpu.pipeline_mode<synchronous>, transform_indices = @transform_1, window_bounds = array<i64: 32, 96>}, {pipeline_mode = #tpu.pipeline_mode<synchronous>, transform_indices = @transform_2, window_bounds = array<i64: 1, 96>}, {pipeline_mode = #tpu.pipeline_mode<synchronous>, transform_indices = @transform_3, window_bounds = array<i64: 32, 64>}, {pipeline_mode = #tpu.pipeline_mode<synchronous>, transform_indices = @transform_4, window_bounds = array<i64: 1, 64>}, {pipeline_mode = #tpu.pipeline_mode<synchronous>, transform_indices = @transform_5, window_bounds = array<i64: 64, 32>}, {pipeline_mode = #tpu.pipeline_mode<synchronous>, transform_indices = @transform_6, window_bounds = array<i64: 1, 32>}, {transform_indices = @transform_7, window_bounds = array<i64: 1, 8, 32>}]} {
    %c0 = arith.constant 0 : index
    %c0_0 = arith.constant 0 : index
    %c0_1 = arith.constant 0 : index
    %0 = vector.load %arg1[%c0, %c0_0, %c0_1] : memref<1x8x32xf32, #tpu.memory_space<vmem>>, vector<1x8x32xf32>
    %1 = vector.shape_cast %0 : vector<1x8x32xf32> to vector<8x32xf32>
    %c0_2 = arith.constant 0 : index
    %c0_3 = arith.constant 0 : index
    %2 = vector.load %arg2[%c0_2, %c0_3] : memref<32x96xf32, #tpu.memory_space<vmem>>, vector<32x96xf32>
    %cst = arith.constant dense<0.000000e+00> : vector<8x96xf32>
    %3 = tpu.matmul %1, %2, %cst {dimension_numbers = #tpu.dot_dimension_numbers<[1], [0], [0], [1], [0, 0, 1, 1], [], []>} : vector<8x32xf32>, vector<32x96xf32>, vector<8x96xf32> -> vector<8x96xf32>
    %c0_4 = arith.constant 0 : index
    %c0_5 = arith.constant 0 : index
    %4 = vector.load %arg3[%c0_4, %c0_5] : memref<1x96xf32, #tpu.memory_space<vmem>>, vector<1x96xf32>
    %5 = vector.broadcast %4 : vector<1x96xf32> to vector<8x96xf32>
    %6 = arith.addf %3, %5 : vector<8x96xf32>
    %7 = vector.extract_strided_slice %6 {offsets = [0, 0], sizes = [8, 32], strides = [1, 1]} : vector<8x96xf32> to vector<8x32xf32>
    %8 = vector.shape_cast %7 : vector<8x32xf32> to vector<8x4x8xf32>
    %9 = tpu.transpose %8, [1, 0, 2] : vector<8x4x8xf32> -> vector<4x8x8xf32>
    %10 = vector.extract_strided_slice %6 {offsets = [0, 32], sizes = [8, 32], strides = [1, 1]} : vector<8x96xf32> to vector<8x32xf32>
    %11 = vector.shape_cast %10 : vector<8x32xf32> to vector<8x4x8xf32>
    %12 = tpu.transpose %11, [1, 0, 2] : vector<8x4x8xf32> -> vector<4x8x8xf32>
    %13 = vector.extract_strided_slice %6 {offsets = [0, 64], sizes = [8, 32], strides = [1, 1]} : vector<8x96xf32> to vector<8x32xf32>
    %14 = vector.shape_cast %13 : vector<8x32xf32> to vector<8x4x8xf32>
    %15 = tpu.transpose %14, [1, 0, 2] : vector<8x4x8xf32> -> vector<4x8x8xf32>
    %cst_6 = arith.constant dense<0.000000e+00> : vector<4x8x8xf32>
    %16 = tpu.matmul %9, %12, %cst_6 {dimension_numbers = #tpu.dot_dimension_numbers<[2], [2], [1], [1], [0, 0, 0, 1, 1, 1], [0], [0]>} : vector<4x8x8xf32>, vector<4x8x8xf32>, vector<4x8x8xf32> -> vector<4x8x8xf32>
    %cst_7 = arith.constant dense<0xFF800000> : vector<4x8xf32>
    %17 = vector.multi_reduction <maximumf>, %16, %cst_7 [2] : vector<4x8x8xf32> to vector<4x8xf32>
    %18 = vector.shape_cast %17 : vector<4x8xf32> to vector<4x8x1xf32>
    %19 = vector.broadcast %18 : vector<4x8x1xf32> to vector<4x8x8xf32>
    %20 = arith.subf %16, %19 : vector<4x8x8xf32>
    %21 = math.exp %20 : vector<4x8x8xf32>
    %cst_8 = arith.constant dense<0.000000e+00> : vector<4x8xf32>
    %22 = vector.multi_reduction <add>, %21, %cst_8 [2] : vector<4x8x8xf32> to vector<4x8xf32>
    %23 = vector.shape_cast %22 : vector<4x8xf32> to vector<4x8x1xf32>
    %cst_9 = arith.constant dense<0.000000e+00> : vector<4x8x8xf32>
    %24 = tpu.matmul %21, %15, %cst_9 {dimension_numbers = #tpu.dot_dimension_numbers<[2], [1], [1], [2], [0, 0, 0, 1, 1, 2], [0], [0]>} : vector<4x8x8xf32>, vector<4x8x8xf32>, vector<4x8x8xf32> -> vector<4x8x8xf32>
    %25 = tpu.reciprocal %23 : vector<4x8x1xf32> -> vector<4x8x1xf32>
    %26 = vector.broadcast %25 : vector<4x8x1xf32> to vector<4x8x8xf32>
    %27 = arith.mulf %24, %26 : vector<4x8x8xf32>
    %28 = tpu.transpose %27, [1, 0, 2] : vector<4x8x8xf32> -> vector<8x4x8xf32>
    %29 = vector.shape_cast %28 : vector<8x4x8xf32> to vector<8x32xf32>
    %30 = arith.addf %1, %29 : vector<8x32xf32>
    %31 = vector.shape_cast %30 : vector<8x32xf32> to vector<1x8x32xf32>
    %cst_10 = arith.constant dense<0.000000e+00> : vector<1xf32>
    %32 = vector.multi_reduction <add>, %31, %cst_10 [1, 2] : vector<1x8x32xf32> to vector<1xf32>
    %33 = vector.shape_cast %32 : vector<1xf32> to vector<1x1x1xf32>
    %34 = vector.extract %33[0, 0, 0] : f32 from vector<1x1x1xf32>
    %35 = vector.broadcast %34 : f32 to vector<1x1xf32>
    %cst_11 = arith.constant 2.560000e+02 : f32
    %36 = vector.broadcast %cst_11 : f32 to vector<1x1xf32>
    %37 = arith.divf %35, %36 : vector<1x1xf32>
    %38 = vector.broadcast %37 : vector<1x1xf32> to vector<8x32xf32>
    %39 = arith.subf %30, %38 : vector<8x32xf32>
    %40 = arith.mulf %39, %39 : vector<8x32xf32>
    %41 = vector.shape_cast %40 : vector<8x32xf32> to vector<1x8x32xf32>
    %cst_12 = arith.constant dense<0.000000e+00> : vector<1xf32>
    %42 = vector.multi_reduction <add>, %41, %cst_12 [1, 2] : vector<1x8x32xf32> to vector<1xf32>
    %43 = vector.shape_cast %42 : vector<1xf32> to vector<1x1x1xf32>
    %44 = vector.extract %43[0, 0, 0] : f32 from vector<1x1x1xf32>
    %45 = vector.broadcast %44 : f32 to vector<1x1xf32>
    %cst_13 = arith.constant 2.560000e+02 : f32
    %46 = vector.broadcast %cst_13 : f32 to vector<1x1xf32>
    %47 = arith.divf %45, %46 : vector<1x1xf32>
    %48 = vector.broadcast %37 : vector<1x1xf32> to vector<8x32xf32>
    %49 = arith.subf %30, %48 : vector<8x32xf32>
    %cst_14 = arith.constant 9.99999974E-6 : f32
    %50 = vector.broadcast %cst_14 : f32 to vector<1x1xf32>
    %51 = arith.addf %47, %50 : vector<1x1xf32>
    %52 = math.rsqrt %51 : vector<1x1xf32>
    %53 = vector.broadcast %52 : vector<1x1xf32> to vector<8x32xf32>
    %54 = arith.mulf %49, %53 : vector<8x32xf32>
    %c0_15 = arith.constant 0 : index
    %c0_16 = arith.constant 0 : index
    %55 = vector.load %arg4[%c0_15, %c0_16] : memref<32x64xf32, #tpu.memory_space<vmem>>, vector<32x64xf32>
    %cst_17 = arith.constant dense<0.000000e+00> : vector<8x64xf32>
    %56 = tpu.matmul %54, %55, %cst_17 {dimension_numbers = #tpu.dot_dimension_numbers<[1], [0], [0], [1], [0, 0, 1, 1], [], []>} : vector<8x32xf32>, vector<32x64xf32>, vector<8x64xf32> -> vector<8x64xf32>
    %c0_18 = arith.constant 0 : index
    %c0_19 = arith.constant 0 : index
    %57 = vector.load %arg5[%c0_18, %c0_19] : memref<1x64xf32, #tpu.memory_space<vmem>>, vector<1x64xf32>
    %58 = vector.broadcast %57 : vector<1x64xf32> to vector<8x64xf32>
    %59 = arith.addf %56, %58 : vector<8x64xf32>
    %cst_20 = arith.constant 0.000000e+00 : f32
    %60 = vector.broadcast %cst_20 : f32 to vector<8x64xf32>
    %61 = arith.maximumf %59, %60 : vector<8x64xf32>
    %c0_21 = arith.constant 0 : index
    %c0_22 = arith.constant 0 : index
    %62 = vector.load %arg6[%c0_21, %c0_22] : memref<64x32xf32, #tpu.memory_space<vmem>>, vector<64x32xf32>
    %cst_23 = arith.constant dense<0.000000e+00> : vector<8x32xf32>
    %63 = tpu.matmul %61, %62, %cst_23 {dimension_numbers = #tpu.dot_dimension_numbers<[1], [0], [0], [1], [0, 0, 1, 1], [], []>} : vector<8x64xf32>, vector<64x32xf32>, vector<8x32xf32> -> vector<8x32xf32>
    %c0_24 = arith.constant 0 : index
    %c0_25 = arith.constant 0 : index
    %64 = vector.load %arg7[%c0_24, %c0_25] : memref<1x32xf32, #tpu.memory_space<vmem>>, vector<1x32xf32>
    %65 = vector.broadcast %64 : vector<1x32xf32> to vector<8x32xf32>
    %66 = arith.addf %63, %65 : vector<8x32xf32>
    %67 = arith.addf %54, %66 : vector<8x32xf32>
    %68 = vector.shape_cast %67 : vector<8x32xf32> to vector<1x8x32xf32>
    %cst_26 = arith.constant dense<0.000000e+00> : vector<1xf32>
    %69 = vector.multi_reduction <add>, %68, %cst_26 [1, 2] : vector<1x8x32xf32> to vector<1xf32>
    %70 = vector.shape_cast %69 : vector<1xf32> to vector<1x1x1xf32>
    %71 = vector.extract %70[0, 0, 0] : f32 from vector<1x1x1xf32>
    %72 = vector.broadcast %71 : f32 to vector<1x1xf32>
    %cst_27 = arith.constant 2.560000e+02 : f32
    %73 = vector.broadcast %cst_27 : f32 to vector<1x1xf32>
    %74 = arith.divf %72, %73 : vector<1x1xf32>
    %75 = vector.broadcast %74 : vector<1x1xf32> to vector<8x32xf32>
    %76 = arith.subf %67, %75 : vector<8x32xf32>
    %77 = arith.mulf %76, %76 : vector<8x32xf32>
    %78 = vector.shape_cast %77 : vector<8x32xf32> to vector<1x8x32xf32>
    %cst_28 = arith.constant dense<0.000000e+00> : vector<1xf32>
    %79 = vector.multi_reduction <add>, %78, %cst_28 [1, 2] : vector<1x8x32xf32> to vector<1xf32>
    %80 = vector.shape_cast %79 : vector<1xf32> to vector<1x1x1xf32>
    %81 = vector.extract %80[0, 0, 0] : f32 from vector<1x1x1xf32>
    %82 = vector.broadcast %81 : f32 to vector<1x1xf32>
    %cst_29 = arith.constant 2.560000e+02 : f32
    %83 = vector.broadcast %cst_29 : f32 to vector<1x1xf32>
    %84 = arith.divf %82, %83 : vector<1x1xf32>
    %85 = vector.broadcast %74 : vector<1x1xf32> to vector<8x32xf32>
    %86 = arith.subf %67, %85 : vector<8x32xf32>
    %cst_30 = arith.constant 9.99999974E-6 : f32
    %87 = vector.broadcast %cst_30 : f32 to vector<1x1xf32>
    %88 = arith.addf %84, %87 : vector<1x1xf32>
    %89 = math.rsqrt %88 : vector<1x1xf32>
    %90 = vector.broadcast %89 : vector<1x1xf32> to vector<8x32xf32>
    %91 = arith.mulf %86, %90 : vector<8x32xf32>
    %c0_31 = arith.constant 0 : index
    %c0_32 = arith.constant 0 : index
    %c0_33 = arith.constant 0 : index
    %92 = vector.load %arg8[%c0_31, %c0_32, %c0_33] : memref<1x8x32xf32, #tpu.memory_space<vmem>>, vector<1x8x32xf32>
    %93 = vector.shape_cast %92 : vector<1x8x32xf32> to vector<8x32xf32>
    %94 = vector.shape_cast %91 : vector<8x32xf32> to vector<1x8x32xf32>
    tpu.vector_store %arg8[%c0_31, %c0_32, %c0_33], %94 {strides = array<i32>} : memref<1x8x32xf32, #tpu.memory_space<vmem>>, vector<1x8x32xf32>,
    return
  }
  func.func @transform_0(%arg0: i32) -> (i32, i32, i32) {
    %c0_i32 = arith.constant 0 : i32
    %c0_i32_0 = arith.constant 0 : i32
    %c0_i32_1 = arith.constant 0 : i32
    return %arg0, %c0_i32, %c0_i32_0 : i32, i32, i32
  }
  func.func @transform_1(%arg0: i32) -> (i32, i32) {
    %c0_i32 = arith.constant 0 : i32
    %c0_i32_0 = arith.constant 0 : i32
    %c0_i32_1 = arith.constant 0 : i32
    return %c0_i32, %c0_i32_0 : i32, i32
  }
  func.func @transform_2(%arg0: i32) -> (i32, i32) {
    %c0_i32 = arith.constant 0 : i32
    %c0_i32_0 = arith.constant 0 : i32
    %c0_i32_1 = arith.constant 0 : i32
    return %c0_i32, %c0_i32_0 : i32, i32
  }
  func.func @transform_3(%arg0: i32) -> (i32, i32) {
    %c0_i32 = arith.constant 0 : i32
    %c0_i32_0 = arith.constant 0 : i32
    %c0_i32_1 = arith.constant 0 : i32
    return %c0_i32, %c0_i32_0 : i32, i32
  }
  func.func @transform_4(%arg0: i32) -> (i32, i32) {
    %c0_i32 = arith.constant 0 : i32
    %c0_i32_0 = arith.constant 0 : i32
    %c0_i32_1 = arith.constant 0 : i32
    return %c0_i32, %c0_i32_0 : i32, i32
  }
  func.func @transform_5(%arg0: i32) -> (i32, i32) {
    %c0_i32 = arith.constant 0 : i32
    %c0_i32_0 = arith.constant 0 : i32
    %c0_i32_1 = arith.constant 0 : i32
    return %c0_i32, %c0_i32_0 : i32, i32
  }
  func.func @transform_6(%arg0: i32) -> (i32, i32) {
    %c0_i32 = arith.constant 0 : i32
    %c0_i32_0 = arith.constant 0 : i32
    %c0_i32_1 = arith.constant 0 : i32
    return %c0_i32, %c0_i32_0 : i32, i32
  }
  func.func @transform_7(%arg0: i32) -> (i32, i32, i32) {
    %c0_i32 = arith.constant 0 : i32
    %c0_i32_0 = arith.constant 0 : i32
    %c0_i32_1 = arith.constant 0 : i32
    return %arg0, %c0_i32, %c0_i32_0 : i32, i32, i32
  }
}

module attributes {stable_mosaic.version = 11 : i64} {
  func.func @_attention_block_kernel(%arg0: i32, %arg1: memref<1x8x32xf32, #tpu.memory_space<vmem>>, %arg2: memref<32x96xf32, #tpu.memory_space<vmem>>, %arg3: memref<1x96xf32, #tpu.memory_space<vmem>>, %arg4: memref<32x64xf32, #tpu.memory_space<vmem>>, %arg5: memref<1x64xf32, #tpu.memory_space<vmem>>, %arg6: memref<64x32xf32, #tpu.memory_space<vmem>>, %arg7: memref<1x32xf32, #tpu.memory_space<vmem>>, %arg8: memref<1x8x32xf32, #tpu.memory_space<vmem>>) attributes {dimension_semantics = [#tpu.dimension_semantics<parallel>], iteration_bounds = array<i64: 2>, scalar_prefetch = 0 : i64, scratch_operands = 0 : i64, tpu.core_type = #tpu.core_type<tc>, window_params = [{transform_indices = @transform_0, window_bounds = array<i64: 1, 8, 32>}, {pipeline_mode = #tpu.pipeline_mode<synchronous>, transform_indices = @transform_1, window_bounds = array<i64: 32, 96>}, {pipeline_mode = #tpu.pipeline_mode<synchronous>, transform_indices = @transform_2, window_bounds = array<i64: 1, 96>}, {pipeline_mode = #tpu.pipeline_mode<synchronous>, transform_indices = @transform_3, window_bounds = array<i64: 32, 64>}, {pipeline_mode = #tpu.pipeline_mode<synchronous>, transform_indices = @transform_4, window_bounds = array<i64: 1, 64>}, {pipeline_mode = #tpu.pipeline_mode<synchronous>, transform_indices = @transform_5, window_bounds = array<i64: 64, 32>}, {pipeline_mode = #tpu.pipeline_mode<synchronous>, transform_indices = @transform_6, window_bounds = array<i64: 1, 32>}, {transform_indices = @transform_7, window_bounds = array<i64: 1, 8, 32>}]} {
    %c0 = arith.constant 0 : index
    %c0_0 = arith.constant 0 : index
    %c0_1 = arith.constant 0 : index
    %0 = vector.load %arg1[%c0, %c0_0, %c0_1] : memref<1x8x32xf32, #tpu.memory_space<vmem>>, vector<1x8x32xf32>
    %1 = vector.shape_cast %0 : vector<1x8x32xf32> to vector<8x32xf32>
    %c0_2 = arith.constant 0 : index
    %c0_3 = arith.constant 0 : index
    %2 = vector.load %arg2[%c0_2, %c0_3] : memref<32x96xf32, #tpu.memory_space<vmem>>, vector<32x96xf32>
    %cst = arith.constant dense<0.000000e+00> : vector<8x96xf32>
    %3 = tpu.matmul %1, %2, %cst {dimension_numbers = #tpu.dot_dimension_numbers<[1], [0], [0], [1], [0, 0, 1, 1], [], []>} : vector<8x32xf32>, vector<32x96xf32>, vector<8x96xf32> -> vector<8x96xf32>
    %c0_4 = arith.constant 0 : index
    %c0_5 = arith.constant 0 : index
    %4 = vector.load %arg3[%c0_4, %c0_5] : memref<1x96xf32, #tpu.memory_space<vmem>>, vector<1x96xf32>
    %5 = vector.broadcast %4 : vector<1x96xf32> to vector<8x96xf32>
    %6 = arith.addf %3, %5 : vector<8x96xf32>
    %7 = vector.extract_strided_slice %6 {offsets = [0, 0], sizes = [8, 32], strides = [1, 1]} : vector<8x96xf32> to vector<8x32xf32>
    %8 = vector.shape_cast %7 : vector<8x32xf32> to vector<8x4x8xf32>
    %9 = tpu.transpose %8, [1, 0, 2] : vector<8x4x8xf32> -> vector<4x8x8xf32>
    %10 = vector.extract_strided_slice %6 {offsets = [0, 32], sizes = [8, 32], strides = [1, 1]} : vector<8x96xf32> to vector<8x32xf32>
    %11 = vector.shape_cast %10 : vector<8x32xf32> to vector<8x4x8xf32>
    %12 = tpu.transpose %11, [1, 0, 2] : vector<8x4x8xf32> -> vector<4x8x8xf32>
    %13 = vector.extract_strided_slice %6 {offsets = [0, 64], sizes = [8, 32], strides = [1, 1]} : vector<8x96xf32> to vector<8x32xf32>
    %14 = vector.shape_cast %13 : vector<8x32xf32> to vector<8x4x8xf32>
    %15 = tpu.transpose %14, [1, 0, 2] : vector<8x4x8xf32> -> vector<4x8x8xf32>
    %cst_6 = arith.constant dense<0.000000e+00> : vector<4x8x8xf32>
    %16 = tpu.matmul %9, %12, %cst_6 {dimension_numbers = #tpu.dot_dimension_numbers<[2], [2], [1], [1], [0, 0, 0, 1, 1, 1], [0], [0]>} : vector<4x8x8xf32>, vector<4x8x8xf32>, vector<4x8x8xf32> -> vector<4x8x8xf32>
    %cst_7 = arith.constant dense<0xFF800000> : vector<4x8xf32>
    %17 = vector.multi_reduction <maximumf>, %16, %cst_7 [2] : vector<4x8x8xf32> to vector<4x8xf32>
    %18 = vector.shape_cast %17 : vector<4x8xf32> to vector<4x8x1xf32>
    %19 = vector.broadcast %18 : vector<4x8x1xf32> to vector<4x8x8xf32>
    %20 = arith.subf %16, %19 : vector<4x8x8xf32>
    %21 = math.exp %20 : vector<4x8x8xf32>
    %cst_8 = arith.constant dense<0.000000e+00> : vector<4x8xf32>
    %22 = vector.multi_reduction <add>, %21, %cst_8 [2] : vector<4x8x8xf32> to vector<4x8xf32>
    %23 = vector.shape_cast %22 : vector<4x8xf32> to vector<4x8x1xf32>
    %cst_9 = arith.constant dense<0.000000e+00> : vector<4x8x8xf32>
    %24 = tpu.matmul %21, %15, %cst_9 {dimension_numbers = #tpu.dot_dimension_numbers<[2], [1], [1], [2], [0, 0, 0, 1, 1, 2], [0], [0]>} : vector<4x8x8xf32>, vector<4x8x8xf32>, vector<4x8x8xf32> -> vector<4x8x8xf32>
    %25 = tpu.reciprocal %23 : vector<4x8x1xf32> -> vector<4x8x1xf32>
    %26 = vector.broadcast %25 : vector<4x8x1xf32> to vector<4x8x8xf32>
    %27 = arith.mulf %24, %26 : vector<4x8x8xf32>
    %28 = tpu.transpose %27, [1, 0, 2] : vector<4x8x8xf32> -> vector<8x4x8xf32>
    %29 = vector.shape_cast %28 : vector<8x4x8xf32> to vector<8x32xf32>
    %30 = arith.addf %1, %29 : vector<8x32xf32>
    %31 = vector.shape_cast %30 : vector<8x32xf32> to vector<1x8x32xf32>
    %cst_10 = arith.constant dense<0.000000e+00> : vector<1xf32>
    %32 = vector.multi_reduction <add>, %31, %cst_10 [1, 2] : vector<1x8x32xf32> to vector<1xf32>
    %33 = vector.shape_cast %32 : vector<1xf32> to vector<1x1x1xf32>
    %34 = vector.extract %33[0, 0, 0] : f32 from vector<1x1x1xf32>
    %35 = vector.broadcast %34 : f32 to vector<1x1xf32>
    %cst_11 = arith.constant 2.560000e+02 : f32
    %36 = vector.broadcast %cst_11 : f32 to vector<1x1xf32>
    %37 = arith.divf %35, %36 : vector<1x1xf32>
    %38 = vector.broadcast %37 : vector<1x1xf32> to vector<8x32xf32>
    %39 = arith.subf %30, %38 : vector<8x32xf32>
    %40 = arith.mulf %39, %39 : vector<8x32xf32>
    %41 = vector.shape_cast %40 : vector<8x32xf32> to vector<1x8x32xf32>
    %cst_12 = arith.constant dense<0.000000e+00> : vector<1xf32>
    %42 = vector.multi_reduction <add>, %41, %cst_12 [1, 2] : vector<1x8x32xf32> to vector<1xf32>
    %43 = vector.shape_cast %42 : vector<1xf32> to vector<1x1x1xf32>
    %44 = vector.extract %43[0, 0, 0] : f32 from vector<1x1x1xf32>
    %45 = vector.broadcast %44 : f32 to vector<1x1xf32>
    %cst_13 = arith.constant 2.560000e+02 : f32
    %46 = vector.broadcast %cst_13 : f32 to vector<1x1xf32>
    %47 = arith.divf %45, %46 : vector<1x1xf32>
    %48 = vector.broadcast %37 : vector<1x1xf32> to vector<8x32xf32>
    %49 = arith.subf %30, %48 : vector<8x32xf32>
    %cst_14 = arith.constant 9.99999974E-6 : f32
    %50 = vector.broadcast %cst_14 : f32 to vector<1x1xf32>
    %51 = arith.addf %47, %50 : vector<1x1xf32>
    %52 = math.rsqrt %51 : vector<1x1xf32>
    %53 = vector.broadcast %52 : vector<1x1xf32> to vector<8x32xf32>
    %54 = arith.mulf %49, %53 : vector<8x32xf32>
    %c0_15 = arith.constant 0 : index
    %c0_16 = arith.constant 0 : index
    %55 = vector.load %arg4[%c0_15, %c0_16] : memref<32x64xf32, #tpu.memory_space<vmem>>, vector<32x64xf32>
    %cst_17 = arith.constant dense<0.000000e+00> : vector<8x64xf32>
    %56 = tpu.matmul %54, %55, %cst_17 {dimension_numbers = #tpu.dot_dimension_numbers<[1], [0], [0], [1], [0, 0, 1, 1], [], []>} : vector<8x32xf32>, vector<32x64xf32>, vector<8x64xf32> -> vector<8x64xf32>
    %c0_18 = arith.constant 0 : index
    %c0_19 = arith.constant 0 : index
    %57 = vector.load %arg5[%c0_18, %c0_19] : memref<1x64xf32, #tpu.memory_space<vmem>>, vector<1x64xf32>
    %58 = vector.broadcast %57 : vector<1x64xf32> to vector<8x64xf32>
    %59 = arith.addf %56, %58 : vector<8x64xf32>
    %cst_20 = arith.constant 0.000000e+00 : f32
    %60 = vector.broadcast %cst_20 : f32 to vector<8x64xf32>
    %61 = arith.maximumf %59, %60 : vector<8x64xf32>
    %c0_21 = arith.constant 0 : index
    %c0_22 = arith.constant 0 : index
    %62 = vector.load %arg6[%c0_21, %c0_22] : memref<64x32xf32, #tpu.memory_space<vmem>>, vector<64x32xf32>
    %cst_23 = arith.constant dense<0.000000e+00> : vector<8x32xf32>
    %63 = tpu.matmul %61, %62, %cst_23 {dimension_numbers = #tpu.dot_dimension_numbers<[1], [0], [0], [1], [0, 0, 1, 1], [], []>} : vector<8x64xf32>, vector<64x32xf32>, vector<8x32xf32> -> vector<8x32xf32>
    %c0_24 = arith.constant 0 : index
    %c0_25 = arith.constant 0 : index
    %64 = vector.load %arg7[%c0_24, %c0_25] : memref<1x32xf32, #tpu.memory_space<vmem>>, vector<1x32xf32>
    %65 = vector.broadcast %64 : vector<1x32xf32> to vector<8x32xf32>
    %66 = arith.addf %63, %65 : vector<8x32xf32>
    %67 = arith.addf %54, %66 : vector<8x32xf32>
    %68 = vector.shape_cast %67 : vector<8x32xf32> to vector<1x8x32xf32>
    %cst_26 = arith.constant dense<0.000000e+00> : vector<1xf32>
    %69 = vector.multi_reduction <add>, %68, %cst_26 [1, 2] : vector<1x8x32xf32> to vector<1xf32>
    %70 = vector.shape_cast %69 : vector<1xf32> to vector<1x1x1xf32>
    %71 = vector.extract %70[0, 0, 0] : f32 from vector<1x1x1xf32>
    %72 = vector.broadcast %71 : f32 to vector<1x1xf32>
    %cst_27 = arith.constant 2.560000e+02 : f32
    %73 = vector.broadcast %cst_27 : f32 to vector<1x1xf32>
    %74 = arith.divf %72, %73 : vector<1x1xf32>
    %75 = vector.broadcast %74 : vector<1x1xf32> to vector<8x32xf32>
    %76 = arith.subf %67, %75 : vector<8x32xf32>
    %77 = arith.mulf %76, %76 : vector<8x32xf32>
    %78 = vector.shape_cast %77 : vector<8x32xf32> to vector<1x8x32xf32>
    %cst_28 = arith.constant dense<0.000000e+00> : vector<1xf32>
    %79 = vector.multi_reduction <add>, %78, %cst_28 [1, 2] : vector<1x8x32xf32> to vector<1xf32>
    %80 = vector.shape_cast %79 : vector<1xf32> to vector<1x1x1xf32>
    %81 = vector.extract %80[0, 0, 0] : f32 from vector<1x1x1xf32>
    %82 = vector.broadcast %81 : f32 to vector<1x1xf32>
    %cst_29 = arith.constant 2.560000e+02 : f32
    %83 = vector.broadcast %cst_29 : f32 to vector<1x1xf32>
    %84 = arith.divf %82, %83 : vector<1x1xf32>
    %85 = vector.broadcast %74 : vector<1x1xf32> to vector<8x32xf32>
    %86 = arith.subf %67, %85 : vector<8x32xf32>
    %cst_30 = arith.constant 9.99999974E-6 : f32
    %87 = vector.broadcast %cst_30 : f32 to vector<1x1xf32>
    %88 = arith.addf %84, %87 : vector<1x1xf32>
    %89 = math.rsqrt %88 : vector<1x1xf32>
    %90 = vector.broadcast %89 : vector<1x1xf32> to vector<8x32xf32>
    %91 = arith.mulf %86, %90 : vector<8x32xf32>
    %c0_31 = arith.constant 0 : index
    %c0_32 = arith.constant 0 : index
    %c0_33 = arith.constant 0 : index
    %92 = vector.load %arg8[%c0_31, %c0_32, %c0_33] : memref<1x8x32xf32, #tpu.memory_space<vmem>>, vector<1x8x32xf32>
    %93 = vector.shape_cast %92 : vector<1x8x32xf32> to vector<8x32xf32>
    %94 = vector.shape_cast %91 : vector<8x32xf32> to vector<1x8x32xf32>
    tpu.vector_store %arg8[%c0_31, %c0_32, %c0_33], %94 {strides = array<i32>} : memref<1x8x32xf32, #tpu.memory_space<vmem>>, vector<1x8x32xf32>,
    return
  }
  func.func @transform_0(%arg0: i32) -> (i32, i32, i32) {
    %c0_i32 = arith.constant 0 : i32
    %c0_i32_0 = arith.constant 0 : i32
    %c0_i32_1 = arith.constant 0 : i32
    return %arg0, %c0_i32, %c0_i32_0 : i32, i32, i32
  }
  func.func @transform_1(%arg0: i32) -> (i32, i32) {
    %c0_i32 = arith.constant 0 : i32
    %c0_i32_0 = arith.constant 0 : i32
    %c0_i32_1 = arith.constant 0 : i32
    return %c0_i32, %c0_i32_0 : i32, i32
  }
  func.func @transform_2(%arg0: i32) -> (i32, i32) {
    %c0_i32 = arith.constant 0 : i32
    %c0_i32_0 = arith.constant 0 : i32
    %c0_i32_1 = arith.constant 0 : i32
    return %c0_i32, %c0_i32_0 : i32, i32
  }
  func.func @transform_3(%arg0: i32) -> (i32, i32) {
    %c0_i32 = arith.constant 0 : i32
    %c0_i32_0 = arith.constant 0 : i32
    %c0_i32_1 = arith.constant 0 : i32
    return %c0_i32, %c0_i32_0 : i32, i32
  }
  func.func @transform_4(%arg0: i32) -> (i32, i32) {
    %c0_i32 = arith.constant 0 : i32
    %c0_i32_0 = arith.constant 0 : i32
    %c0_i32_1 = arith.constant 0 : i32
    return %c0_i32, %c0_i32_0 : i32, i32
  }
  func.func @transform_5(%arg0: i32) -> (i32, i32) {
    %c0_i32 = arith.constant 0 : i32
    %c0_i32_0 = arith.constant 0 : i32
    %c0_i32_1 = arith.constant 0 : i32
    return %c0_i32, %c0_i32_0 : i32, i32
  }
  func.func @transform_6(%arg0: i32) -> (i32, i32) {
    %c0_i32 = arith.constant 0 : i32
    %c0_i32_0 = arith.constant 0 : i32
    %c0_i32_1 = arith.constant 0 : i32
    return %c0_i32, %c0_i32_0 : i32, i32
  }
  func.func @transform_7(%arg0: i32) -> (i32, i32, i32) {
    %c0_i32 = arith.constant 0 : i32
    %c0_i32_0 = arith.constant 0 : i32
    %c0_i32_1 = arith.constant 0 : i32
    return %arg0, %c0_i32, %c0_i32_0 : i32, i32, i32
  }
}

</mosaic_0001>

<llo_original>
// kernel: tpu_custom_call.1
$region0: #{tpu_custom_call.1}
  #allocation0 [shape = 'u32[]', space=smem, size = 0x4, offset = 0x4, fixed_abs, tag = 'smem constant byte address 0x4 - core index']
  #allocation1 [shape = 'u32[144,128]{1,0:T(1,128)}', space=vmem, size = 0x12000, scoped, tag = 'internal scratch']
  %s0 = inlined_call_operand.vmem [shape: f32[2,8,32], index: 0, kind: input, shape index: {}]
  %s1 = inlined_call_operand.vmem [shape: f32[32,96], index: 1, kind: input, shape index: {}]
  %s2 = inlined_call_operand.vmem [shape: f32[1,96], index: 2, kind: input, shape index: {}]
  %s3 = inlined_call_operand.vmem [shape: f32[32,64], index: 3, kind: input, shape index: {}]
  %s4 = inlined_call_operand.vmem [shape: f32[1,64], index: 4, kind: input, shape index: {}]
  %s5 = inlined_call_operand.vmem [shape: f32[64,32], index: 5, kind: input, shape index: {}]
  %s6 = inlined_call_operand.vmem [shape: f32[1,32], index: 6, kind: input, shape index: {}]
  %s7 = inlined_call_operand.hbm [shape: f32[2,8,32], index: 7, kind: output, shape index: {}]
  %s8 = sld [smem:[#allocation0]]
  $region61: #{tpu_custom_call.1} parent=0
    _
  %s10 = ssub.s32 1, %s8
  %s11 = scalar_select 0, %s10, %s8
  $region1: #{tpu_custom_call.1} parent=0
    #allocation2 [shape = 'u8[8192]{0}', space=vmem, size = 0x2000, scoped, tag = 'output window, operand 0']
    #allocation3 [shape = 's32[2]{0}', space=sflag, size = 0x8, scoped, tag = 'scoped memory for tpu_custom_call.1']
    %12 = vsyncpa [#allocation3], 0
    %s13 = scalar_lea.sflag [#allocation3], 1
    %14 = vsyncpa %s13, 0
    loop: start=0, step=1, limit=4
    $region2: #{tpu_custom_call.1} parent=1 // loop_pre_header
      _
    $region3: #{tpu_custom_call.1} parent=1 // loop_header
      %s16 = sphi 0, %s20
      %p17 = scmp.ge.s32.totalorder %s16, 4
      %s26 = sphi 0, %s28
      %s29 = sphi 0, %s26
      %s30 = sphi 0, %s29
      %s46 = sphi 0, %s30
      %s50 = sphi 0, %s50
      %s52 = sphi 0, %s50
      %s53 = sphi 0, %s52
      %s67 = sphi 0, %s53
      %s71 = sphi 0, %s71
      %s73 = sphi 0, %s71
      %s74 = sphi 0, %s73
      %s88 = sphi 0, %s74
      %s92 = sphi 0, %s92
      %s94 = sphi 0, %s92
      %s95 = sphi 0, %s94
      %s109 = sphi 0, %s95
      %s113 = sphi 0, %s113
      %s115 = sphi 0, %s113
      %s116 = sphi 0, %s115
      %s130 = sphi 0, %s116
      %s134 = sphi 0, %s134
      %s136 = sphi 0, %s134
      %s137 = sphi 0, %s136
      %s151 = sphi 0, %s137
      %s155 = sphi 0, %s155
      %s157 = sphi 0, %s155
      %s158 = sphi 0, %s157
      %s172 = sphi 0, %s158
      %s178 = sphi 0, %s180
      %s181 = sphi 0, %s178
      %s182 = sphi 0, %s181
      %s198 = sphi 0, %s182
    $region4: #{tpu_custom_call.1} parent=1 // loop_header_branch
      %19 = sbr.rel (%p17) target = $region8
    $region5: #{tpu_custom_call.1} parent=1 // loop_body
      %s21 = ssub.s32 %s16, 1
      %s22 = ssub.s32 %s16, 2
      %s23 = sadd.s32 %s16, 1
      %s24 = ssub.s32 %s16, %s23
      %p25 = scmp.eq.s32.totalorder %s24, 0
      %s27 = sadd.s32 %s26, 1
      %s28 = scalar_select %p25, %s26, %s27
      %p31 = pneg %p25
      %p32 = scmp.eq.s32.totalorder %s16, 1
      %p33 = por %p31, %p32
      %p34 = scmp.ne.s32.totalorder %s26, %s29
      %p35 = scmp.eq.s32.totalorder %s16, 0
      %p36 = por %p34, %p35
      %p37 = scmp.ne.s32.totalorder %s26, %s29
      %p38 = scmp.eq.s32.totalorder %s21, 1
      %p39 = por %p37, %p38
      %p40 = scmp.ne.s32.totalorder %s29, %s30
      %p41 = scmp.eq.s32.totalorder %s21, 0
      %p42 = por %p40, %p41
      %p43 = scmp.ne.s32.totalorder %s29, %s30
      %p44 = scmp.eq.s32.totalorder %s22, 1
      %p45 = por %p43, %p44
      %p47 = scmp.ne.s32.totalorder %s30, %s46
      %p48 = scmp.eq.s32.totalorder %s22, 0
      %p49 = por %p47, %p48
      %s51 = sadd.s32 %s50, 1
      %p54 = scmp.eq.s32.totalorder %s16, 1
      %p55 = scmp.ne.s32.totalorder %s50, %s52
      %p56 = scmp.eq.s32.totalorder %s16, 0
      %p57 = por %p55, %p56
      %p58 = scmp.ne.s32.totalorder %s50, %s52
      %p59 = scmp.eq.s32.totalorder %s21, 1
      %p60 = por %p58, %p59
      %p61 = scmp.ne.s32.totalorder %s52, %s53
      %p62 = scmp.eq.s32.totalorder %s21, 0
      %p63 = por %p61, %p62
      %p64 = scmp.ne.s32.totalorder %s52, %s53
      %p65 = scmp.eq.s32.totalorder %s22, 1
      %p66 = por %p64, %p65
      %p68 = scmp.ne.s32.totalorder %s53, %s67
      %p69 = scmp.eq.s32.totalorder %s22, 0
      %p70 = por %p68, %p69
      %s72 = sadd.s32 %s71, 1
      %p75 = scmp.eq.s32.totalorder %s16, 1
      %p76 = scmp.ne.s32.totalorder %s71, %s73
      %p77 = scmp.eq.s32.totalorder %s16, 0
      %p78 = por %p76, %p77
      %p79 = scmp.ne.s32.totalorder %s71, %s73
      %p80 = scmp.eq.s32.totalorder %s21, 1
      %p81 = por %p79, %p80
      %p82 = scmp.ne.s32.totalorder %s73, %s74
      %p83 = scmp.eq.s32.totalorder %s21, 0
      %p84 = por %p82, %p83
      %p85 = scmp.ne.s32.totalorder %s73, %s74
      %p86 = scmp.eq.s32.totalorder %s22, 1
      %p87 = por %p85, %p86
      %p89 = scmp.ne.s32.totalorder %s74, %s88
      %p90 = scmp.eq.s32.totalorder %s22, 0
      %p91 = por %p89, %p90
      %s93 = sadd.s32 %s92, 1
      %p96 = scmp.eq.s32.totalorder %s16, 1
      %p97 = scmp.ne.s32.totalorder %s92, %s94
      %p98 = scmp.eq.s32.totalorder %s16, 0
      %p99 = por %p97, %p98
      %p100 = scmp.ne.s32.totalorder %s92, %s94
      %p101 = scmp.eq.s32.totalorder %s21, 1
      %p102 = por %p100, %p101
      %p103 = scmp.ne.s32.totalorder %s94, %s95
      %p104 = scmp.eq.s32.totalorder %s21, 0
      %p105 = por %p103, %p104
      %p106 = scmp.ne.s32.totalorder %s94, %s95
      %p107 = scmp.eq.s32.totalorder %s22, 1
      %p108 = por %p106, %p107
      %p110 = scmp.ne.s32.totalorder %s95, %s109
      %p111 = scmp.eq.s32.totalorder %s22, 0
      %p112 = por %p110, %p111
      %s114 = sadd.s32 %s113, 1
      %p117 = scmp.eq.s32.totalorder %s16, 1
      %p118 = scmp.ne.s32.totalorder %s113, %s115
      %p119 = scmp.eq.s32.totalorder %s16, 0
      %p120 = por %p118, %p119
      %p121 = scmp.ne.s32.totalorder %s113, %s115
      %p122 = scmp.eq.s32.totalorder %s21, 1
      %p123 = por %p121, %p122
      %p124 = scmp.ne.s32.totalorder %s115, %s116
      %p125 = scmp.eq.s32.totalorder %s21, 0
      %p126 = por %p124, %p125
      %p127 = scmp.ne.s32.totalorder %s115, %s116
      %p128 = scmp.eq.s32.totalorder %s22, 1
      %p129 = por %p127, %p128
      %p131 = scmp.ne.s32.totalorder %s116, %s130
      %p132 = scmp.eq.s32.totalorder %s22, 0
      %p133 = por %p131, %p132
      %s135 = sadd.s32 %s134, 1
      %p138 = scmp.eq.s32.totalorder %s16, 1
      %p139 = scmp.ne.s32.totalorder %s134, %s136
      %p140 = scmp.eq.s32.totalorder %s16, 0
      %p141 = por %p139, %p140
      %p142 = scmp.ne.s32.totalorder %s134, %s136
      %p143 = scmp.eq.s32.totalorder %s21, 1
      %p144 = por %p142, %p143
      %p145 = scmp.ne.s32.totalorder %s136, %s137
      %p146 = scmp.eq.s32.totalorder %s21, 0
      %p147 = por %p145, %p146
      %p148 = scmp.ne.s32.totalorder %s136, %s137
      %p149 = scmp.eq.s32.totalorder %s22, 1
      %p150 = por %p148, %p149
      %p152 = scmp.ne.s32.totalorder %s137, %s151
      %p153 = scmp.eq.s32.totalorder %s22, 0
      %p154 = por %p152, %p153
      %s156 = sadd.s32 %s155, 1
      %p159 = scmp.eq.s32.totalorder %s16, 1
      %p160 = scmp.ne.s32.totalorder %s155, %s157
      %p161 = scmp.eq.s32.totalorder %s16, 0
      %p162 = por %p160, %p161
      %p163 = scmp.ne.s32.totalorder %s155, %s157
      %p164 = scmp.eq.s32.totalorder %s21, 1
      %p165 = por %p163, %p164
      %p166 = scmp.ne.s32.totalorder %s157, %s158
      %p167 = scmp.eq.s32.totalorder %s21, 0
      %p168 = por %p166, %p167
      %p169 = scmp.ne.s32.totalorder %s157, %s158
      %p170 = scmp.eq.s32.totalorder %s22, 1
      %p171 = por %p169, %p170
      %p173 = scmp.ne.s32.totalorder %s158, %s172
      %p174 = scmp.eq.s32.totalorder %s22, 0
      %p175 = por %p173, %p174
      %s176 = ssub.s32 %s16, %s23
      %p177 = scmp.eq.s32.totalorder %s176, 0
      %s179 = sadd.s32 %s178, 1
      %s180 = scalar_select %p177, %s178, %s179
      %p183 = pneg %p177
      %p184 = scmp.eq.s32.totalorder %s16, 1
      %p185 = por %p183, %p184
      %p186 = scmp.ne.s32.totalorder %s178, %s181
      %p187 = scmp.eq.s32.totalorder %s16, 0
      %p188 = por %p186, %p187
      %p189 = scmp.ne.s32.totalorder %s178, %s181
      %p190 = scmp.eq.s32.totalorder %s21, 1
      %p191 = por %p189, %p190
      %p192 = scmp.ne.s32.totalorder %s181, %s182
      %p193 = scmp.eq.s32.totalorder %s21, 0
      %p194 = por %p192, %p193
      %p195 = scmp.ne.s32.totalorder %s181, %s182
      %p196 = scmp.eq.s32.totalorder %s22, 1
      %p197 = por %p195, %p196
      %p199 = scmp.ne.s32.totalorder %s182, %s198
      %p200 = scmp.eq.s32.totalorder %s22, 0
      %p201 = por %p199, %p200
      %p202 = scmp.le.s32.totalorder 1, %s16
      %p203 = scmp.lt.s32.totalorder %s16, 3
      %p204 = pnand %p202, %p203
      %p205 = pneg %p204
      // Predicated region
      $region9: #{tpu_custom_call.1} parent=5 // pred_check
        _
      $region10: #{tpu_custom_call.1} parent=5 // pred_check_branch
        %207 = sbr.rel (%p204) target = $region12
      $region11: #{tpu_custom_call.1} parent=5 // pred_region
        %s208 = ssub.s32 %s16, 1
        // Predicated region
        $region13: #{tpu_custom_call.1} parent=11 // pred_check
          %p209 = pneg %p63
        $region14: #{tpu_custom_call.1} parent=11 // pred_check_branch
          %211 = sbr.rel (%p209) target = $region16
        $region15: #{tpu_custom_call.1} parent=11 // pred_region
          _
        $region16: #{tpu_custom_call.1} parent=11 // pred_fallthru
          _
        // Predicated region
        $region17: #{tpu_custom_call.1} parent=11 // pred_check
          %p212 = pneg %p84
        $region18: #{tpu_custom_call.1} parent=11 // pred_check_branch
          %214 = sbr.rel (%p212) target = $region20
        $region19: #{tpu_custom_call.1} parent=11 // pred_region
          _
        $region20: #{tpu_custom_call.1} parent=11 // pred_fallthru
          _
        // Predicated region
        $region21: #{tpu_custom_call.1} parent=11 // pred_check
          %p215 = pneg %p105
        $region22: #{tpu_custom_call.1} parent=11 // pred_check_branch
          %217 = sbr.rel (%p215) target = $region24
        $region23: #{tpu_custom_call.1} parent=11 // pred_region
          _
        $region24: #{tpu_custom_call.1} parent=11 // pred_fallthru
          _
        // Predicated region
        $region25: #{tpu_custom_call.1} parent=11 // pred_check
          %p218 = pneg %p126
        $region26: #{tpu_custom_call.1} parent=11 // pred_check_branch
          %220 = sbr.rel (%p218) target = $region28
        $region27: #{tpu_custom_call.1} parent=11 // pred_region
          _
        $region28: #{tpu_custom_call.1} parent=11 // pred_fallthru
          _
        // Predicated region
        $region29: #{tpu_custom_call.1} parent=11 // pred_check
          %p221 = pneg %p147
        $region30: #{tpu_custom_call.1} parent=11 // pred_check_branch
          %223 = sbr.rel (%p221) target = $region32
        $region31: #{tpu_custom_call.1} parent=11 // pred_region
          _
        $region32: #{tpu_custom_call.1} parent=11 // pred_fallthru
          _
        // Predicated region
        $region33: #{tpu_custom_call.1} parent=11 // pred_check
          %p224 = pneg %p168
        $region34: #{tpu_custom_call.1} parent=11 // pred_check_branch
          %226 = sbr.rel (%p224) target = $region36
        $region35: #{tpu_custom_call.1} parent=11 // pred_region
          _
        $region36: #{tpu_custom_call.1} parent=11 // pred_fallthru
          _
      $region12: #{tpu_custom_call.1} parent=5 // pred_fallthru
        _
      %p227 = scmp.lt.s32.totalorder %s16, 2
      // Predicated region
      $region37: #{tpu_custom_call.1} parent=5 // pred_check
        %p228 = pneg %p227
      $region38: #{tpu_custom_call.1} parent=5 // pred_check_branch
        %230 = sbr.rel (%p228) target = $region40
      $region39: #{tpu_custom_call.1} parent=5 // pred_region
        // Predicated region
        $region41: #{tpu_custom_call.1} parent=39 // pred_check
          %p231 = pneg %p36
        $region42: #{tpu_custom_call.1} parent=39 // pred_check_branch
          %233 = sbr.rel (%p231) target = $region44
        $region43: #{tpu_custom_call.1} parent=39 // pred_region
          %p234 = scmp.lt.s32.totalorder %s16, 1
          %s235 = scalar_select %p234, %s16, 1
          %s236 = smul.addr %s235, 8
          %s237 = scalar_lea.vmem %s0, %s236
        $region44: #{tpu_custom_call.1} parent=39 // pred_fallthru
          _
      $region40: #{tpu_custom_call.1} parent=5 // pred_fallthru
        _
      %p238 = scmp.le.s32.totalorder 1, %s16
      %p239 = scmp.lt.s32.totalorder %s16, 3
      %p240 = pnand %p238, %p239
      %p241 = pneg %p240
      // Predicated region
      $region45: #{tpu_custom_call.1} parent=5 // pred_check
        _
      $region46: #{tpu_custom_call.1} parent=5 // pred_check_branch
        %243 = sbr.rel (%p240) target = $region48
      $region47: #{tpu_custom_call.1} parent=5 // pred_region
        %s244 = ssub.s32 %s16, 1
        %p245 = scmp.lt.s32.totalorder %s21, 1
        %s246 = scalar_select %p245, %s21, 1
        %s247 = smul.addr %s246, 8
        %s248 = scalar_lea.vmem %s0, %s247
        %p249 = pneg %p42
        %p250 = pneg %p39
        %p251 = pneg %p63
        %p252 = pneg %p60
        %p253 = pneg %p84
        %p254 = pneg %p81
        %p255 = pneg %p105
        %p256 = pneg %p102
        %p257 = pneg %p126
        %p258 = pneg %p123
        %p259 = pneg %p147
        %p260 = pneg %p144
        %p261 = pneg %p168
        %p262 = pneg %p165
        %p263 = pneg %p194
        %p264 = pneg %p191
        %s265 = sand.u32 %s181, 1
        %s266 = scalar_lea.sflag [#allocation3], %s265
        %s267 = sand.u32 %s181, 1
        %s268 = smul.addr %s267, 8
        %s269 = scalar_lea.vmem [#allocation2], %s268
        %p270 = scmp.lt.s32.totalorder %s21, 1
        %s271 = scalar_select %p270, %s21, 1
        %s272 = smul.addr %s271, 8
        %s273 = scalar_lea.vmem %s0, %s272
        %v274 = vld [vmem:[%s273] sm:$0xff]
        %v275 = vld [vmem:[%s1] sm:$0xff]
        %v276 = vld [vmem:[%s1 + $0x8] sm:$0xff]
        %v277 = vld [vmem:[%s1 + $0x10] sm:$0xff]
        %v278 = vld [vmem:[%s1 + $0x18] sm:$0xff]
        %v279 = vld [vmem:[%s2] sm:$0x1]
        %v281 = vlaneseq
        %v282 = vshrl.u32 %v281, 7
        %v283 = vsub.s32 0, %v282
        %v284 = vrot.slane %v279, %v283
        %vm286 = vcmask 261120
        %v288 = vsel %vm286, %v274, 0
        %290 = vmatprep.subr.mxu0 0.0
        %291 = vmatpush1.msra.mxu0 %v275
        %292 = vmatprep.subr.mxu0 0.0
        %293 = vmatpush1.msra.mxu0 %v276
        %294 = vmatprep.subr.mxu0 0.0
        %295 = vmatpush1.msra.mxu0 %v277
        %296 = vmatprep.subr.mxu0 0.0
        %297 = vmatpush1.msra.mxu0 %v278
        %298 = vmatprep.subr.mxu0 0.0
        %299 = vmatpush1.msra.mxu0 0.0
        %300 = vmatprep.subr.mxu0 0.0
        %301 = vmatpush1.msra.mxu0 0.0
        %302 = vmatprep.subr.mxu0 0.0
        %303 = vmatpush1.msra.mxu0 0.0
        %304 = vmatprep.subr.mxu0 0.0
        %305 = vmatpush1.msra.mxu0 0.0
        %306 = vmatprep.subr.mxu0 0.0
        %307 = vmatpush1.msra.mxu0 0.0
        %308 = vmatprep.subr.mxu0 0.0
        %309 = vmatpush1.msra.mxu0 0.0
        %310 = vmatprep.subr.mxu0 0.0
        %311 = vmatpush1.msra.mxu0 0.0
        %312 = vmatprep.subr.mxu0 0.0
        %313 = vmatpush1.msra.mxu0 0.0
        %314 = vmatprep.subr.mxu0 0.0
        %315 = vmatpush1.msra.mxu0 0.0
        %316 = vmatprep.subr.mxu0 0.0
        %317 = vmatpush1.msra.mxu0 0.0
        %318 = vmatprep.subr.mxu0 0.0
        %319 = vmatpush1.msra.mxu0 0.0
        %320 = vmatprep.subr.mxu0 0.0
        %321 = vmatpush1.msra.mxu0 0.0
        %322 = vmatprep.subr.mxu0 0.0
        %323 = vmatpush1.msra.mxu0 0.0
        %324 = vmatprep.subr.mxu0 0.0
        %325 = vmatpush1.msra.mxu0 0.0
        %326 = vmatprep.subr.mxu0 0.0
        %327 = vmatpush1.msra.mxu0 0.0
        %328 = vmatprep.subr.mxu0 0.0
        %329 = vmatpush1.msra.mxu0 0.0
        %330 = vmatprep.subr.mxu0 0.0
        %331 = vmatpush1.msra.mxu0 0.0
        %332 = vmatprep.subr.mxu0 0.0
        %333 = vmatpush1.msra.mxu0 0.0
        %334 = vmatprep.subr.mxu0 0.0
        %335 = vmatpush1.msra.mxu0 0.0
        %336 = vmatprep.subr.mxu0 0.0
        %337 = vmatpush1.msra.mxu0 0.0
        %338 = vmatprep.subr.mxu0 0.0
        %339 = vmatpush1.msra.mxu0 0.0
        %340 = vmatprep.subr.mxu0 0.0
        %341 = vmatpush1.msra.mxu0 0.0
        %342 = vmatprep.subr.mxu0 0.0
        %343 = vmatpush1.msra.mxu0 0.0
        %344 = vmatprep.subr.mxu0 0.0
        %345 = vmatpush1.msra.mxu0 0.0
        %346 = vmatprep.subr.mxu0 0.0
        %347 = vmatpush1.msra.mxu0 0.0
        %348 = vmatprep.subr.mxu0 0.0
        %349 = vmatpush1.msra.mxu0 0.0
        %350 = vmatprep.subr.mxu0 0.0
        %351 = vmatpush1.msra.mxu0 0.0
        %352 = vmatprep.subr.mxu0 0.0
        %353 = vmatpush1.msra.mxu0 0.0
        %354 = vmatprep.mubr.f32.mxu0 0.0
        %355 = vmatmul.mubr.f32.gmra.mrb[0].mxu0 %v288
        %v356 = vpop.f32.mrb[0].mxu0
        %v357 = vadd.f32 %v284, %v356
        %v358 = vpop.f32.mrb[0].mxu0
        %359 = vdwg.mxu0
        %361 = vrot.lane.b32.xlu0 %v357, 120
        %v362 = vpop.permute.xlu0 %361
        %364 = vrot.lane.b32.xlu0 %v357, 112
        %v365 = vpop.permute.xlu0 %364
        %367 = vrot.lane.b32.xlu0 %v357, 104
        %v368 = vpop.permute.xlu0 %367
        %v370 = vcombine.low %v357, %v365
        %v371 = vcombine.high %v357, %v365
        %v373 = vunpack.c.l.s4 1983009808
        %v374 = vunpack.c.0.s8 %v373
        %v375 = vlaneseq
        %v376 = vshrl.u32 %v375, 7
        %v377 = vsub.s32 %v374, %v376
        %v378 = vrot.slane %v370, %v377
        %v380 = vunpack.c.l.s4 1983009808
        %v381 = vunpack.c.0.s8 %v380
        %v382 = vlaneseq
        %v383 = vshrl.u32 %v382, 7
        %v384 = vsub.s32 %v381, %v383
        %v385 = vrot.slane %v371, %v384
        %v386 = vcombine.low %v362, %v368
        %v387 = vcombine.high %v362, %v368
        %v389 = vunpack.c.l.s4 1983009808
        %v390 = vunpack.c.0.s8 %v389
        %v391 = vlaneseq
        %v392 = vshrl.u32 %v391, 7
        %v393 = vsub.s32 %v390, %v392
        %v394 = vrot.slane %v386, %v393
        %v396 = vunpack.c.l.s4 1983009808
        %v397 = vunpack.c.0.s8 %v396
        %v398 = vlaneseq
        %v399 = vshrl.u32 %v398, 7
        %v400 = vsub.s32 %v397, %v399
        %v401 = vrot.slane %v387, %v400
        %v402 = vcombine.low %v378, %v394
        %v403 = vcombine.high %v378, %v394
        %v405 = vunpack.c.l.s4 1934713408
        %v406 = vunpack.c.0.s8 %v405
        %v407 = vlaneseq
        %v408 = vshrl.u32 %v407, 7
        %v409 = vsub.s32 %v406, %v408
        %v410 = vrot.slane %v402, %v409
        %v412 = vunpack.c.l.s4 1934713408
        %v413 = vunpack.c.0.s8 %v412
        %v414 = vlaneseq
        %v415 = vshrl.u32 %v414, 7
        %v416 = vsub.s32 %v413, %v415
        %v417 = vrot.slane %v403, %v416
        %v418 = vcombine.low %v385, %v401
        %v419 = vcombine.high %v385, %v401
        %v421 = vunpack.c.l.s4 1934713408
        %v422 = vunpack.c.0.s8 %v421
        %v423 = vlaneseq
        %v424 = vshrl.u32 %v423, 7
        %v425 = vsub.s32 %v422, %v424
        %v426 = vrot.slane %v418, %v425
        %v428 = vunpack.c.l.s4 1934713408
        %v429 = vunpack.c.0.s8 %v428
        %v430 = vlaneseq
        %v431 = vshrl.u32 %v430, 7
        %v432 = vsub.s32 %v429, %v431
        %v433 = vrot.slane %v419, %v432
        %v434 = vcombine.high %v410, 0.0
        %v435 = vcombine.high %v417, 0.0
        %v436 = vcombine.high %v426, 0.0
        %v437 = vcombine.high %v433, 0.0
        %v438 = vcombine.low %v410, %v417
        %v440 = vunpack.c.l.s4 1983009808
        %v441 = vunpack.c.0.s8 %v440
        %v442 = vlaneseq
        %v443 = vshrl.u32 %v442, 7
        %v444 = vsub.s32 %v441, %v443
        %v445 = vrot.slane %v438, %v444
        %v446 = vcombine.low %v434, %v435
        %v448 = vunpack.c.l.s4 1983009808
        %v449 = vunpack.c.0.s8 %v448
        %v450 = vlaneseq
        %v451 = vshrl.u32 %v450, 7
        %v452 = vsub.s32 %v449, %v451
        %v453 = vrot.slane %v446, %v452
        %v454 = vcombine.low %v426, %v433
        %v456 = vunpack.c.l.s4 1983009808
        %v457 = vunpack.c.0.s8 %v456
        %v458 = vlaneseq
        %v459 = vshrl.u32 %v458, 7
        %v460 = vsub.s32 %v457, %v459
        %v461 = vrot.slane %v454, %v460
        %v462 = vcombine.low %v436, %v437
        %v464 = vunpack.c.l.s4 1983009808
        %v465 = vunpack.c.0.s8 %v464
        %v466 = vlaneseq
        %v467 = vshrl.u32 %v466, 7
        %v468 = vsub.s32 %v465, %v467
        %v469 = vrot.slane %v462, %v468
        %v470 = vcombine.low %v445, %v453
        %v471 = vcombine.high %v445, %v453
        %v473 = vunpack.c.l.s4 1934713408
        %v474 = vunpack.c.0.s8 %v473
        %v475 = vlaneseq
        %v476 = vshrl.u32 %v475, 7
        %v477 = vsub.s32 %v474, %v476
        %v478 = vrot.slane %v470, %v477
        %v480 = vunpack.c.l.s4 1934713408
        %v481 = vunpack.c.0.s8 %v480
        %v482 = vlaneseq
        %v483 = vshrl.u32 %v482, 7
        %v484 = vsub.s32 %v481, %v483
        %v485 = vrot.slane %v471, %v484
        %v486 = vcombine.low %v461, %v469
        %v487 = vcombine.high %v461, %v469
        %v489 = vunpack.c.l.s4 1934713408
        %v490 = vunpack.c.0.s8 %v489
        %v491 = vlaneseq
        %v492 = vshrl.u32 %v491, 7
        %v493 = vsub.s32 %v490, %v492
        %v494 = vrot.slane %v486, %v493
        %v496 = vunpack.c.l.s4 1934713408
        %v497 = vunpack.c.0.s8 %v496
        %v498 = vlaneseq
        %v499 = vshrl.u32 %v498, 7
        %v500 = vsub.s32 %v497, %v499
        %v501 = vrot.slane %v487, %v500
        %v502 = vcombine.low %v478, %v494
        %v503 = vcombine.high %v478, %v494
        %v504 = vcombine.low %v485, %v501
        %v505 = vcombine.high %v485, %v501
        %506 = vrot.lane.b32.xlu0 %v357, 96
        %v507 = vpop.permute.xlu0 %506
        %508 = vrot.lane.b32.xlu0 %v362, 96
        %v509 = vpop.permute.xlu0 %508
        %510 = vrot.lane.b32.xlu0 %v365, 96
        %v511 = vpop.permute.xlu0 %510
        %512 = vrot.lane.b32.xlu0 %v368, 96
        %v513 = vpop.permute.xlu0 %512
        %v518 = vcombine.low %v507, %v511
        %v519 = vcombine.high %v507, %v511
        %v521 = vunpack.c.l.s4 1983009808
        %v522 = vunpack.c.0.s8 %v521
        %v523 = vlaneseq
        %v524 = vshrl.u32 %v523, 7
        %v525 = vsub.s32 %v522, %v524
        %v526 = vrot.slane %v518, %v525
        %v528 = vunpack.c.l.s4 1983009808
        %v529 = vunpack.c.0.s8 %v528
        %v530 = vlaneseq
        %v531 = vshrl.u32 %v530, 7
        %v532 = vsub.s32 %v529, %v531
        %v533 = vrot.slane %v519, %v532
        %v534 = vcombine.low %v509, %v513
        %v535 = vcombine.high %v509, %v513
        %v537 = vunpack.c.l.s4 1983009808
        %v538 = vunpack.c.0.s8 %v537
        %v539 = vlaneseq
        %v540 = vshrl.u32 %v539, 7
        %v541 = vsub.s32 %v538, %v540
        %v542 = vrot.slane %v534, %v541
        %v544 = vunpack.c.l.s4 1983009808
        %v545 = vunpack.c.0.s8 %v544
        %v546 = vlaneseq
        %v547 = vshrl.u32 %v546, 7
        %v548 = vsub.s32 %v545, %v547
        %v549 = vrot.slane %v535, %v548
        %v550 = vcombine.low %v526, %v542
        %v551 = vcombine.high %v526, %v542
        %v553 = vunpack.c.l.s4 1934713408
        %v554 = vunpack.c.0.s8 %v553
        %v555 = vlaneseq
        %v556 = vshrl.u32 %v555, 7
        %v557 = vsub.s32 %v554, %v556
        %v558 = vrot.slane %v550, %v557
        %v560 = vunpack.c.l.s4 1934713408
        %v561 = vunpack.c.0.s8 %v560
        %v562 = vlaneseq
        %v563 = vshrl.u32 %v562, 7
        %v564 = vsub.s32 %v561, %v563
        %v565 = vrot.slane %v551, %v564
        %v566 = vcombine.low %v533, %v549
        %v567 = vcombine.high %v533, %v549
        %v569 = vunpack.c.l.s4 1934713408
        %v570 = vunpack.c.0.s8 %v569
        %v571 = vlaneseq
        %v572 = vshrl.u32 %v571, 7
        %v573 = vsub.s32 %v570, %v572
        %v574 = vrot.slane %v566, %v573
        %v576 = vunpack.c.l.s4 1934713408
        %v577 = vunpack.c.0.s8 %v576
        %v578 = vlaneseq
        %v579 = vshrl.u32 %v578, 7
        %v580 = vsub.s32 %v577, %v579
        %v581 = vrot.slane %v567, %v580
        %v582 = vcombine.high %v558, 0.0
        %v583 = vcombine.high %v565, 0.0
        %v584 = vcombine.high %v574, 0.0
        %v585 = vcombine.high %v581, 0.0
        %v586 = vcombine.low %v558, %v565
        %v588 = vunpack.c.l.s4 1983009808
        %v589 = vunpack.c.0.s8 %v588
        %v590 = vlaneseq
        %v591 = vshrl.u32 %v590, 7
        %v592 = vsub.s32 %v589, %v591
        %v593 = vrot.slane %v586, %v592
        %v594 = vcombine.low %v582, %v583
        %v596 = vunpack.c.l.s4 1983009808
        %v597 = vunpack.c.0.s8 %v596
        %v598 = vlaneseq
        %v599 = vshrl.u32 %v598, 7
        %v600 = vsub.s32 %v597, %v599
        %v601 = vrot.slane %v594, %v600
        %v602 = vcombine.low %v574, %v581
        %v604 = vunpack.c.l.s4 1983009808
        %v605 = vunpack.c.0.s8 %v604
        %v606 = vlaneseq
        %v607 = vshrl.u32 %v606, 7
        %v608 = vsub.s32 %v605, %v607
        %v609 = vrot.slane %v602, %v608
        %v610 = vcombine.low %v584, %v585
        %v612 = vunpack.c.l.s4 1983009808
        %v613 = vunpack.c.0.s8 %v612
        %v614 = vlaneseq
        %v615 = vshrl.u32 %v614, 7
        %v616 = vsub.s32 %v613, %v615
        %v617 = vrot.slane %v610, %v616
        %v618 = vcombine.low %v593, %v601
        %v619 = vcombine.high %v593, %v601
        %v621 = vunpack.c.l.s4 1934713408
        %v622 = vunpack.c.0.s8 %v621
        %v623 = vlaneseq
        %v624 = vshrl.u32 %v623, 7
        %v625 = vsub.s32 %v622, %v624
        %v626 = vrot.slane %v618, %v625
        %v628 = vunpack.c.l.s4 1934713408
        %v629 = vunpack.c.0.s8 %v628
        %v630 = vlaneseq
        %v631 = vshrl.u32 %v630, 7
        %v632 = vsub.s32 %v629, %v631
        %v633 = vrot.slane %v619, %v632
        %v634 = vcombine.low %v609, %v617
        %v635 = vcombine.high %v609, %v617
        %v637 = vunpack.c.l.s4 1934713408
        %v638 = vunpack.c.0.s8 %v637
        %v639 = vlaneseq
        %v640 = vshrl.u32 %v639, 7
        %v641 = vsub.s32 %v638, %v640
        %v642 = vrot.slane %v634, %v641
        %v644 = vunpack.c.l.s4 1934713408
        %v645 = vunpack.c.0.s8 %v644
        %v646 = vlaneseq
        %v647 = vshrl.u32 %v646, 7
        %v648 = vsub.s32 %v645, %v647
        %v649 = vrot.slane %v635, %v648
        %v650 = vcombine.low %v626, %v642
        %v651 = vcombine.high %v626, %v642
        %v652 = vcombine.low %v633, %v649
        %v653 = vcombine.high %v633, %v649
        %654 = vrot.lane.b32.xlu0 %v357, 64
        %v655 = vpop.permute.xlu0 %654
        %656 = vrot.lane.b32.xlu0 %v362, 64
        %v657 = vpop.permute.xlu0 %656
        %658 = vrot.lane.b32.xlu0 %v365, 64
        %v659 = vpop.permute.xlu0 %658
        %660 = vrot.lane.b32.xlu0 %v368, 64
        %v661 = vpop.permute.xlu0 %660
        %v666 = vcombine.low %v655, %v659
        %v667 = vcombine.high %v655, %v659
        %v669 = vunpack.c.l.s4 1983009808
        %v670 = vunpack.c.0.s8 %v669
        %v671 = vlaneseq
        %v672 = vshrl.u32 %v671, 7
        %v673 = vsub.s32 %v670, %v672
        %v674 = vrot.slane %v666, %v673
        %v676 = vunpack.c.l.s4 1983009808
        %v677 = vunpack.c.0.s8 %v676
        %v678 = vlaneseq
        %v679 = vshrl.u32 %v678, 7
        %v680 = vsub.s32 %v677, %v679
        %v681 = vrot.slane %v667, %v680
        %v682 = vcombine.low %v657, %v661
        %v683 = vcombine.high %v657, %v661
        %v685 = vunpack.c.l.s4 1983009808
        %v686 = vunpack.c.0.s8 %v685
        %v687 = vlaneseq
        %v688 = vshrl.u32 %v687, 7
        %v689 = vsub.s32 %v686, %v688
        %v690 = vrot.slane %v682, %v689
        %v692 = vunpack.c.l.s4 1983009808
        %v693 = vunpack.c.0.s8 %v692
        %v694 = vlaneseq
        %v695 = vshrl.u32 %v694, 7
        %v696 = vsub.s32 %v693, %v695
        %v697 = vrot.slane %v683, %v696
        %v698 = vcombine.low %v674, %v690
        %v699 = vcombine.high %v674, %v690
        %v701 = vunpack.c.l.s4 1934713408
        %v702 = vunpack.c.0.s8 %v701
        %v703 = vlaneseq
        %v704 = vshrl.u32 %v703, 7
        %v705 = vsub.s32 %v702, %v704
        %v706 = vrot.slane %v698, %v705
        %v708 = vunpack.c.l.s4 1934713408
        %v709 = vunpack.c.0.s8 %v708
        %v710 = vlaneseq
        %v711 = vshrl.u32 %v710, 7
        %v712 = vsub.s32 %v709, %v711
        %v713 = vrot.slane %v699, %v712
        %v714 = vcombine.low %v681, %v697
        %v715 = vcombine.high %v681, %v697
        %v717 = vunpack.c.l.s4 1934713408
        %v718 = vunpack.c.0.s8 %v717
        %v719 = vlaneseq
        %v720 = vshrl.u32 %v719, 7
        %v721 = vsub.s32 %v718, %v720
        %v722 = vrot.slane %v714, %v721
        %v724 = vunpack.c.l.s4 1934713408
        %v725 = vunpack.c.0.s8 %v724
        %v726 = vlaneseq
        %v727 = vshrl.u32 %v726, 7
        %v728 = vsub.s32 %v725, %v727
        %v729 = vrot.slane %v715, %v728
        %v730 = vcombine.high %v706, 0.0
        %v731 = vcombine.high %v713, 0.0
        %v732 = vcombine.high %v722, 0.0
        %v733 = vcombine.high %v729, 0.0
        %v734 = vcombine.low %v706, %v713
        %v736 = vunpack.c.l.s4 1983009808
        %v737 = vunpack.c.0.s8 %v736
        %v738 = vlaneseq
        %v739 = vshrl.u32 %v738, 7
        %v740 = vsub.s32 %v737, %v739
        %v741 = vrot.slane %v734, %v740
        %v742 = vcombine.low %v730, %v731
        %v744 = vunpack.c.l.s4 1983009808
        %v745 = vunpack.c.0.s8 %v744
        %v746 = vlaneseq
        %v747 = vshrl.u32 %v746, 7
        %v748 = vsub.s32 %v745, %v747
        %v749 = vrot.slane %v742, %v748
        %v750 = vcombine.low %v722, %v729
        %v752 = vunpack.c.l.s4 1983009808
        %v753 = vunpack.c.0.s8 %v752
        %v754 = vlaneseq
        %v755 = vshrl.u32 %v754, 7
        %v756 = vsub.s32 %v753, %v755
        %v757 = vrot.slane %v750, %v756
        %v758 = vcombine.low %v732, %v733
        %v760 = vunpack.c.l.s4 1983009808
        %v761 = vunpack.c.0.s8 %v760
        %v762 = vlaneseq
        %v763 = vshrl.u32 %v762, 7
        %v764 = vsub.s32 %v761, %v763
        %v765 = vrot.slane %v758, %v764
        %v766 = vcombine.low %v741, %v749
        %v767 = vcombine.high %v741, %v749
        %v769 = vunpack.c.l.s4 1934713408
        %v770 = vunpack.c.0.s8 %v769
        %v771 = vlaneseq
        %v772 = vshrl.u32 %v771, 7
        %v773 = vsub.s32 %v770, %v772
        %v774 = vrot.slane %v766, %v773
        %v776 = vunpack.c.l.s4 1934713408
        %v777 = vunpack.c.0.s8 %v776
        %v778 = vlaneseq
        %v779 = vshrl.u32 %v778, 7
        %v780 = vsub.s32 %v777, %v779
        %v781 = vrot.slane %v767, %v780
        %v782 = vcombine.low %v757, %v765
        %v783 = vcombine.high %v757, %v765
        %v785 = vunpack.c.l.s4 1934713408
        %v786 = vunpack.c.0.s8 %v785
        %v787 = vlaneseq
        %v788 = vshrl.u32 %v787, 7
        %v789 = vsub.s32 %v786, %v788
        %v790 = vrot.slane %v782, %v789
        %v792 = vunpack.c.l.s4 1934713408
        %v793 = vunpack.c.0.s8 %v792
        %v794 = vlaneseq
        %v795 = vshrl.u32 %v794, 7
        %v796 = vsub.s32 %v793, %v795
        %v797 = vrot.slane %v783, %v796
        %v798 = vcombine.low %v774, %v790
        %v799 = vcombine.high %v774, %v790
        %v800 = vcombine.low %v781, %v797
        %v801 = vcombine.high %v781, %v797
        %vm802 = vcmask 64512
        %v804 = vsel %vm802, %v502, 0
        %v807 = vsel %vm802, %v650, 0
        %809 = vmatprep.subr.mxu0 0.0
        %810 = vmatpush1.xpose.msra.mxu0 %v807
        %811 = vmatprep.subr.mxu0 0.0
        %812 = vmatpush1.xpose.msra.mxu0 0.0
        %813 = vmatprep.subr.mxu0 0.0
        %814 = vmatpush1.xpose.msra.mxu0 0.0
        %815 = vmatprep.subr.mxu0 0.0
        %816 = vmatpush1.xpose.msra.mxu0 0.0
        %817 = vmatprep.subr.mxu0 0.0
        %818 = vmatpush1.xpose.msra.mxu0 0.0
        %819 = vmatprep.subr.mxu0 0.0
        %820 = vmatpush1.xpose.msra.mxu0 0.0
        %821 = vmatprep.subr.mxu0 0.0
        %822 = vmatpush1.xpose.msra.mxu0 0.0
        %823 = vmatprep.subr.mxu0 0.0
        %824 = vmatpush1.xpose.msra.mxu0 0.0
        %825 = vmatprep.subr.mxu0 0.0
        %826 = vmatpush1.xpose.msra.mxu0 0.0
        %827 = vmatprep.subr.mxu0 0.0
        %828 = vmatpush1.xpose.msra.mxu0 0.0
        %829 = vmatprep.subr.mxu0 0.0
        %830 = vmatpush1.xpose.msra.mxu0 0.0
        %831 = vmatprep.subr.mxu0 0.0
        %832 = vmatpush1.xpose.msra.mxu0 0.0
        %833 = vmatprep.subr.mxu0 0.0
        %834 = vmatpush1.xpose.msra.mxu0 0.0
        %835 = vmatprep.subr.mxu0 0.0
        %836 = vmatpush1.xpose.msra.mxu0 0.0
        %837 = vmatprep.subr.mxu0 0.0
        %838 = vmatpush1.xpose.msra.mxu0 0.0
        %839 = vmatprep.subr.mxu0 0.0
        %840 = vmatpush1.xpose.msra.mxu0 0.0
        %841 = vmatprep.subr.mxu0 0.0
        %842 = vmatpush1.xpose.msra.mxu0 0.0
        %843 = vmatprep.subr.mxu0 0.0
        %844 = vmatpush1.xpose.msra.mxu0 0.0
        %845 = vmatprep.subr.mxu0 0.0
        %846 = vmatpush1.xpose.msra.mxu0 0.0
        %847 = vmatprep.subr.mxu0 0.0
        %848 = vmatpush1.xpose.msra.mxu0 0.0
        %849 = vmatprep.subr.mxu0 0.0
        %850 = vmatpush1.xpose.msra.mxu0 0.0
        %851 = vmatprep.subr.mxu0 0.0
        %852 = vmatpush1.xpose.msra.mxu0 0.0
        %853 = vmatprep.subr.mxu0 0.0
        %854 = vmatpush1.xpose.msra.mxu0 0.0
        %855 = vmatprep.subr.mxu0 0.0
        %856 = vmatpush1.xpose.msra.mxu0 0.0
        %857 = vmatprep.subr.mxu0 0.0
        %858 = vmatpush1.xpose.msra.mxu0 0.0
        %859 = vmatprep.subr.mxu0 0.0
        %860 = vmatpush1.xpose.msra.mxu0 0.0
        %861 = vmatprep.subr.mxu0 0.0
        %862 = vmatpush1.xpose.msra.mxu0 0.0
        %863 = vmatprep.subr.mxu0 0.0
        %864 = vmatpush1.xpose.msra.mxu0 0.0
        %865 = vmatprep.subr.mxu0 0.0
        %866 = vmatpush1.xpose.msra.mxu0 0.0
        %867 = vmatprep.subr.mxu0 0.0
        %868 = vmatpush1.xpose.msra.mxu0 0.0
        %869 = vmatprep.subr.mxu0 0.0
        %870 = vmatpush1.xpose.msra.mxu0 0.0
        %871 = vmatprep.subr.mxu0 0.0
        %872 = vmatpush1.xpose.msra.mxu0 0.0
        %873 = vmatprep.mubr.f32.mxu0 0.0
        %874 = vmatmul.mubr.f32.gmra.mrb[0].mxu0 %v804
        %v875 = vpop.f32.mrb[0].mxu0
        %v876 = vadd.f32 0.0, %v875
        %v877 = vpop.f32.mrb[0].mxu0
        %878 = vdwg.mxu0
        %v880 = vsel %vm802, %v503, 0
        %v883 = vsel %vm802, %v651, 0
        %885 = vmatprep.subr.mxu0 0.0
        %886 = vmatpush1.xpose.msra.mxu0 %v883
        %887 = vmatprep.subr.mxu0 0.0
        %888 = vmatpush1.xpose.msra.mxu0 0.0
        %889 = vmatprep.subr.mxu0 0.0
        %890 = vmatpush1.xpose.msra.mxu0 0.0
        %891 = vmatprep.subr.mxu0 0.0
        %892 = vmatpush1.xpose.msra.mxu0 0.0
        %893 = vmatprep.subr.mxu0 0.0
        %894 = vmatpush1.xpose.msra.mxu0 0.0
        %895 = vmatprep.subr.mxu0 0.0
        %896 = vmatpush1.xpose.msra.mxu0 0.0
        %897 = vmatprep.subr.mxu0 0.0
        %898 = vmatpush1.xpose.msra.mxu0 0.0
        %899 = vmatprep.subr.mxu0 0.0
        %900 = vmatpush1.xpose.msra.mxu0 0.0
        %901 = vmatprep.subr.mxu0 0.0
        %902 = vmatpush1.xpose.msra.mxu0 0.0
        %903 = vmatprep.subr.mxu0 0.0
        %904 = vmatpush1.xpose.msra.mxu0 0.0
        %905 = vmatprep.subr.mxu0 0.0
        %906 = vmatpush1.xpose.msra.mxu0 0.0
        %907 = vmatprep.subr.mxu0 0.0
        %908 = vmatpush1.xpose.msra.mxu0 0.0
        %909 = vmatprep.subr.mxu0 0.0
        %910 = vmatpush1.xpose.msra.mxu0 0.0
        %911 = vmatprep.subr.mxu0 0.0
        %912 = vmatpush1.xpose.msra.mxu0 0.0
        %913 = vmatprep.subr.mxu0 0.0
        %914 = vmatpush1.xpose.msra.mxu0 0.0
        %915 = vmatprep.subr.mxu0 0.0
        %916 = vmatpush1.xpose.msra.mxu0 0.0
        %917 = vmatprep.subr.mxu0 0.0
        %918 = vmatpush1.xpose.msra.mxu0 0.0
        %919 = vmatprep.subr.mxu0 0.0
        %920 = vmatpush1.xpose.msra.mxu0 0.0
        %921 = vmatprep.subr.mxu0 0.0
        %922 = vmatpush1.xpose.msra.mxu0 0.0
        %923 = vmatprep.subr.mxu0 0.0
        %924 = vmatpush1.xpose.msra.mxu0 0.0
        %925 = vmatprep.subr.mxu0 0.0
        %926 = vmatpush1.xpose.msra.mxu0 0.0
        %927 = vmatprep.subr.mxu0 0.0
        %928 = vmatpush1.xpose.msra.mxu0 0.0
        %929 = vmatprep.subr.mxu0 0.0
        %930 = vmatpush1.xpose.msra.mxu0 0.0
        %931 = vmatprep.subr.mxu0 0.0
        %932 = vmatpush1.xpose.msra.mxu0 0.0
        %933 = vmatprep.subr.mxu0 0.0
        %934 = vmatpush1.xpose.msra.mxu0 0.0
        %935 = vmatprep.subr.mxu0 0.0
        %936 = vmatpush1.xpose.msra.mxu0 0.0
        %937 = vmatprep.subr.mxu0 0.0
        %938 = vmatpush1.xpose.msra.mxu0 0.0
        %939 = vmatprep.subr.mxu0 0.0
        %940 = vmatpush1.xpose.msra.mxu0 0.0
        %941 = vmatprep.subr.mxu0 0.0
        %942 = vmatpush1.xpose.msra.mxu0 0.0
        %943 = vmatprep.subr.mxu0 0.0
        %944 = vmatpush1.xpose.msra.mxu0 0.0
        %945 = vmatprep.subr.mxu0 0.0
        %946 = vmatpush1.xpose.msra.mxu0 0.0
        %947 = vmatprep.subr.mxu0 0.0
        %948 = vmatpush1.xpose.msra.mxu0 0.0
        %949 = vmatprep.mubr.f32.mxu0 0.0
        %950 = vmatmul.mubr.f32.gmra.mrb[0].mxu0 %v880
        %v951 = vpop.f32.mrb[0].mxu0
        %v952 = vadd.f32 0.0, %v951
        %v953 = vpop.f32.mrb[0].mxu0
        %954 = vdwg.mxu0
        %v956 = vsel %vm802, %v504, 0
        %v959 = vsel %vm802, %v652, 0
        %961 = vmatprep.subr.mxu0 0.0
        %962 = vmatpush1.xpose.msra.mxu0 %v959
        %963 = vmatprep.subr.mxu0 0.0
        %964 = vmatpush1.xpose.msra.mxu0 0.0
        %965 = vmatprep.subr.mxu0 0.0
        %966 = vmatpush1.xpose.msra.mxu0 0.0
        %967 = vmatprep.subr.mxu0 0.0
        %968 = vmatpush1.xpose.msra.mxu0 0.0
        %969 = vmatprep.subr.mxu0 0.0
        %970 = vmatpush1.xpose.msra.mxu0 0.0
        %971 = vmatprep.subr.mxu0 0.0
        %972 = vmatpush1.xpose.msra.mxu0 0.0
        %973 = vmatprep.subr.mxu0 0.0
        %974 = vmatpush1.xpose.msra.mxu0 0.0
        %975 = vmatprep.subr.mxu0 0.0
        %976 = vmatpush1.xpose.msra.mxu0 0.0
        %977 = vmatprep.subr.mxu0 0.0
        %978 = vmatpush1.xpose.msra.mxu0 0.0
        %979 = vmatprep.subr.mxu0 0.0
        %980 = vmatpush1.xpose.msra.mxu0 0.0
        %981 = vmatprep.subr.mxu0 0.0
        %982 = vmatpush1.xpose.msra.mxu0 0.0
        %983 = vmatprep.subr.mxu0 0.0
        %984 = vmatpush1.xpose.msra.mxu0 0.0
        %985 = vmatprep.subr.mxu0 0.0
        %986 = vmatpush1.xpose.msra.mxu0 0.0
        %987 = vmatprep.subr.mxu0 0.0
        %988 = vmatpush1.xpose.msra.mxu0 0.0
        %989 = vmatprep.subr.mxu0 0.0
        %990 = vmatpush1.xpose.msra.mxu0 0.0
        %991 = vmatprep.subr.mxu0 0.0
        %992 = vmatpush1.xpose.msra.mxu0 0.0
        %993 = vmatprep.subr.mxu0 0.0
        %994 = vmatpush1.xpose.msra.mxu0 0.0
        %995 = vmatprep.subr.mxu0 0.0
        %996 = vmatpush1.xpose.msra.mxu0 0.0
        %997 = vmatprep.subr.mxu0 0.0
        %998 = vmatpush1.xpose.msra.mxu0 0.0
        %999 = vmatprep.subr.mxu0 0.0
        %1000 = vmatpush1.xpose.msra.mxu0 0.0
        %1001 = vmatprep.subr.mxu0 0.0
        %1002 = vmatpush1.xpose.msra.mxu0 0.0
        %1003 = vmatprep.subr.mxu0 0.0
        %1004 = vmatpush1.xpose.msra.mxu0 0.0
        %1005 = vmatprep.subr.mxu0 0.0
        %1006 = vmatpush1.xpose.msra.mxu0 0.0
        %1007 = vmatprep.subr.mxu0 0.0
        %1008 = vmatpush1.xpose.msra.mxu0 0.0
        %1009 = vmatprep.subr.mxu0 0.0
        %1010 = vmatpush1.xpose.msra.mxu0 0.0
        %1011 = vmatprep.subr.mxu0 0.0
        %1012 = vmatpush1.xpose.msra.mxu0 0.0
        %1013 = vmatprep.subr.mxu0 0.0
        %1014 = vmatpush1.xpose.msra.mxu0 0.0
        %1015 = vmatprep.subr.mxu0 0.0
        %1016 = vmatpush1.xpose.msra.mxu0 0.0
        %1017 = vmatprep.subr.mxu0 0.0
        %1018 = vmatpush1.xpose.msra.mxu0 0.0
        %1019 = vmatprep.subr.mxu0 0.0
        %1020 = vmatpush1.xpose.msra.mxu0 0.0
        %1021 = vmatprep.subr.mxu0 0.0
        %1022 = vmatpush1.xpose.msra.mxu0 0.0
        %1023 = vmatprep.subr.mxu0 0.0
        %1024 = vmatpush1.xpose.msra.mxu0 0.0
        %1025 = vmatprep.mubr.f32.mxu0 0.0
        %1026 = vmatmul.mubr.f32.gmra.mrb[0].mxu0 %v956
        %v1027 = vpop.f32.mrb[0].mxu0
        %v1028 = vadd.f32 0.0, %v1027
        %v1029 = vpop.f32.mrb[0].mxu0
        %1030 = vdwg.mxu0
        %v1032 = vsel %vm802, %v505, 0
        %v1035 = vsel %vm802, %v653, 0
        %1037 = vmatprep.subr.mxu0 0.0
        %1038 = vmatpush1.xpose.msra.mxu0 %v1035
        %1039 = vmatprep.subr.mxu0 0.0
        %1040 = vmatpush1.xpose.msra.mxu0 0.0
        %1041 = vmatprep.subr.mxu0 0.0
        %1042 = vmatpush1.xpose.msra.mxu0 0.0
        %1043 = vmatprep.subr.mxu0 0.0
        %1044 = vmatpush1.xpose.msra.mxu0 0.0
        %1045 = vmatprep.subr.mxu0 0.0
        %1046 = vmatpush1.xpose.msra.mxu0 0.0
        %1047 = vmatprep.subr.mxu0 0.0
        %1048 = vmatpush1.xpose.msra.mxu0 0.0
        %1049 = vmatprep.subr.mxu0 0.0
        %1050 = vmatpush1.xpose.msra.mxu0 0.0
        %1051 = vmatprep.subr.mxu0 0.0
        %1052 = vmatpush1.xpose.msra.mxu0 0.0
        %1053 = vmatprep.subr.mxu0 0.0
        %1054 = vmatpush1.xpose.msra.mxu0 0.0
        %1055 = vmatprep.subr.mxu0 0.0
        %1056 = vmatpush1.xpose.msra.mxu0 0.0
        %1057 = vmatprep.subr.mxu0 0.0
        %1058 = vmatpush1.xpose.msra.mxu0 0.0
        %1059 = vmatprep.subr.mxu0 0.0
        %1060 = vmatpush1.xpose.msra.mxu0 0.0
        %1061 = vmatprep.subr.mxu0 0.0
        %1062 = vmatpush1.xpose.msra.mxu0 0.0
        %1063 = vmatprep.subr.mxu0 0.0
        %1064 = vmatpush1.xpose.msra.mxu0 0.0
        %1065 = vmatprep.subr.mxu0 0.0
        %1066 = vmatpush1.xpose.msra.mxu0 0.0
        %1067 = vmatprep.subr.mxu0 0.0
        %1068 = vmatpush1.xpose.msra.mxu0 0.0
        %1069 = vmatprep.subr.mxu0 0.0
        %1070 = vmatpush1.xpose.msra.mxu0 0.0
        %1071 = vmatprep.subr.mxu0 0.0
        %1072 = vmatpush1.xpose.msra.mxu0 0.0
        %1073 = vmatprep.subr.mxu0 0.0
        %1074 = vmatpush1.xpose.msra.mxu0 0.0
        %1075 = vmatprep.subr.mxu0 0.0
        %1076 = vmatpush1.xpose.msra.mxu0 0.0
        %1077 = vmatprep.subr.mxu0 0.0
        %1078 = vmatpush1.xpose.msra.mxu0 0.0
        %1079 = vmatprep.subr.mxu0 0.0
        %1080 = vmatpush1.xpose.msra.mxu0 0.0
        %1081 = vmatprep.subr.mxu0 0.0
        %1082 = vmatpush1.xpose.msra.mxu0 0.0
        %1083 = vmatprep.subr.mxu0 0.0
        %1084 = vmatpush1.xpose.msra.mxu0 0.0
        %1085 = vmatprep.subr.mxu0 0.0
        %1086 = vmatpush1.xpose.msra.mxu0 0.0
        %1087 = vmatprep.subr.mxu0 0.0
        %1088 = vmatpush1.xpose.msra.mxu0 0.0
        %1089 = vmatprep.subr.mxu0 0.0
        %1090 = vmatpush1.xpose.msra.mxu0 0.0
        %1091 = vmatprep.subr.mxu0 0.0
        %1092 = vmatpush1.xpose.msra.mxu0 0.0
        %1093 = vmatprep.subr.mxu0 0.0
        %1094 = vmatpush1.xpose.msra.mxu0 0.0
        %1095 = vmatprep.subr.mxu0 0.0
        %1096 = vmatpush1.xpose.msra.mxu0 0.0
        %1097 = vmatprep.subr.mxu0 0.0
        %1098 = vmatpush1.xpose.msra.mxu0 0.0
        %1099 = vmatprep.subr.mxu0 0.0
        %1100 = vmatpush1.xpose.msra.mxu0 0.0
        %1101 = vmatprep.mubr.f32.mxu0 0.0
        %1102 = vmatmul.mubr.f32.gmra.mrb[0].mxu0 %v1032
        %v1103 = vpop.f32.mrb[0].mxu0
        %v1104 = vadd.f32 0.0, %v1103
        %v1105 = vpop.f32.mrb[0].mxu0
        %1106 = vdwg.mxu0
        %v1107 = vsel %vm802, %v876, -inf
        %1108 = vmax.xlane.f32.xlu0 %v1107
        %v1109 = vpop.xlane.xlu0 %1108
        %v1110 = vsel %vm802, %v952, -inf
        %1111 = vmax.xlane.f32.xlu0 %v1110
        %v1112 = vpop.xlane.xlu0 %1111
        %v1113 = vsel %vm802, %v1028, -inf
        %1114 = vmax.xlane.f32.xlu0 %v1113
        %v1115 = vpop.xlane.xlu0 %1114
        %v1116 = vsel %vm802, %v1104, -inf
        %1117 = vmax.xlane.f32.xlu0 %v1116
        %v1118 = vpop.xlane.xlu0 %1117
        %v1119 = vsub.f32 %v876, %v1109
        %v1120 = vsub.f32 %v952, %v1112
        %v1121 = vsub.f32 %v1028, %v1115
        %v1122 = vsub.f32 %v1104, %v1118
        %v1123 = vmul.f32 %v1119, 1.442695
        %v1124 = vpow.pop %v1123
        %v1125 = vmul.f32 %v1120, 1.442695
        %v1126 = vpow.pop %v1125
        %v1127 = vmul.f32 %v1121, 1.442695
        %v1128 = vpow.pop %v1127
        %v1129 = vmul.f32 %v1122, 1.442695
        %v1130 = vpow.pop %v1129
        %v1131 = vsel %vm802, %v1124, 0.0
        %1132 = vadd.xlane.f32.xlu0 %v1131
        %v1133 = vpop.xlane.xlu0 %1132
        %v1134 = vsel %vm802, %v1126, 0.0
        %1135 = vadd.xlane.f32.xlu0 %v1134
        %v1136 = vpop.xlane.xlu0 %1135
        %v1137 = vsel %vm802, %v1128, 0.0
        %1138 = vadd.xlane.f32.xlu0 %v1137
        %v1139 = vpop.xlane.xlu0 %1138
        %v1140 = vsel %vm802, %v1130, 0.0
        %1141 = vadd.xlane.f32.xlu0 %v1140
        %v1142 = vpop.xlane.xlu0 %1141
        %v1144 = vsel %vm802, %v1124, 0
        %1146 = vmatprep.subr.mxu0 0.0
        %1147 = vmatpush1.msra.mxu0 %v798
        %1148 = vmatprep.subr.mxu0 0.0
        %1149 = vmatpush1.msra.mxu0 0.0
        %1150 = vmatprep.subr.mxu0 0.0
        %1151 = vmatpush1.msra.mxu0 0.0
        %1152 = vmatprep.subr.mxu0 0.0
        %1153 = vmatpush1.msra.mxu0 0.0
        %1154 = vmatprep.subr.mxu0 0.0
        %1155 = vmatpush1.msra.mxu0 0.0
        %1156 = vmatprep.subr.mxu0 0.0
        %1157 = vmatpush1.msra.mxu0 0.0
        %1158 = vmatprep.subr.mxu0 0.0
        %1159 = vmatpush1.msra.mxu0 0.0
        %1160 = vmatprep.subr.mxu0 0.0
        %1161 = vmatpush1.msra.mxu0 0.0
        %1162 = vmatprep.subr.mxu0 0.0
        %1163 = vmatpush1.msra.mxu0 0.0
        %1164 = vmatprep.subr.mxu0 0.0
        %1165 = vmatpush1.msra.mxu0 0.0
        %1166 = vmatprep.subr.mxu0 0.0
        %1167 = vmatpush1.msra.mxu0 0.0
        %1168 = vmatprep.subr.mxu0 0.0
        %1169 = vmatpush1.msra.mxu0 0.0
        %1170 = vmatprep.subr.mxu0 0.0
        %1171 = vmatpush1.msra.mxu0 0.0
        %1172 = vmatprep.subr.mxu0 0.0
        %1173 = vmatpush1.msra.mxu0 0.0
        %1174 = vmatprep.subr.mxu0 0.0
        %1175 = vmatpush1.msra.mxu0 0.0
        %1176 = vmatprep.subr.mxu0 0.0
        %1177 = vmatpush1.msra.mxu0 0.0
        %1178 = vmatprep.subr.mxu0 0.0
        %1179 = vmatpush1.msra.mxu0 0.0
        %1180 = vmatprep.subr.mxu0 0.0
        %1181 = vmatpush1.msra.mxu0 0.0
        %1182 = vmatprep.subr.mxu0 0.0
        %1183 = vmatpush1.msra.mxu0 0.0
        %1184 = vmatprep.subr.mxu0 0.0
        %1185 = vmatpush1.msra.mxu0 0.0
        %1186 = vmatprep.subr.mxu0 0.0
        %1187 = vmatpush1.msra.mxu0 0.0
        %1188 = vmatprep.subr.mxu0 0.0
        %1189 = vmatpush1.msra.mxu0 0.0
        %1190 = vmatprep.subr.mxu0 0.0
        %1191 = vmatpush1.msra.mxu0 0.0
        %1192 = vmatprep.subr.mxu0 0.0
        %1193 = vmatpush1.msra.mxu0 0.0
        %1194 = vmatprep.subr.mxu0 0.0
        %1195 = vmatpush1.msra.mxu0 0.0
        %1196 = vmatprep.subr.mxu0 0.0
        %1197 = vmatpush1.msra.mxu0 0.0
        %1198 = vmatprep.subr.mxu0 0.0
        %1199 = vmatpush1.msra.mxu0 0.0
        %1200 = vmatprep.subr.mxu0 0.0
        %1201 = vmatpush1.msra.mxu0 0.0
        %1202 = vmatprep.subr.mxu0 0.0
        %1203 = vmatpush1.msra.mxu0 0.0
        %1204 = vmatprep.subr.mxu0 0.0
        %1205 = vmatpush1.msra.mxu0 0.0
        %1206 = vmatprep.subr.mxu0 0.0
        %1207 = vmatpush1.msra.mxu0 0.0
        %1208 = vmatprep.subr.mxu0 0.0
        %1209 = vmatpush1.msra.mxu0 0.0
        %1210 = vmatprep.mubr.f32.mxu0 0.0
        %1211 = vmatmul.mubr.f32.gmra.mrb[0].mxu0 %v1144
        %v1212 = vpop.f32.mrb[0].mxu0
        %v1213 = vadd.f32 0.0, %v1212
        %v1214 = vpop.f32.mrb[0].mxu0
        %1215 = vdwg.mxu0
        %v1217 = vsel %vm802, %v1126, 0
        %1219 = vmatprep.subr.mxu0 0.0
        %1220 = vmatpush1.msra.mxu0 %v799
        %1221 = vmatprep.subr.mxu0 0.0
        %1222 = vmatpush1.msra.mxu0 0.0
        %1223 = vmatprep.subr.mxu0 0.0
        %1224 = vmatpush1.msra.mxu0 0.0
        %1225 = vmatprep.subr.mxu0 0.0
        %1226 = vmatpush1.msra.mxu0 0.0
        %1227 = vmatprep.subr.mxu0 0.0
        %1228 = vmatpush1.msra.mxu0 0.0
        %1229 = vmatprep.subr.mxu0 0.0
        %1230 = vmatpush1.msra.mxu0 0.0
        %1231 = vmatprep.subr.mxu0 0.0
        %1232 = vmatpush1.msra.mxu0 0.0
        %1233 = vmatprep.subr.mxu0 0.0
        %1234 = vmatpush1.msra.mxu0 0.0
        %1235 = vmatprep.subr.mxu0 0.0
        %1236 = vmatpush1.msra.mxu0 0.0
        %1237 = vmatprep.subr.mxu0 0.0
        %1238 = vmatpush1.msra.mxu0 0.0
        %1239 = vmatprep.subr.mxu0 0.0
        %1240 = vmatpush1.msra.mxu0 0.0
        %1241 = vmatprep.subr.mxu0 0.0
        %1242 = vmatpush1.msra.mxu0 0.0
        %1243 = vmatprep.subr.mxu0 0.0
        %1244 = vmatpush1.msra.mxu0 0.0
        %1245 = vmatprep.subr.mxu0 0.0
        %1246 = vmatpush1.msra.mxu0 0.0
        %1247 = vmatprep.subr.mxu0 0.0
        %1248 = vmatpush1.msra.mxu0 0.0
        %1249 = vmatprep.subr.mxu0 0.0
        %1250 = vmatpush1.msra.mxu0 0.0
        %1251 = vmatprep.subr.mxu0 0.0
        %1252 = vmatpush1.msra.mxu0 0.0
        %1253 = vmatprep.subr.mxu0 0.0
        %1254 = vmatpush1.msra.mxu0 0.0
        %1255 = vmatprep.subr.mxu0 0.0
        %1256 = vmatpush1.msra.mxu0 0.0
        %1257 = vmatprep.subr.mxu0 0.0
        %1258 = vmatpush1.msra.mxu0 0.0
        %1259 = vmatprep.subr.mxu0 0.0
        %1260 = vmatpush1.msra.mxu0 0.0
        %1261 = vmatprep.subr.mxu0 0.0
        %1262 = vmatpush1.msra.mxu0 0.0
        %1263 = vmatprep.subr.mxu0 0.0
        %1264 = vmatpush1.msra.mxu0 0.0
        %1265 = vmatprep.subr.mxu0 0.0
        %1266 = vmatpush1.msra.mxu0 0.0
        %1267 = vmatprep.subr.mxu0 0.0
        %1268 = vmatpush1.msra.mxu0 0.0
        %1269 = vmatprep.subr.mxu0 0.0
        %1270 = vmatpush1.msra.mxu0 0.0
        %1271 = vmatprep.subr.mxu0 0.0
        %1272 = vmatpush1.msra.mxu0 0.0
        %1273 = vmatprep.subr.mxu0 0.0
        %1274 = vmatpush1.msra.mxu0 0.0
        %1275 = vmatprep.subr.mxu0 0.0
        %1276 = vmatpush1.msra.mxu0 0.0
        %1277 = vmatprep.subr.mxu0 0.0
        %1278 = vmatpush1.msra.mxu0 0.0
        %1279 = vmatprep.subr.mxu0 0.0
        %1280 = vmatpush1.msra.mxu0 0.0
        %1281 = vmatprep.subr.mxu0 0.0
        %1282 = vmatpush1.msra.mxu0 0.0
        %1283 = vmatprep.mubr.f32.mxu0 0.0
        %1284 = vmatmul.mubr.f32.gmra.mrb[0].mxu0 %v1217
        %v1285 = vpop.f32.mrb[0].mxu0
        %v1286 = vadd.f32 0.0, %v1285
        %v1287 = vpop.f32.mrb[0].mxu0
        %1288 = vdwg.mxu0
        %v1290 = vsel %vm802, %v1128, 0
        %1292 = vmatprep.subr.mxu0 0.0
        %1293 = vmatpush1.msra.mxu0 %v800
        %1294 = vmatprep.subr.mxu0 0.0
        %1295 = vmatpush1.msra.mxu0 0.0
        %1296 = vmatprep.subr.mxu0 0.0
        %1297 = vmatpush1.msra.mxu0 0.0
        %1298 = vmatprep.subr.mxu0 0.0
        %1299 = vmatpush1.msra.mxu0 0.0
        %1300 = vmatprep.subr.mxu0 0.0
        %1301 = vmatpush1.msra.mxu0 0.0
        %1302 = vmatprep.subr.mxu0 0.0
        %1303 = vmatpush1.msra.mxu0 0.0
        %1304 = vmatprep.subr.mxu0 0.0
        %1305 = vmatpush1.msra.mxu0 0.0
        %1306 = vmatprep.subr.mxu0 0.0
        %1307 = vmatpush1.msra.mxu0 0.0
        %1308 = vmatprep.subr.mxu0 0.0
        %1309 = vmatpush1.msra.mxu0 0.0
        %1310 = vmatprep.subr.mxu0 0.0
        %1311 = vmatpush1.msra.mxu0 0.0
        %1312 = vmatprep.subr.mxu0 0.0
        %1313 = vmatpush1.msra.mxu0 0.0
        %1314 = vmatprep.subr.mxu0 0.0
        %1315 = vmatpush1.msra.mxu0 0.0
        %1316 = vmatprep.subr.mxu0 0.0
        %1317 = vmatpush1.msra.mxu0 0.0
        %1318 = vmatprep.subr.mxu0 0.0
        %1319 = vmatpush1.msra.mxu0 0.0
        %1320 = vmatprep.subr.mxu0 0.0
        %1321 = vmatpush1.msra.mxu0 0.0
        %1322 = vmatprep.subr.mxu0 0.0
        %1323 = vmatpush1.msra.mxu0 0.0
        %1324 = vmatprep.subr.mxu0 0.0
        %1325 = vmatpush1.msra.mxu0 0.0
        %1326 = vmatprep.subr.mxu0 0.0
        %1327 = vmatpush1.msra.mxu0 0.0
        %1328 = vmatprep.subr.mxu0 0.0
        %1329 = vmatpush1.msra.mxu0 0.0
        %1330 = vmatprep.subr.mxu0 0.0
        %1331 = vmatpush1.msra.mxu0 0.0
        %1332 = vmatprep.subr.mxu0 0.0
        %1333 = vmatpush1.msra.mxu0 0.0
        %1334 = vmatprep.subr.mxu0 0.0
        %1335 = vmatpush1.msra.mxu0 0.0
        %1336 = vmatprep.subr.mxu0 0.0
        %1337 = vmatpush1.msra.mxu0 0.0
        %1338 = vmatprep.subr.mxu0 0.0
        %1339 = vmatpush1.msra.mxu0 0.0
        %1340 = vmatprep.subr.mxu0 0.0
        %1341 = vmatpush1.msra.mxu0 0.0
        %1342 = vmatprep.subr.mxu0 0.0
        %1343 = vmatpush1.msra.mxu0 0.0
        %1344 = vmatprep.subr.mxu0 0.0
        %1345 = vmatpush1.msra.mxu0 0.0
        %1346 = vmatprep.subr.mxu0 0.0
        %1347 = vmatpush1.msra.mxu0 0.0
        %1348 = vmatprep.subr.mxu0 0.0
        %1349 = vmatpush1.msra.mxu0 0.0
        %1350 = vmatprep.subr.mxu0 0.0
        %1351 = vmatpush1.msra.mxu0 0.0
        %1352 = vmatprep.subr.mxu0 0.0
        %1353 = vmatpush1.msra.mxu0 0.0
        %1354 = vmatprep.subr.mxu0 0.0
        %1355 = vmatpush1.msra.mxu0 0.0
        %1356 = vmatprep.mubr.f32.mxu0 0.0
        %1357 = vmatmul.mubr.f32.gmra.mrb[0].mxu0 %v1290
        %v1358 = vpop.f32.mrb[0].mxu0
        %v1359 = vadd.f32 0.0, %v1358
        %v1360 = vpop.f32.mrb[0].mxu0
        %1361 = vdwg.mxu0
        %v1363 = vsel %vm802, %v1130, 0
        %1365 = vmatprep.subr.mxu0 0.0
        %1366 = vmatpush1.msra.mxu0 %v801
        %1367 = vmatprep.subr.mxu0 0.0
        %1368 = vmatpush1.msra.mxu0 0.0
        %1369 = vmatprep.subr.mxu0 0.0
        %1370 = vmatpush1.msra.mxu0 0.0
        %1371 = vmatprep.subr.mxu0 0.0
        %1372 = vmatpush1.msra.mxu0 0.0
        %1373 = vmatprep.subr.mxu0 0.0
        %1374 = vmatpush1.msra.mxu0 0.0
        %1375 = vmatprep.subr.mxu0 0.0
        %1376 = vmatpush1.msra.mxu0 0.0
        %1377 = vmatprep.subr.mxu0 0.0
        %1378 = vmatpush1.msra.mxu0 0.0
        %1379 = vmatprep.subr.mxu0 0.0
        %1380 = vmatpush1.msra.mxu0 0.0
        %1381 = vmatprep.subr.mxu0 0.0
        %1382 = vmatpush1.msra.mxu0 0.0
        %1383 = vmatprep.subr.mxu0 0.0
        %1384 = vmatpush1.msra.mxu0 0.0
        %1385 = vmatprep.subr.mxu0 0.0
        %1386 = vmatpush1.msra.mxu0 0.0
        %1387 = vmatprep.subr.mxu0 0.0
        %1388 = vmatpush1.msra.mxu0 0.0
        %1389 = vmatprep.subr.mxu0 0.0
        %1390 = vmatpush1.msra.mxu0 0.0
        %1391 = vmatprep.subr.mxu0 0.0
        %1392 = vmatpush1.msra.mxu0 0.0
        %1393 = vmatprep.subr.mxu0 0.0
        %1394 = vmatpush1.msra.mxu0 0.0
        %1395 = vmatprep.subr.mxu0 0.0
        %1396 = vmatpush1.msra.mxu0 0.0
        %1397 = vmatprep.subr.mxu0 0.0
        %1398 = vmatpush1.msra.mxu0 0.0
        %1399 = vmatprep.subr.mxu0 0.0
        %1400 = vmatpush1.msra.mxu0 0.0
        %1401 = vmatprep.subr.mxu0 0.0
        %1402 = vmatpush1.msra.mxu0 0.0
        %1403 = vmatprep.subr.mxu0 0.0
        %1404 = vmatpush1.msra.mxu0 0.0
        %1405 = vmatprep.subr.mxu0 0.0
        %1406 = vmatpush1.msra.mxu0 0.0
        %1407 = vmatprep.subr.mxu0 0.0
        %1408 = vmatpush1.msra.mxu0 0.0
        %1409 = vmatprep.subr.mxu0 0.0
        %1410 = vmatpush1.msra.mxu0 0.0
        %1411 = vmatprep.subr.mxu0 0.0
        %1412 = vmatpush1.msra.mxu0 0.0
        %1413 = vmatprep.subr.mxu0 0.0
        %1414 = vmatpush1.msra.mxu0 0.0
        %1415 = vmatprep.subr.mxu0 0.0
        %1416 = vmatpush1.msra.mxu0 0.0
        %1417 = vmatprep.subr.mxu0 0.0
        %1418 = vmatpush1.msra.mxu0 0.0
        %1419 = vmatprep.subr.mxu0 0.0
        %1420 = vmatpush1.msra.mxu0 0.0
        %1421 = vmatprep.subr.mxu0 0.0
        %1422 = vmatpush1.msra.mxu0 0.0
        %1423 = vmatprep.subr.mxu0 0.0
        %1424 = vmatpush1.msra.mxu0 0.0
        %1425 = vmatprep.subr.mxu0 0.0
        %1426 = vmatpush1.msra.mxu0 0.0
        %1427 = vmatprep.subr.mxu0 0.0
        %1428 = vmatpush1.msra.mxu0 0.0
        %1429 = vmatprep.mubr.f32.mxu0 0.0
        %1430 = vmatmul.mubr.f32.gmra.mrb[0].mxu0 %v1363
        %v1431 = vpop.f32.mrb[0].mxu0
        %v1432 = vadd.f32 0.0, %v1431
        %v1433 = vpop.f32.mrb[0].mxu0
        %1434 = vdwg.mxu0
        %v1435 = vrcp.pop %v1133
        %v1436 = vrcp.pop %v1136
        %v1437 = vrcp.pop %v1139
        %v1438 = vrcp.pop %v1142
        %v1439 = vmul.f32 %v1213, %v1435
        %v1440 = vmul.f32 %v1286, %v1436
        %v1441 = vmul.f32 %v1359, %v1437
        %v1442 = vmul.f32 %v1432, %v1438
        %v1443 = vcombine.low %v1439, %v1441
        %v1444 = vcombine.high %v1439, %v1441
        %v1446 = vunpack.c.l.s4 1983009808
        %v1447 = vunpack.c.0.s8 %v1446
        %v1448 = vlaneseq
        %v1449 = vshrl.u32 %v1448, 7
        %v1450 = vsub.s32 %v1447, %v1449
        %v1451 = vrot.slane %v1443, %v1450
        %v1453 = vunpack.c.l.s4 1983009808
        %v1454 = vunpack.c.0.s8 %v1453
        %v1455 = vlaneseq
        %v1456 = vshrl.u32 %v1455, 7
        %v1457 = vsub.s32 %v1454, %v1456
        %v1458 = vrot.slane %v1444, %v1457
        %v1459 = vcombine.low %v1440, %v1442
        %v1460 = vcombine.high %v1440, %v1442
        %v1462 = vunpack.c.l.s4 1983009808
        %v1463 = vunpack.c.0.s8 %v1462
        %v1464 = vlaneseq
        %v1465 = vshrl.u32 %v1464, 7
        %v1466 = vsub.s32 %v1463, %v1465
        %v1467 = vrot.slane %v1459, %v1466
        %v1469 = vunpack.c.l.s4 1983009808
        %v1470 = vunpack.c.0.s8 %v1469
        %v1471 = vlaneseq
        %v1472 = vshrl.u32 %v1471, 7
        %v1473 = vsub.s32 %v1470, %v1472
        %v1474 = vrot.slane %v1460, %v1473
        %v1475 = vcombine.low %v1451, %v1467
        %v1476 = vcombine.high %v1451, %v1467
        %v1478 = vunpack.c.l.s4 1934713408
        %v1479 = vunpack.c.0.s8 %v1478
        %v1480 = vlaneseq
        %v1481 = vshrl.u32 %v1480, 7
        %v1482 = vsub.s32 %v1479, %v1481
        %v1483 = vrot.slane %v1475, %v1482
        %v1485 = vunpack.c.l.s4 1934713408
        %v1486 = vunpack.c.0.s8 %v1485
        %v1487 = vlaneseq
        %v1488 = vshrl.u32 %v1487, 7
        %v1489 = vsub.s32 %v1486, %v1488
        %v1490 = vrot.slane %v1476, %v1489
        %v1491 = vcombine.low %v1458, %v1474
        %v1492 = vcombine.high %v1458, %v1474
        %v1494 = vunpack.c.l.s4 1934713408
        %v1495 = vunpack.c.0.s8 %v1494
        %v1496 = vlaneseq
        %v1497 = vshrl.u32 %v1496, 7
        %v1498 = vsub.s32 %v1495, %v1497
        %v1499 = vrot.slane %v1491, %v1498
        %v1501 = vunpack.c.l.s4 1934713408
        %v1502 = vunpack.c.0.s8 %v1501
        %v1503 = vlaneseq
        %v1504 = vshrl.u32 %v1503, 7
        %v1505 = vsub.s32 %v1502, %v1504
        %v1506 = vrot.slane %v1492, %v1505
        %v1507 = vcombine.high %v1483, 0.0
        %v1508 = vcombine.high %v1490, 0.0
        %v1509 = vcombine.high %v1499, 0.0
        %v1510 = vcombine.high %v1506, 0.0
        %v1511 = vcombine.low %v1483, %v1490
        %v1513 = vunpack.c.l.s4 1983009808
        %v1514 = vunpack.c.0.s8 %v1513
        %v1515 = vlaneseq
        %v1516 = vshrl.u32 %v1515, 7
        %v1517 = vsub.s32 %v1514, %v1516
        %v1518 = vrot.slane %v1511, %v1517
        %v1519 = vcombine.low %v1507, %v1508
        %v1521 = vunpack.c.l.s4 1983009808
        %v1522 = vunpack.c.0.s8 %v1521
        %v1523 = vlaneseq
        %v1524 = vshrl.u32 %v1523, 7
        %v1525 = vsub.s32 %v1522, %v1524
        %v1526 = vrot.slane %v1519, %v1525
        %v1527 = vcombine.low %v1499, %v1506
        %v1529 = vunpack.c.l.s4 1983009808
        %v1530 = vunpack.c.0.s8 %v1529
        %v1531 = vlaneseq
        %v1532 = vshrl.u32 %v1531, 7
        %v1533 = vsub.s32 %v1530, %v1532
        %v1534 = vrot.slane %v1527, %v1533
        %v1535 = vcombine.low %v1509, %v1510
        %v1537 = vunpack.c.l.s4 1983009808
        %v1538 = vunpack.c.0.s8 %v1537
        %v1539 = vlaneseq
        %v1540 = vshrl.u32 %v1539, 7
        %v1541 = vsub.s32 %v1538, %v1540
        %v1542 = vrot.slane %v1535, %v1541
        %v1543 = vcombine.low %v1518, %v1526
        %v1544 = vcombine.high %v1518, %v1526
        %v1546 = vunpack.c.l.s4 1934713408
        %v1547 = vunpack.c.0.s8 %v1546
        %v1548 = vlaneseq
        %v1549 = vshrl.u32 %v1548, 7
        %v1550 = vsub.s32 %v1547, %v1549
        %v1551 = vrot.slane %v1543, %v1550
        %v1553 = vunpack.c.l.s4 1934713408
        %v1554 = vunpack.c.0.s8 %v1553
        %v1555 = vlaneseq
        %v1556 = vshrl.u32 %v1555, 7
        %v1557 = vsub.s32 %v1554, %v1556
        %v1558 = vrot.slane %v1544, %v1557
        %v1559 = vcombine.low %v1534, %v1542
        %v1560 = vcombine.high %v1534, %v1542
        %v1562 = vunpack.c.l.s4 1934713408
        %v1563 = vunpack.c.0.s8 %v1562
        %v1564 = vlaneseq
        %v1565 = vshrl.u32 %v1564, 7
        %v1566 = vsub.s32 %v1563, %v1565
        %v1567 = vrot.slane %v1559, %v1566
        %v1569 = vunpack.c.l.s4 1934713408
        %v1570 = vunpack.c.0.s8 %v1569
        %v1571 = vlaneseq
        %v1572 = vshrl.u32 %v1571, 7
        %v1573 = vsub.s32 %v1570, %v1572
        %v1574 = vrot.slane %v1560, %v1573
        %v1575 = vcombine.low %v1551, %v1567
        %v1576 = vcombine.high %v1551, %v1567
        %v1577 = vcombine.low %v1558, %v1574
        %v1578 = vcombine.high %v1558, %v1574
        %1580 = vrot.lane.b32.xlu0 %v1576, 8
        %v1581 = vpop.permute.xlu0 %1580
        %1584 = vrot.lane.b32.xlu0 %v1577, 16
        %v1585 = vpop.permute.xlu0 %1584
        %1588 = vrot.lane.b32.xlu0 %v1578, 24
        %v1589 = vpop.permute.xlu0 %1588
        %v1591 = vsel %vm802, %v1575, %v1581
        %vm1592 = vcmask 130048
        %v1593 = vsel %vm1592, %v1591, %v1585
        %vm1594 = vcmask 195584
        %v1595 = vsel %vm1594, %v1593, %v1589
        %v1596 = vadd.f32 %v274, %v1595
        %v1597 = vsel %vm286, %v1596, 0.0
        %1598 = vadd.xlane.f32.xlu0 %v1597
        %v1599 = vpop.xlane.xlu0 %1598
        %v1600 = vrot.slane %v1599, 4
        %v1601 = vadd.f32 %v1599, %v1600
        %v1602 = vrot.slane %v1601, 2
        %v1603 = vadd.f32 %v1601, %v1602
        %v1604 = vrot.slane %v1603, 1
        %v1605 = vadd.f32 %v1603, %v1604
        %s1606 = vtos %v1605
        %v1607 = vstv %s1606
        %v1608 = vrcp.pop 256.0
        %v1609 = vmul.f32 %v1607, %v1608
        %v1610 = vsub.f32 %v1596, %v1609
        %v1611 = vmul.f32 %v1610, %v1610
        %v1612 = vsel %vm286, %v1611, 0.0
        %1613 = vadd.xlane.f32.xlu0 %v1612
        %v1614 = vpop.xlane.xlu0 %1613
        %v1615 = vrot.slane %v1614, 4
        %v1616 = vadd.f32 %v1614, %v1615
        %v1617 = vrot.slane %v1616, 2
        %v1618 = vadd.f32 %v1616, %v1617
        %v1619 = vrot.slane %v1618, 1
        %v1620 = vadd.f32 %v1618, %v1619
        %s1621 = vtos %v1620
        %v1622 = vstv %s1621
        %v1623 = vmul.f32 %v1622, %v1608
        %v1624 = vadd.f32 %v1623, 1e-05
        %v1625 = vrsqrt.pop %v1624
        %v1626 = vmul.f32 %v1610, %v1625
        %v1627 = vld [vmem:[%s3] sm:$0xff]
        %v1628 = vld [vmem:[%s3 + $0x8] sm:$0xff]
        %v1629 = vld [vmem:[%s3 + $0x10] sm:$0xff]
        %v1630 = vld [vmem:[%s3 + $0x18] sm:$0xff]
        %v1631 = vld [vmem:[%s4] sm:$0x1]
        %v1633 = vlaneseq
        %v1634 = vshrl.u32 %v1633, 7
        %v1635 = vsub.s32 0, %v1634
        %v1636 = vrot.slane %v1631, %v1635
        %v1639 = vsel %vm286, %v1626, 0
        %1641 = vmatprep.subr.mxu0 0.0
        %1642 = vmatpush1.msra.mxu0 %v1627
        %1643 = vmatprep.subr.mxu0 0.0
        %1644 = vmatpush1.msra.mxu0 %v1628
        %1645 = vmatprep.subr.mxu0 0.0
        %1646 = vmatpush1.msra.mxu0 %v1629
        %1647 = vmatprep.subr.mxu0 0.0
        %1648 = vmatpush1.msra.mxu0 %v1630
        %1649 = vmatprep.subr.mxu0 0.0
        %1650 = vmatpush1.msra.mxu0 0.0
        %1651 = vmatprep.subr.mxu0 0.0
        %1652 = vmatpush1.msra.mxu0 0.0
        %1653 = vmatprep.subr.mxu0 0.0
        %1654 = vmatpush1.msra.mxu0 0.0
        %1655 = vmatprep.subr.mxu0 0.0
        %1656 = vmatpush1.msra.mxu0 0.0
        %1657 = vmatprep.subr.mxu0 0.0
        %1658 = vmatpush1.msra.mxu0 0.0
        %1659 = vmatprep.subr.mxu0 0.0
        %1660 = vmatpush1.msra.mxu0 0.0
        %1661 = vmatprep.subr.mxu0 0.0
        %1662 = vmatpush1.msra.mxu0 0.0
        %1663 = vmatprep.subr.mxu0 0.0
        %1664 = vmatpush1.msra.mxu0 0.0
        %1665 = vmatprep.subr.mxu0 0.0
        %1666 = vmatpush1.msra.mxu0 0.0
        %1667 = vmatprep.subr.mxu0 0.0
        %1668 = vmatpush1.msra.mxu0 0.0
        %1669 = vmatprep.subr.mxu0 0.0
        %1670 = vmatpush1.msra.mxu0 0.0
        %1671 = vmatprep.subr.mxu0 0.0
        %1672 = vmatpush1.msra.mxu0 0.0
        %1673 = vmatprep.subr.mxu0 0.0
        %1674 = vmatpush1.msra.mxu0 0.0
        %1675 = vmatprep.subr.mxu0 0.0
        %1676 = vmatpush1.msra.mxu0 0.0
        %1677 = vmatprep.subr.mxu0 0.0
        %1678 = vmatpush1.msra.mxu0 0.0
        %1679 = vmatprep.subr.mxu0 0.0
        %1680 = vmatpush1.msra.mxu0 0.0
        %1681 = vmatprep.subr.mxu0 0.0
        %1682 = vmatpush1.msra.mxu0 0.0
        %1683 = vmatprep.subr.mxu0 0.0
        %1684 = vmatpush1.msra.mxu0 0.0
        %1685 = vmatprep.subr.mxu0 0.0
        %1686 = vmatpush1.msra.mxu0 0.0
        %1687 = vmatprep.subr.mxu0 0.0
        %1688 = vmatpush1.msra.mxu0 0.0
        %1689 = vmatprep.subr.mxu0 0.0
        %1690 = vmatpush1.msra.mxu0 0.0
        %1691 = vmatprep.subr.mxu0 0.0
        %1692 = vmatpush1.msra.mxu0 0.0
        %1693 = vmatprep.subr.mxu0 0.0
        %1694 = vmatpush1.msra.mxu0 0.0
        %1695 = vmatprep.subr.mxu0 0.0
        %1696 = vmatpush1.msra.mxu0 0.0
        %1697 = vmatprep.subr.mxu0 0.0
        %1698 = vmatpush1.msra.mxu0 0.0
        %1699 = vmatprep.subr.mxu0 0.0
        %1700 = vmatpush1.msra.mxu0 0.0
        %1701 = vmatprep.subr.mxu0 0.0
        %1702 = vmatpush1.msra.mxu0 0.0
        %1703 = vmatprep.subr.mxu0 0.0
        %1704 = vmatpush1.msra.mxu0 0.0
        %1705 = vmatprep.mubr.f32.mxu0 0.0
        %1706 = vmatmul.mubr.f32.gmra.mrb[0].mxu0 %v1639
        %v1707 = vpop.f32.mrb[0].mxu0
        %v1708 = vadd.f32 %v1636, %v1707
        %v1709 = vpop.f32.mrb[0].mxu0
        %1710 = vdwg.mxu0
        %v1711 = vmax.f32 %v1708, 0.0
        %v1712 = vld [vmem:[%s5] sm:$0xff]
        %v1713 = vld [vmem:[%s5 + $0x8] sm:$0xff]
        %v1714 = vld [vmem:[%s5 + $0x10] sm:$0xff]
        %v1715 = vld [vmem:[%s5 + $0x18] sm:$0xff]
        %v1716 = vld [vmem:[%s5 + $0x20] sm:$0xff]
        %v1717 = vld [vmem:[%s5 + $0x28] sm:$0xff]
        %v1718 = vld [vmem:[%s5 + $0x30] sm:$0xff]
        %v1719 = vld [vmem:[%s5 + $0x38] sm:$0xff]
        %v1720 = vld [vmem:[%s6] sm:$0x1]
        %v1722 = vlaneseq
        %v1723 = vshrl.u32 %v1722, 7
        %v1724 = vsub.s32 0, %v1723
        %v1725 = vrot.slane %v1720, %v1724
        %vm1727 = vcmask 523264
        %v1729 = vsel %vm1727, %v1711, 0
        %1731 = vmatprep.subr.mxu0 0.0
        %1732 = vmatpush1.msra.mxu0 %v1712
        %1733 = vmatprep.subr.mxu0 0.0
        %1734 = vmatpush1.msra.mxu0 %v1713
        %1735 = vmatprep.subr.mxu0 0.0
        %1736 = vmatpush1.msra.mxu0 %v1714
        %1737 = vmatprep.subr.mxu0 0.0
        %1738 = vmatpush1.msra.mxu0 %v1715
        %1739 = vmatprep.subr.mxu0 0.0
        %1740 = vmatpush1.msra.mxu0 %v1716
        %1741 = vmatprep.subr.mxu0 0.0
        %1742 = vmatpush1.msra.mxu0 %v1717
        %1743 = vmatprep.subr.mxu0 0.0
        %1744 = vmatpush1.msra.mxu0 %v1718
        %1745 = vmatprep.subr.mxu0 0.0
        %1746 = vmatpush1.msra.mxu0 %v1719
        %1747 = vmatprep.subr.mxu0 0.0
        %1748 = vmatpush1.msra.mxu0 0.0
        %1749 = vmatprep.subr.mxu0 0.0
        %1750 = vmatpush1.msra.mxu0 0.0
        %1751 = vmatprep.subr.mxu0 0.0
        %1752 = vmatpush1.msra.mxu0 0.0
        %1753 = vmatprep.subr.mxu0 0.0
        %1754 = vmatpush1.msra.mxu0 0.0
        %1755 = vmatprep.subr.mxu0 0.0
        %1756 = vmatpush1.msra.mxu0 0.0
        %1757 = vmatprep.subr.mxu0 0.0
        %1758 = vmatpush1.msra.mxu0 0.0
        %1759 = vmatprep.subr.mxu0 0.0
        %1760 = vmatpush1.msra.mxu0 0.0
        %1761 = vmatprep.subr.mxu0 0.0
        %1762 = vmatpush1.msra.mxu0 0.0
        %1763 = vmatprep.subr.mxu0 0.0
        %1764 = vmatpush1.msra.mxu0 0.0
        %1765 = vmatprep.subr.mxu0 0.0
        %1766 = vmatpush1.msra.mxu0 0.0
        %1767 = vmatprep.subr.mxu0 0.0
        %1768 = vmatpush1.msra.mxu0 0.0
        %1769 = vmatprep.subr.mxu0 0.0
        %1770 = vmatpush1.msra.mxu0 0.0
        %1771 = vmatprep.subr.mxu0 0.0
        %1772 = vmatpush1.msra.mxu0 0.0
        %1773 = vmatprep.subr.mxu0 0.0
        %1774 = vmatpush1.msra.mxu0 0.0
        %1775 = vmatprep.subr.mxu0 0.0
        %1776 = vmatpush1.msra.mxu0 0.0
        %1777 = vmatprep.subr.mxu0 0.0
        %1778 = vmatpush1.msra.mxu0 0.0
        %1779 = vmatprep.subr.mxu0 0.0
        %1780 = vmatpush1.msra.mxu0 0.0
        %1781 = vmatprep.subr.mxu0 0.0
        %1782 = vmatpush1.msra.mxu0 0.0
        %1783 = vmatprep.subr.mxu0 0.0
        %1784 = vmatpush1.msra.mxu0 0.0
        %1785 = vmatprep.subr.mxu0 0.0
        %1786 = vmatpush1.msra.mxu0 0.0
        %1787 = vmatprep.subr.mxu0 0.0
        %1788 = vmatpush1.msra.mxu0 0.0
        %1789 = vmatprep.subr.mxu0 0.0
        %1790 = vmatpush1.msra.mxu0 0.0
        %1791 = vmatprep.subr.mxu0 0.0
        %1792 = vmatpush1.msra.mxu0 0.0
        %1793 = vmatprep.subr.mxu0 0.0
        %1794 = vmatpush1.msra.mxu0 0.0
        %1795 = vmatprep.mubr.f32.mxu0 0.0
        %1796 = vmatmul.mubr.f32.gmra.mrb[0].mxu0 %v1729
        %v1797 = vpop.f32.mrb[0].mxu0
        %v1798 = vadd.f32 %v1725, %v1797
        %v1799 = vpop.f32.mrb[0].mxu0
        %1800 = vdwg.mxu0
        %v1801 = vadd.f32 %v1626, %v1798
        %v1802 = vsel %vm286, %v1801, 0.0
        %1803 = vadd.xlane.f32.xlu0 %v1802
        %v1804 = vpop.xlane.xlu0 %1803
        %v1805 = vrot.slane %v1804, 4
        %v1806 = vadd.f32 %v1804, %v1805
        %v1807 = vrot.slane %v1806, 2
        %v1808 = vadd.f32 %v1806, %v1807
        %v1809 = vrot.slane %v1808, 1
        %v1810 = vadd.f32 %v1808, %v1809
        %s1811 = vtos %v1810
        %v1812 = vstv %s1811
        %v1813 = vmul.f32 %v1812, %v1608
        %v1814 = vsub.f32 %v1801, %v1813
        %v1815 = vmul.f32 %v1814, %v1814
        %v1816 = vsel %vm286, %v1815, 0.0
        %1817 = vadd.xlane.f32.xlu0 %v1816
        %v1818 = vpop.xlane.xlu0 %1817
        %v1819 = vrot.slane %v1818, 4
        %v1820 = vadd.f32 %v1818, %v1819
        %v1821 = vrot.slane %v1820, 2
        %v1822 = vadd.f32 %v1820, %v1821
        %v1823 = vrot.slane %v1822, 1
        %v1824 = vadd.f32 %v1822, %v1823
        %s1825 = vtos %v1824
        %v1826 = vstv %s1825
        %v1827 = vmul.f32 %v1826, %v1608
        %v1828 = vadd.f32 %v1827, 1e-05
        %v1829 = vrsqrt.pop %v1828
        %v1830 = vmul.f32 %v1814, %v1829
        %1831 = vst.msk [vmem:[%s269] sm:$0xff] %vm286, %v1830
        %s1832 = sand.u32 %s181, 1
        %s1833 = scalar_lea.sflag [#allocation3], %s1832
        %s1834 = sand.u32 %s181, 1
        %s1835 = smul.addr %s1834, 8
        %s1836 = scalar_lea.vmem [#allocation2], %s1835
        // Predicated region
        $region49: #{tpu_custom_call.1} parent=47 // pred_check
          %p1837 = pneg %p191
        $region50: #{tpu_custom_call.1} parent=47 // pred_check_branch
          %1839 = sbr.rel (%p1837) target = $region52
        $region51: #{tpu_custom_call.1} parent=47 // pred_region
          %s1841 = ssub.s32 128, 128
          %1842 = vsyncadd %s1833, %s1841
          %s1843 = smul.addr %s21, 128
          %s1844 = scalar_lea.hbm %s7, %s1843
          %s1846 = sshll.u32 %s1836, 4
          %s1847 = int_to_ptr.vmem [resolvable:$true] %s1846
          %1849 = dma.vmem_to_hbm [thread:$0]  %s1847, 128, %s1844, %s1833
        $region52: #{tpu_custom_call.1} parent=47 // pred_fallthru
          _
      $region48: #{tpu_custom_call.1} parent=5 // pred_fallthru
        _
      %p1850 = scmp.le.s32.totalorder 2, %s16
      // Predicated region
      $region53: #{tpu_custom_call.1} parent=5 // pred_check
        %p1851 = pneg %p1850
      $region54: #{tpu_custom_call.1} parent=5 // pred_check_branch
        %1853 = sbr.rel (%p1851) target = $region56
      $region55: #{tpu_custom_call.1} parent=5 // pred_region
        %s1854 = ssub.s32 %s16, 2
        // Predicated region
        $region57: #{tpu_custom_call.1} parent=55 // pred_check
          %p1855 = pneg %p197
        $region58: #{tpu_custom_call.1} parent=55 // pred_check_branch
          %1857 = sbr.rel (%p1855) target = $region60
        $region59: #{tpu_custom_call.1} parent=55 // pred_region
          %s1858 = sand.u32 %s182, 1
          %s1859 = scalar_lea.sflag [#allocation3], %s1858
          %s1860 = sand.u32 %s182, 1
          %s1861 = smul.addr %s1860, 8
          %s1862 = scalar_lea.vmem [#allocation2], %s1861
          %1863 = dma.done %s1859, 128
        $region60: #{tpu_custom_call.1} parent=55 // pred_fallthru
          _
      $region56: #{tpu_custom_call.1} parent=5 // pred_fallthru
        _
    $region6: #{tpu_custom_call.1} parent=1 // loop_footer
      %s20 = sadd.s32 1, %s16
    $region7: #{tpu_custom_call.1} parent=1 // loop_footer_branch
      %15 = sbr.rel target = $region3
    $region8: #{tpu_custom_call.1} parent=1 // loop_exit
      _
    %1864 = vsyncpa [#allocation3], 1
    %s1865 = scalar_lea.sflag [#allocation3], 1
    %1866 = vsyncpa %s1865, 1

// kernel: tpu_custom_call.1
$region0: #{tpu_custom_call.1}
  #allocation0 [shape = 'u32[]', space=smem, size = 0x4, offset = 0x4, fixed_abs, tag = 'smem constant byte address 0x4 - core index']
  #allocation1 [shape = 'u32[144,128]{1,0:T(1,128)}', space=vmem, size = 0x12000, scoped, tag = 'internal scratch']
  %s0 = inlined_call_operand.vmem [shape: f32[2,8,32], index: 0, kind: input, shape index: {}]
  %s1 = inlined_call_operand.vmem [shape: f32[32,96], index: 1, kind: input, shape index: {}]
  %s2 = inlined_call_operand.vmem [shape: f32[1,96], index: 2, kind: input, shape index: {}]
  %s3 = inlined_call_operand.vmem [shape: f32[32,64], index: 3, kind: input, shape index: {}]
  %s4 = inlined_call_operand.vmem [shape: f32[1,64], index: 4, kind: input, shape index: {}]
  %s5 = inlined_call_operand.vmem [shape: f32[64,32], index: 5, kind: input, shape index: {}]
  %s6 = inlined_call_operand.vmem [shape: f32[1,32], index: 6, kind: input, shape index: {}]
  %s7 = inlined_call_operand.hbm [shape: f32[2,8,32], index: 7, kind: output, shape index: {}]
  %s8 = sld [smem:[#allocation0]]
  $region61: #{tpu_custom_call.1} parent=0
    _
  %s10 = ssub.s32 1, %s8
  %s11 = scalar_select 0, %s10, %s8
  $region1: #{tpu_custom_call.1} parent=0
    #allocation2 [shape = 'u8[8192]{0}', space=vmem, size = 0x2000, scoped, tag = 'output window, operand 0']
    #allocation3 [shape = 's32[2]{0}', space=sflag, size = 0x8, scoped, tag = 'scoped memory for tpu_custom_call.1']
    %12 = vsyncpa [#allocation3], 0
    %s13 = scalar_lea.sflag [#allocation3], 1
    %14 = vsyncpa %s13, 0
    loop: start=0, step=1, limit=4
    $region2: #{tpu_custom_call.1} parent=1 // loop_pre_header
      _
    $region3: #{tpu_custom_call.1} parent=1 // loop_header
      %s16 = sphi 0, %s20
      %p17 = scmp.ge.s32.totalorder %s16, 4
      %s26 = sphi 0, %s28
      %s29 = sphi 0, %s26
      %s30 = sphi 0, %s29
      %s46 = sphi 0, %s30
      %s50 = sphi 0, %s50
      %s52 = sphi 0, %s50
      %s53 = sphi 0, %s52
      %s67 = sphi 0, %s53
      %s71 = sphi 0, %s71
      %s73 = sphi 0, %s71
      %s74 = sphi 0, %s73
      %s88 = sphi 0, %s74
      %s92 = sphi 0, %s92
      %s94 = sphi 0, %s92
      %s95 = sphi 0, %s94
      %s109 = sphi 0, %s95
      %s113 = sphi 0, %s113
      %s115 = sphi 0, %s113
      %s116 = sphi 0, %s115
      %s130 = sphi 0, %s116
      %s134 = sphi 0, %s134
      %s136 = sphi 0, %s134
      %s137 = sphi 0, %s136
      %s151 = sphi 0, %s137
      %s155 = sphi 0, %s155
      %s157 = sphi 0, %s155
      %s158 = sphi 0, %s157
      %s172 = sphi 0, %s158
      %s178 = sphi 0, %s180
      %s181 = sphi 0, %s178
      %s182 = sphi 0, %s181
      %s198 = sphi 0, %s182
    $region4: #{tpu_custom_call.1} parent=1 // loop_header_branch
      %19 = sbr.rel (%p17) target = $region8
    $region5: #{tpu_custom_call.1} parent=1 // loop_body
      %s21 = ssub.s32 %s16, 1
      %s22 = ssub.s32 %s16, 2
      %s23 = sadd.s32 %s16, 1
      %s24 = ssub.s32 %s16, %s23
      %p25 = scmp.eq.s32.totalorder %s24, 0
      %s27 = sadd.s32 %s26, 1
      %s28 = scalar_select %p25, %s26, %s27
      %p31 = pneg %p25
      %p32 = scmp.eq.s32.totalorder %s16, 1
      %p33 = por %p31, %p32
      %p34 = scmp.ne.s32.totalorder %s26, %s29
      %p35 = scmp.eq.s32.totalorder %s16, 0
      %p36 = por %p34, %p35
      %p37 = scmp.ne.s32.totalorder %s26, %s29
      %p38 = scmp.eq.s32.totalorder %s21, 1
      %p39 = por %p37, %p38
      %p40 = scmp.ne.s32.totalorder %s29, %s30
      %p41 = scmp.eq.s32.totalorder %s21, 0
      %p42 = por %p40, %p41
      %p43 = scmp.ne.s32.totalorder %s29, %s30
      %p44 = scmp.eq.s32.totalorder %s22, 1
      %p45 = por %p43, %p44
      %p47 = scmp.ne.s32.totalorder %s30, %s46
      %p48 = scmp.eq.s32.totalorder %s22, 0
      %p49 = por %p47, %p48
      %s51 = sadd.s32 %s50, 1
      %p54 = scmp.eq.s32.totalorder %s16, 1
      %p55 = scmp.ne.s32.totalorder %s50, %s52
      %p56 = scmp.eq.s32.totalorder %s16, 0
      %p57 = por %p55, %p56
      %p58 = scmp.ne.s32.totalorder %s50, %s52
      %p59 = scmp.eq.s32.totalorder %s21, 1
      %p60 = por %p58, %p59
      %p61 = scmp.ne.s32.totalorder %s52, %s53
      %p62 = scmp.eq.s32.totalorder %s21, 0
      %p63 = por %p61, %p62
      %p64 = scmp.ne.s32.totalorder %s52, %s53
      %p65 = scmp.eq.s32.totalorder %s22, 1
      %p66 = por %p64, %p65
      %p68 = scmp.ne.s32.totalorder %s53, %s67
      %p69 = scmp.eq.s32.totalorder %s22, 0
      %p70 = por %p68, %p69
      %s72 = sadd.s32 %s71, 1
      %p75 = scmp.eq.s32.totalorder %s16, 1
      %p76 = scmp.ne.s32.totalorder %s71, %s73
      %p77 = scmp.eq.s32.totalorder %s16, 0
      %p78 = por %p76, %p77
      %p79 = scmp.ne.s32.totalorder %s71, %s73
      %p80 = scmp.eq.s32.totalorder %s21, 1
      %p81 = por %p79, %p80
      %p82 = scmp.ne.s32.totalorder %s73, %s74
      %p83 = scmp.eq.s32.totalorder %s21, 0
      %p84 = por %p82, %p83
      %p85 = scmp.ne.s32.totalorder %s73, %s74
      %p86 = scmp.eq.s32.totalorder %s22, 1
      %p87 = por %p85, %p86
      %p89 = scmp.ne.s32.totalorder %s74, %s88
      %p90 = scmp.eq.s32.totalorder %s22, 0
      %p91 = por %p89, %p90
      %s93 = sadd.s32 %s92, 1
      %p96 = scmp.eq.s32.totalorder %s16, 1
      %p97 = scmp.ne.s32.totalorder %s92, %s94
      %p98 = scmp.eq.s32.totalorder %s16, 0
      %p99 = por %p97, %p98
      %p100 = scmp.ne.s32.totalorder %s92, %s94
      %p101 = scmp.eq.s32.totalorder %s21, 1
      %p102 = por %p100, %p101
      %p103 = scmp.ne.s32.totalorder %s94, %s95
      %p104 = scmp.eq.s32.totalorder %s21, 0
      %p105 = por %p103, %p104
      %p106 = scmp.ne.s32.totalorder %s94, %s95
      %p107 = scmp.eq.s32.totalorder %s22, 1
      %p108 = por %p106, %p107
      %p110 = scmp.ne.s32.totalorder %s95, %s109
      %p111 = scmp.eq.s32.totalorder %s22, 0
      %p112 = por %p110, %p111
      %s114 = sadd.s32 %s113, 1
      %p117 = scmp.eq.s32.totalorder %s16, 1
      %p118 = scmp.ne.s32.totalorder %s113, %s115
      %p119 = scmp.eq.s32.totalorder %s16, 0
      %p120 = por %p118, %p119
      %p121 = scmp.ne.s32.totalorder %s113, %s115
      %p122 = scmp.eq.s32.totalorder %s21, 1
      %p123 = por %p121, %p122
      %p124 = scmp.ne.s32.totalorder %s115, %s116
      %p125 = scmp.eq.s32.totalorder %s21, 0
      %p126 = por %p124, %p125
      %p127 = scmp.ne.s32.totalorder %s115, %s116
      %p128 = scmp.eq.s32.totalorder %s22, 1
      %p129 = por %p127, %p128
      %p131 = scmp.ne.s32.totalorder %s116, %s130
      %p132 = scmp.eq.s32.totalorder %s22, 0
      %p133 = por %p131, %p132
      %s135 = sadd.s32 %s134, 1
      %p138 = scmp.eq.s32.totalorder %s16, 1
      %p139 = scmp.ne.s32.totalorder %s134, %s136
      %p140 = scmp.eq.s32.totalorder %s16, 0
      %p141 = por %p139, %p140
      %p142 = scmp.ne.s32.totalorder %s134, %s136
      %p143 = scmp.eq.s32.totalorder %s21, 1
      %p144 = por %p142, %p143
      %p145 = scmp.ne.s32.totalorder %s136, %s137
      %p146 = scmp.eq.s32.totalorder %s21, 0
      %p147 = por %p145, %p146
      %p148 = scmp.ne.s32.totalorder %s136, %s137
      %p149 = scmp.eq.s32.totalorder %s22, 1
      %p150 = por %p148, %p149
      %p152 = scmp.ne.s32.totalorder %s137, %s151
      %p153 = scmp.eq.s32.totalorder %s22, 0
      %p154 = por %p152, %p153
      %s156 = sadd.s32 %s155, 1
      %p159 = scmp.eq.s32.totalorder %s16, 1
      %p160 = scmp.ne.s32.totalorder %s155, %s157
      %p161 = scmp.eq.s32.totalorder %s16, 0
      %p162 = por %p160, %p161
      %p163 = scmp.ne.s32.totalorder %s155, %s157
      %p164 = scmp.eq.s32.totalorder %s21, 1
      %p165 = por %p163, %p164
      %p166 = scmp.ne.s32.totalorder %s157, %s158
      %p167 = scmp.eq.s32.totalorder %s21, 0
      %p168 = por %p166, %p167
      %p169 = scmp.ne.s32.totalorder %s157, %s158
      %p170 = scmp.eq.s32.totalorder %s22, 1
      %p171 = por %p169, %p170
      %p173 = scmp.ne.s32.totalorder %s158, %s172
      %p174 = scmp.eq.s32.totalorder %s22, 0
      %p175 = por %p173, %p174
      %s176 = ssub.s32 %s16, %s23
      %p177 = scmp.eq.s32.totalorder %s176, 0
      %s179 = sadd.s32 %s178, 1
      %s180 = scalar_select %p177, %s178, %s179
      %p183 = pneg %p177
      %p184 = scmp.eq.s32.totalorder %s16, 1
      %p185 = por %p183, %p184
      %p186 = scmp.ne.s32.totalorder %s178, %s181
      %p187 = scmp.eq.s32.totalorder %s16, 0
      %p188 = por %p186, %p187
      %p189 = scmp.ne.s32.totalorder %s178, %s181
      %p190 = scmp.eq.s32.totalorder %s21, 1
      %p191 = por %p189, %p190
      %p192 = scmp.ne.s32.totalorder %s181, %s182
      %p193 = scmp.eq.s32.totalorder %s21, 0
      %p194 = por %p192, %p193
      %p195 = scmp.ne.s32.totalorder %s181, %s182
      %p196 = scmp.eq.s32.totalorder %s22, 1
      %p197 = por %p195, %p196
      %p199 = scmp.ne.s32.totalorder %s182, %s198
      %p200 = scmp.eq.s32.totalorder %s22, 0
      %p201 = por %p199, %p200
      %p202 = scmp.le.s32.totalorder 1, %s16
      %p203 = scmp.lt.s32.totalorder %s16, 3
      %p204 = pnand %p202, %p203
      %p205 = pneg %p204
      // Predicated region
      $region9: #{tpu_custom_call.1} parent=5 // pred_check
        _
      $region10: #{tpu_custom_call.1} parent=5 // pred_check_branch
        %207 = sbr.rel (%p204) target = $region12
      $region11: #{tpu_custom_call.1} parent=5 // pred_region
        %s208 = ssub.s32 %s16, 1
        // Predicated region
        $region13: #{tpu_custom_call.1} parent=11 // pred_check
          %p209 = pneg %p63
        $region14: #{tpu_custom_call.1} parent=11 // pred_check_branch
          %211 = sbr.rel (%p209) target = $region16
        $region15: #{tpu_custom_call.1} parent=11 // pred_region
          _
        $region16: #{tpu_custom_call.1} parent=11 // pred_fallthru
          _
        // Predicated region
        $region17: #{tpu_custom_call.1} parent=11 // pred_check
          %p212 = pneg %p84
        $region18: #{tpu_custom_call.1} parent=11 // pred_check_branch
          %214 = sbr.rel (%p212) target = $region20
        $region19: #{tpu_custom_call.1} parent=11 // pred_region
          _
        $region20: #{tpu_custom_call.1} parent=11 // pred_fallthru
          _
        // Predicated region
        $region21: #{tpu_custom_call.1} parent=11 // pred_check
          %p215 = pneg %p105
        $region22: #{tpu_custom_call.1} parent=11 // pred_check_branch
          %217 = sbr.rel (%p215) target = $region24
        $region23: #{tpu_custom_call.1} parent=11 // pred_region
          _
        $region24: #{tpu_custom_call.1} parent=11 // pred_fallthru
          _
        // Predicated region
        $region25: #{tpu_custom_call.1} parent=11 // pred_check
          %p218 = pneg %p126
        $region26: #{tpu_custom_call.1} parent=11 // pred_check_branch
          %220 = sbr.rel (%p218) target = $region28
        $region27: #{tpu_custom_call.1} parent=11 // pred_region
          _
        $region28: #{tpu_custom_call.1} parent=11 // pred_fallthru
          _
        // Predicated region
        $region29: #{tpu_custom_call.1} parent=11 // pred_check
          %p221 = pneg %p147
        $region30: #{tpu_custom_call.1} parent=11 // pred_check_branch
          %223 = sbr.rel (%p221) target = $region32
        $region31: #{tpu_custom_call.1} parent=11 // pred_region
          _
        $region32: #{tpu_custom_call.1} parent=11 // pred_fallthru
          _
        // Predicated region
        $region33: #{tpu_custom_call.1} parent=11 // pred_check
          %p224 = pneg %p168
        $region34: #{tpu_custom_call.1} parent=11 // pred_check_branch
          %226 = sbr.rel (%p224) target = $region36
        $region35: #{tpu_custom_call.1} parent=11 // pred_region
          _
        $region36: #{tpu_custom_call.1} parent=11 // pred_fallthru
          _
      $region12: #{tpu_custom_call.1} parent=5 // pred_fallthru
        _
      %p227 = scmp.lt.s32.totalorder %s16, 2
      // Predicated region
      $region37: #{tpu_custom_call.1} parent=5 // pred_check
        %p228 = pneg %p227
      $region38: #{tpu_custom_call.1} parent=5 // pred_check_branch
        %230 = sbr.rel (%p228) target = $region40
      $region39: #{tpu_custom_call.1} parent=5 // pred_region
        // Predicated region
        $region41: #{tpu_custom_call.1} parent=39 // pred_check
          %p231 = pneg %p36
        $region42: #{tpu_custom_call.1} parent=39 // pred_check_branch
          %233 = sbr.rel (%p231) target = $region44
        $region43: #{tpu_custom_call.1} parent=39 // pred_region
          %p234 = scmp.lt.s32.totalorder %s16, 1
          %s235 = scalar_select %p234, %s16, 1
          %s236 = smul.addr %s235, 8
          %s237 = scalar_lea.vmem %s0, %s236
        $region44: #{tpu_custom_call.1} parent=39 // pred_fallthru
          _
      $region40: #{tpu_custom_call.1} parent=5 // pred_fallthru
        _
      %p238 = scmp.le.s32.totalorder 1, %s16
      %p239 = scmp.lt.s32.totalorder %s16, 3
      %p240 = pnand %p238, %p239
      %p241 = pneg %p240
      // Predicated region
      $region45: #{tpu_custom_call.1} parent=5 // pred_check
        _
      $region46: #{tpu_custom_call.1} parent=5 // pred_check_branch
        %243 = sbr.rel (%p240) target = $region48
      $region47: #{tpu_custom_call.1} parent=5 // pred_region
        %s244 = ssub.s32 %s16, 1
        %p245 = scmp.lt.s32.totalorder %s21, 1
        %s246 = scalar_select %p245, %s21, 1
        %s247 = smul.addr %s246, 8
        %s248 = scalar_lea.vmem %s0, %s247
        %p249 = pneg %p42
        %p250 = pneg %p39
        %p251 = pneg %p63
        %p252 = pneg %p60
        %p253 = pneg %p84
        %p254 = pneg %p81
        %p255 = pneg %p105
        %p256 = pneg %p102
        %p257 = pneg %p126
        %p258 = pneg %p123
        %p259 = pneg %p147
        %p260 = pneg %p144
        %p261 = pneg %p168
        %p262 = pneg %p165
        %p263 = pneg %p194
        %p264 = pneg %p191
        %s265 = sand.u32 %s181, 1
        %s266 = scalar_lea.sflag [#allocation3], %s265
        %s267 = sand.u32 %s181, 1
        %s268 = smul.addr %s267, 8
        %s269 = scalar_lea.vmem [#allocation2], %s268
        %p270 = scmp.lt.s32.totalorder %s21, 1
        %s271 = scalar_select %p270, %s21, 1
        %s272 = smul.addr %s271, 8
        %s273 = scalar_lea.vmem %s0, %s272
        %v274 = vld [vmem:[%s273] sm:$0xff]
        %v275 = vld [vmem:[%s1] sm:$0xff]
        %v276 = vld [vmem:[%s1 + $0x8] sm:$0xff]
        %v277 = vld [vmem:[%s1 + $0x10] sm:$0xff]
        %v278 = vld [vmem:[%s1 + $0x18] sm:$0xff]
        %v279 = vld [vmem:[%s2] sm:$0x1]
        %v281 = vlaneseq
        %v282 = vshrl.u32 %v281, 7
        %v283 = vsub.s32 0, %v282
        %v284 = vrot.slane %v279, %v283
        %vm286 = vcmask 261120
        %v288 = vsel %vm286, %v274, 0
        %290 = vmatprep.subr.mxu0 0.0
        %291 = vmatpush1.msra.mxu0 %v275
        %292 = vmatprep.subr.mxu0 0.0
        %293 = vmatpush1.msra.mxu0 %v276
        %294 = vmatprep.subr.mxu0 0.0
        %295 = vmatpush1.msra.mxu0 %v277
        %296 = vmatprep.subr.mxu0 0.0
        %297 = vmatpush1.msra.mxu0 %v278
        %298 = vmatprep.subr.mxu0 0.0
        %299 = vmatpush1.msra.mxu0 0.0
        %300 = vmatprep.subr.mxu0 0.0
        %301 = vmatpush1.msra.mxu0 0.0
        %302 = vmatprep.subr.mxu0 0.0
        %303 = vmatpush1.msra.mxu0 0.0
        %304 = vmatprep.subr.mxu0 0.0
        %305 = vmatpush1.msra.mxu0 0.0
        %306 = vmatprep.subr.mxu0 0.0
        %307 = vmatpush1.msra.mxu0 0.0
        %308 = vmatprep.subr.mxu0 0.0
        %309 = vmatpush1.msra.mxu0 0.0
        %310 = vmatprep.subr.mxu0 0.0
        %311 = vmatpush1.msra.mxu0 0.0
        %312 = vmatprep.subr.mxu0 0.0
        %313 = vmatpush1.msra.mxu0 0.0
        %314 = vmatprep.subr.mxu0 0.0
        %315 = vmatpush1.msra.mxu0 0.0
        %316 = vmatprep.subr.mxu0 0.0
        %317 = vmatpush1.msra.mxu0 0.0
        %318 = vmatprep.subr.mxu0 0.0
        %319 = vmatpush1.msra.mxu0 0.0
        %320 = vmatprep.subr.mxu0 0.0
        %321 = vmatpush1.msra.mxu0 0.0
        %322 = vmatprep.subr.mxu0 0.0
        %323 = vmatpush1.msra.mxu0 0.0
        %324 = vmatprep.subr.mxu0 0.0
        %325 = vmatpush1.msra.mxu0 0.0
        %326 = vmatprep.subr.mxu0 0.0
        %327 = vmatpush1.msra.mxu0 0.0
        %328 = vmatprep.subr.mxu0 0.0
        %329 = vmatpush1.msra.mxu0 0.0
        %330 = vmatprep.subr.mxu0 0.0
        %331 = vmatpush1.msra.mxu0 0.0
        %332 = vmatprep.subr.mxu0 0.0
        %333 = vmatpush1.msra.mxu0 0.0
        %334 = vmatprep.subr.mxu0 0.0
        %335 = vmatpush1.msra.mxu0 0.0
        %336 = vmatprep.subr.mxu0 0.0
        %337 = vmatpush1.msra.mxu0 0.0
        %338 = vmatprep.subr.mxu0 0.0
        %339 = vmatpush1.msra.mxu0 0.0
        %340 = vmatprep.subr.mxu0 0.0
        %341 = vmatpush1.msra.mxu0 0.0
        %342 = vmatprep.subr.mxu0 0.0
        %343 = vmatpush1.msra.mxu0 0.0
        %344 = vmatprep.subr.mxu0 0.0
        %345 = vmatpush1.msra.mxu0 0.0
        %346 = vmatprep.subr.mxu0 0.0
        %347 = vmatpush1.msra.mxu0 0.0
        %348 = vmatprep.subr.mxu0 0.0
        %349 = vmatpush1.msra.mxu0 0.0
        %350 = vmatprep.subr.mxu0 0.0
        %351 = vmatpush1.msra.mxu0 0.0
        %352 = vmatprep.subr.mxu0 0.0
        %353 = vmatpush1.msra.mxu0 0.0
        %354 = vmatprep.mubr.f32.mxu0 0.0
        %355 = vmatmul.mubr.f32.gmra.mrb[0].mxu0 %v288
        %v356 = vpop.f32.mrb[0].mxu0
        %v357 = vadd.f32 %v284, %v356
        %v358 = vpop.f32.mrb[0].mxu0
        %359 = vdwg.mxu0
        %361 = vrot.lane.b32.xlu0 %v357, 120
        %v362 = vpop.permute.xlu0 %361
        %364 = vrot.lane.b32.xlu0 %v357, 112
        %v365 = vpop.permute.xlu0 %364
        %367 = vrot.lane.b32.xlu0 %v357, 104
        %v368 = vpop.permute.xlu0 %367
        %v370 = vcombine.low %v357, %v365
        %v371 = vcombine.high %v357, %v365
        %v373 = vunpack.c.l.s4 1983009808
        %v374 = vunpack.c.0.s8 %v373
        %v375 = vlaneseq
        %v376 = vshrl.u32 %v375, 7
        %v377 = vsub.s32 %v374, %v376
        %v378 = vrot.slane %v370, %v377
        %v380 = vunpack.c.l.s4 1983009808
        %v381 = vunpack.c.0.s8 %v380
        %v382 = vlaneseq
        %v383 = vshrl.u32 %v382, 7
        %v384 = vsub.s32 %v381, %v383
        %v385 = vrot.slane %v371, %v384
        %v386 = vcombine.low %v362, %v368
        %v387 = vcombine.high %v362, %v368
        %v389 = vunpack.c.l.s4 1983009808
        %v390 = vunpack.c.0.s8 %v389
        %v391 = vlaneseq
        %v392 = vshrl.u32 %v391, 7
        %v393 = vsub.s32 %v390, %v392
        %v394 = vrot.slane %v386, %v393
        %v396 = vunpack.c.l.s4 1983009808
        %v397 = vunpack.c.0.s8 %v396
        %v398 = vlaneseq
        %v399 = vshrl.u32 %v398, 7
        %v400 = vsub.s32 %v397, %v399
        %v401 = vrot.slane %v387, %v400
        %v402 = vcombine.low %v378, %v394
        %v403 = vcombine.high %v378, %v394
        %v405 = vunpack.c.l.s4 1934713408
        %v406 = vunpack.c.0.s8 %v405
        %v407 = vlaneseq
        %v408 = vshrl.u32 %v407, 7
        %v409 = vsub.s32 %v406, %v408
        %v410 = vrot.slane %v402, %v409
        %v412 = vunpack.c.l.s4 1934713408
        %v413 = vunpack.c.0.s8 %v412
        %v414 = vlaneseq
        %v415 = vshrl.u32 %v414, 7
        %v416 = vsub.s32 %v413, %v415
        %v417 = vrot.slane %v403, %v416
        %v418 = vcombine.low %v385, %v401
        %v419 = vcombine.high %v385, %v401
        %v421 = vunpack.c.l.s4 1934713408
        %v422 = vunpack.c.0.s8 %v421
        %v423 = vlaneseq
        %v424 = vshrl.u32 %v423, 7
        %v425 = vsub.s32 %v422, %v424
        %v426 = vrot.slane %v418, %v425
        %v428 = vunpack.c.l.s4 1934713408
        %v429 = vunpack.c.0.s8 %v428
        %v430 = vlaneseq
        %v431 = vshrl.u32 %v430, 7
        %v432 = vsub.s32 %v429, %v431
        %v433 = vrot.slane %v419, %v432
        %v434 = vcombine.high %v410, 0.0
        %v435 = vcombine.high %v417, 0.0
        %v436 = vcombine.high %v426, 0.0
        %v437 = vcombine.high %v433, 0.0
        %v438 = vcombine.low %v410, %v417
        %v440 = vunpack.c.l.s4 1983009808
        %v441 = vunpack.c.0.s8 %v440
        %v442 = vlaneseq
        %v443 = vshrl.u32 %v442, 7
        %v444 = vsub.s32 %v441, %v443
        %v445 = vrot.slane %v438, %v444
        %v446 = vcombine.low %v434, %v435
        %v448 = vunpack.c.l.s4 1983009808
        %v449 = vunpack.c.0.s8 %v448
        %v450 = vlaneseq
        %v451 = vshrl.u32 %v450, 7
        %v452 = vsub.s32 %v449, %v451
        %v453 = vrot.slane %v446, %v452
        %v454 = vcombine.low %v426, %v433
        %v456 = vunpack.c.l.s4 1983009808
        %v457 = vunpack.c.0.s8 %v456
        %v458 = vlaneseq
        %v459 = vshrl.u32 %v458, 7
        %v460 = vsub.s32 %v457, %v459
        %v461 = vrot.slane %v454, %v460
        %v462 = vcombine.low %v436, %v437
        %v464 = vunpack.c.l.s4 1983009808
        %v465 = vunpack.c.0.s8 %v464
        %v466 = vlaneseq
        %v467 = vshrl.u32 %v466, 7
        %v468 = vsub.s32 %v465, %v467
        %v469 = vrot.slane %v462, %v468
        %v470 = vcombine.low %v445, %v453
        %v471 = vcombine.high %v445, %v453
        %v473 = vunpack.c.l.s4 1934713408
        %v474 = vunpack.c.0.s8 %v473
        %v475 = vlaneseq
        %v476 = vshrl.u32 %v475, 7
        %v477 = vsub.s32 %v474, %v476
        %v478 = vrot.slane %v470, %v477
        %v480 = vunpack.c.l.s4 1934713408
        %v481 = vunpack.c.0.s8 %v480
        %v482 = vlaneseq
        %v483 = vshrl.u32 %v482, 7
        %v484 = vsub.s32 %v481, %v483
        %v485 = vrot.slane %v471, %v484
        %v486 = vcombine.low %v461, %v469
        %v487 = vcombine.high %v461, %v469
        %v489 = vunpack.c.l.s4 1934713408
        %v490 = vunpack.c.0.s8 %v489
        %v491 = vlaneseq
        %v492 = vshrl.u32 %v491, 7
        %v493 = vsub.s32 %v490, %v492
        %v494 = vrot.slane %v486, %v493
        %v496 = vunpack.c.l.s4 1934713408
        %v497 = vunpack.c.0.s8 %v496
        %v498 = vlaneseq
        %v499 = vshrl.u32 %v498, 7
        %v500 = vsub.s32 %v497, %v499
        %v501 = vrot.slane %v487, %v500
        %v502 = vcombine.low %v478, %v494
        %v503 = vcombine.high %v478, %v494
        %v504 = vcombine.low %v485, %v501
        %v505 = vcombine.high %v485, %v501
        %506 = vrot.lane.b32.xlu0 %v357, 96
        %v507 = vpop.permute.xlu0 %506
        %508 = vrot.lane.b32.xlu0 %v362, 96
        %v509 = vpop.permute.xlu0 %508
        %510 = vrot.lane.b32.xlu0 %v365, 96
        %v511 = vpop.permute.xlu0 %510
        %512 = vrot.lane.b32.xlu0 %v368, 96
        %v513 = vpop.permute.xlu0 %512
        %v518 = vcombine.low %v507, %v511
        %v519 = vcombine.high %v507, %v511
        %v521 = vunpack.c.l.s4 1983009808
        %v522 = vunpack.c.0.s8 %v521
        %v523 = vlaneseq
        %v524 = vshrl.u32 %v523, 7
        %v525 = vsub.s32 %v522, %v524
        %v526 = vrot.slane %v518, %v525
        %v528 = vunpack.c.l.s4 1983009808
        %v529 = vunpack.c.0.s8 %v528
        %v530 = vlaneseq
        %v531 = vshrl.u32 %v530, 7
        %v532 = vsub.s32 %v529, %v531
        %v533 = vrot.slane %v519, %v532
        %v534 = vcombine.low %v509, %v513
        %v535 = vcombine.high %v509, %v513
        %v537 = vunpack.c.l.s4 1983009808
        %v538 = vunpack.c.0.s8 %v537
        %v539 = vlaneseq
        %v540 = vshrl.u32 %v539, 7
        %v541 = vsub.s32 %v538, %v540
        %v542 = vrot.slane %v534, %v541
        %v544 = vunpack.c.l.s4 1983009808
        %v545 = vunpack.c.0.s8 %v544
        %v546 = vlaneseq
        %v547 = vshrl.u32 %v546, 7
        %v548 = vsub.s32 %v545, %v547
        %v549 = vrot.slane %v535, %v548
        %v550 = vcombine.low %v526, %v542
        %v551 = vcombine.high %v526, %v542
        %v553 = vunpack.c.l.s4 1934713408
        %v554 = vunpack.c.0.s8 %v553
        %v555 = vlaneseq
        %v556 = vshrl.u32 %v555, 7
        %v557 = vsub.s32 %v554, %v556
        %v558 = vrot.slane %v550, %v557
        %v560 = vunpack.c.l.s4 1934713408
        %v561 = vunpack.c.0.s8 %v560
        %v562 = vlaneseq
        %v563 = vshrl.u32 %v562, 7
        %v564 = vsub.s32 %v561, %v563
        %v565 = vrot.slane %v551, %v564
        %v566 = vcombine.low %v533, %v549
        %v567 = vcombine.high %v533, %v549
        %v569 = vunpack.c.l.s4 1934713408
        %v570 = vunpack.c.0.s8 %v569
        %v571 = vlaneseq
        %v572 = vshrl.u32 %v571, 7
        %v573 = vsub.s32 %v570, %v572
        %v574 = vrot.slane %v566, %v573
        %v576 = vunpack.c.l.s4 1934713408
        %v577 = vunpack.c.0.s8 %v576
        %v578 = vlaneseq
        %v579 = vshrl.u32 %v578, 7
        %v580 = vsub.s32 %v577, %v579
        %v581 = vrot.slane %v567, %v580
        %v582 = vcombine.high %v558, 0.0
        %v583 = vcombine.high %v565, 0.0
        %v584 = vcombine.high %v574, 0.0
        %v585 = vcombine.high %v581, 0.0
        %v586 = vcombine.low %v558, %v565
        %v588 = vunpack.c.l.s4 1983009808
        %v589 = vunpack.c.0.s8 %v588
        %v590 = vlaneseq
        %v591 = vshrl.u32 %v590, 7
        %v592 = vsub.s32 %v589, %v591
        %v593 = vrot.slane %v586, %v592
        %v594 = vcombine.low %v582, %v583
        %v596 = vunpack.c.l.s4 1983009808
        %v597 = vunpack.c.0.s8 %v596
        %v598 = vlaneseq
        %v599 = vshrl.u32 %v598, 7
        %v600 = vsub.s32 %v597, %v599
        %v601 = vrot.slane %v594, %v600
        %v602 = vcombine.low %v574, %v581
        %v604 = vunpack.c.l.s4 1983009808
        %v605 = vunpack.c.0.s8 %v604
        %v606 = vlaneseq
        %v607 = vshrl.u32 %v606, 7
        %v608 = vsub.s32 %v605, %v607
        %v609 = vrot.slane %v602, %v608
        %v610 = vcombine.low %v584, %v585
        %v612 = vunpack.c.l.s4 1983009808
        %v613 = vunpack.c.0.s8 %v612
        %v614 = vlaneseq
        %v615 = vshrl.u32 %v614, 7
        %v616 = vsub.s32 %v613, %v615
        %v617 = vrot.slane %v610, %v616
        %v618 = vcombine.low %v593, %v601
        %v619 = vcombine.high %v593, %v601
        %v621 = vunpack.c.l.s4 1934713408
        %v622 = vunpack.c.0.s8 %v621
        %v623 = vlaneseq
        %v624 = vshrl.u32 %v623, 7
        %v625 = vsub.s32 %v622, %v624
        %v626 = vrot.slane %v618, %v625
        %v628 = vunpack.c.l.s4 1934713408
        %v629 = vunpack.c.0.s8 %v628
        %v630 = vlaneseq
        %v631 = vshrl.u32 %v630, 7
        %v632 = vsub.s32 %v629, %v631
        %v633 = vrot.slane %v619, %v632
        %v634 = vcombine.low %v609, %v617
        %v635 = vcombine.high %v609, %v617
        %v637 = vunpack.c.l.s4 1934713408
        %v638 = vunpack.c.0.s8 %v637
        %v639 = vlaneseq
        %v640 = vshrl.u32 %v639, 7
        %v641 = vsub.s32 %v638, %v640
        %v642 = vrot.slane %v634, %v641
        %v644 = vunpack.c.l.s4 1934713408
        %v645 = vunpack.c.0.s8 %v644
        %v646 = vlaneseq
        %v647 = vshrl.u32 %v646, 7
        %v648 = vsub.s32 %v645, %v647
        %v649 = vrot.slane %v635, %v648
        %v650 = vcombine.low %v626, %v642
        %v651 = vcombine.high %v626, %v642
        %v652 = vcombine.low %v633, %v649
        %v653 = vcombine.high %v633, %v649
        %654 = vrot.lane.b32.xlu0 %v357, 64
        %v655 = vpop.permute.xlu0 %654
        %656 = vrot.lane.b32.xlu0 %v362, 64
        %v657 = vpop.permute.xlu0 %656
        %658 = vrot.lane.b32.xlu0 %v365, 64
        %v659 = vpop.permute.xlu0 %658
        %660 = vrot.lane.b32.xlu0 %v368, 64
        %v661 = vpop.permute.xlu0 %660
        %v666 = vcombine.low %v655, %v659
        %v667 = vcombine.high %v655, %v659
        %v669 = vunpack.c.l.s4 1983009808
        %v670 = vunpack.c.0.s8 %v669
        %v671 = vlaneseq
        %v672 = vshrl.u32 %v671, 7
        %v673 = vsub.s32 %v670, %v672
        %v674 = vrot.slane %v666, %v673
        %v676 = vunpack.c.l.s4 1983009808
        %v677 = vunpack.c.0.s8 %v676
        %v678 = vlaneseq
        %v679 = vshrl.u32 %v678, 7
        %v680 = vsub.s32 %v677, %v679
        %v681 = vrot.slane %v667, %v680
        %v682 = vcombine.low %v657, %v661
        %v683 = vcombine.high %v657, %v661
        %v685 = vunpack.c.l.s4 1983009808
        %v686 = vunpack.c.0.s8 %v685
        %v687 = vlaneseq
        %v688 = vshrl.u32 %v687, 7
        %v689 = vsub.s32 %v686, %v688
        %v690 = vrot.slane %v682, %v689
        %v692 = vunpack.c.l.s4 1983009808
        %v693 = vunpack.c.0.s8 %v692
        %v694 = vlaneseq
        %v695 = vshrl.u32 %v694, 7
        %v696 = vsub.s32 %v693, %v695
        %v697 = vrot.slane %v683, %v696
        %v698 = vcombine.low %v674, %v690
        %v699 = vcombine.high %v674, %v690
        %v701 = vunpack.c.l.s4 1934713408
        %v702 = vunpack.c.0.s8 %v701
        %v703 = vlaneseq
        %v704 = vshrl.u32 %v703, 7
        %v705 = vsub.s32 %v702, %v704
        %v706 = vrot.slane %v698, %v705
        %v708 = vunpack.c.l.s4 1934713408
        %v709 = vunpack.c.0.s8 %v708
        %v710 = vlaneseq
        %v711 = vshrl.u32 %v710, 7
        %v712 = vsub.s32 %v709, %v711
        %v713 = vrot.slane %v699, %v712
        %v714 = vcombine.low %v681, %v697
        %v715 = vcombine.high %v681, %v697
        %v717 = vunpack.c.l.s4 1934713408
        %v718 = vunpack.c.0.s8 %v717
        %v719 = vlaneseq
        %v720 = vshrl.u32 %v719, 7
        %v721 = vsub.s32 %v718, %v720
        %v722 = vrot.slane %v714, %v721
        %v724 = vunpack.c.l.s4 1934713408
        %v725 = vunpack.c.0.s8 %v724
        %v726 = vlaneseq
        %v727 = vshrl.u32 %v726, 7
        %v728 = vsub.s32 %v725, %v727
        %v729 = vrot.slane %v715, %v728
        %v730 = vcombine.high %v706, 0.0
        %v731 = vcombine.high %v713, 0.0
        %v732 = vcombine.high %v722, 0.0
        %v733 = vcombine.high %v729, 0.0
        %v734 = vcombine.low %v706, %v713
        %v736 = vunpack.c.l.s4 1983009808
        %v737 = vunpack.c.0.s8 %v736
        %v738 = vlaneseq
        %v739 = vshrl.u32 %v738, 7
        %v740 = vsub.s32 %v737, %v739
        %v741 = vrot.slane %v734, %v740
        %v742 = vcombine.low %v730, %v731
        %v744 = vunpack.c.l.s4 1983009808
        %v745 = vunpack.c.0.s8 %v744
        %v746 = vlaneseq
        %v747 = vshrl.u32 %v746, 7
        %v748 = vsub.s32 %v745, %v747
        %v749 = vrot.slane %v742, %v748
        %v750 = vcombine.low %v722, %v729
        %v752 = vunpack.c.l.s4 1983009808
        %v753 = vunpack.c.0.s8 %v752
        %v754 = vlaneseq
        %v755 = vshrl.u32 %v754, 7
        %v756 = vsub.s32 %v753, %v755
        %v757 = vrot.slane %v750, %v756
        %v758 = vcombine.low %v732, %v733
        %v760 = vunpack.c.l.s4 1983009808
        %v761 = vunpack.c.0.s8 %v760
        %v762 = vlaneseq
        %v763 = vshrl.u32 %v762, 7
        %v764 = vsub.s32 %v761, %v763
        %v765 = vrot.slane %v758, %v764
        %v766 = vcombine.low %v741, %v749
        %v767 = vcombine.high %v741, %v749
        %v769 = vunpack.c.l.s4 1934713408
        %v770 = vunpack.c.0.s8 %v769
        %v771 = vlaneseq
        %v772 = vshrl.u32 %v771, 7
        %v773 = vsub.s32 %v770, %v772
        %v774 = vrot.slane %v766, %v773
        %v776 = vunpack.c.l.s4 1934713408
        %v777 = vunpack.c.0.s8 %v776
        %v778 = vlaneseq
        %v779 = vshrl.u32 %v778, 7
        %v780 = vsub.s32 %v777, %v779
        %v781 = vrot.slane %v767, %v780
        %v782 = vcombine.low %v757, %v765
        %v783 = vcombine.high %v757, %v765
        %v785 = vunpack.c.l.s4 1934713408
        %v786 = vunpack.c.0.s8 %v785
        %v787 = vlaneseq
        %v788 = vshrl.u32 %v787, 7
        %v789 = vsub.s32 %v786, %v788
        %v790 = vrot.slane %v782, %v789
        %v792 = vunpack.c.l.s4 1934713408
        %v793 = vunpack.c.0.s8 %v792
        %v794 = vlaneseq
        %v795 = vshrl.u32 %v794, 7
        %v796 = vsub.s32 %v793, %v795
        %v797 = vrot.slane %v783, %v796
        %v798 = vcombine.low %v774, %v790
        %v799 = vcombine.high %v774, %v790
        %v800 = vcombine.low %v781, %v797
        %v801 = vcombine.high %v781, %v797
        %vm802 = vcmask 64512
        %v804 = vsel %vm802, %v502, 0
        %v807 = vsel %vm802, %v650, 0
        %809 = vmatprep.subr.mxu0 0.0
        %810 = vmatpush1.xpose.msra.mxu0 %v807
        %811 = vmatprep.subr.mxu0 0.0
        %812 = vmatpush1.xpose.msra.mxu0 0.0
        %813 = vmatprep.subr.mxu0 0.0
        %814 = vmatpush1.xpose.msra.mxu0 0.0
        %815 = vmatprep.subr.mxu0 0.0
        %816 = vmatpush1.xpose.msra.mxu0 0.0
        %817 = vmatprep.subr.mxu0 0.0
        %818 = vmatpush1.xpose.msra.mxu0 0.0
        %819 = vmatprep.subr.mxu0 0.0
        %820 = vmatpush1.xpose.msra.mxu0 0.0
        %821 = vmatprep.subr.mxu0 0.0
        %822 = vmatpush1.xpose.msra.mxu0 0.0
        %823 = vmatprep.subr.mxu0 0.0
        %824 = vmatpush1.xpose.msra.mxu0 0.0
        %825 = vmatprep.subr.mxu0 0.0
        %826 = vmatpush1.xpose.msra.mxu0 0.0
        %827 = vmatprep.subr.mxu0 0.0
        %828 = vmatpush1.xpose.msra.mxu0 0.0
        %829 = vmatprep.subr.mxu0 0.0
        %830 = vmatpush1.xpose.msra.mxu0 0.0
        %831 = vmatprep.subr.mxu0 0.0
        %832 = vmatpush1.xpose.msra.mxu0 0.0
        %833 = vmatprep.subr.mxu0 0.0
        %834 = vmatpush1.xpose.msra.mxu0 0.0
        %835 = vmatprep.subr.mxu0 0.0
        %836 = vmatpush1.xpose.msra.mxu0 0.0
        %837 = vmatprep.subr.mxu0 0.0
        %838 = vmatpush1.xpose.msra.mxu0 0.0
        %839 = vmatprep.subr.mxu0 0.0
        %840 = vmatpush1.xpose.msra.mxu0 0.0
        %841 = vmatprep.subr.mxu0 0.0
        %842 = vmatpush1.xpose.msra.mxu0 0.0
        %843 = vmatprep.subr.mxu0 0.0
        %844 = vmatpush1.xpose.msra.mxu0 0.0
        %845 = vmatprep.subr.mxu0 0.0
        %846 = vmatpush1.xpose.msra.mxu0 0.0
        %847 = vmatprep.subr.mxu0 0.0
        %848 = vmatpush1.xpose.msra.mxu0 0.0
        %849 = vmatprep.subr.mxu0 0.0
        %850 = vmatpush1.xpose.msra.mxu0 0.0
        %851 = vmatprep.subr.mxu0 0.0
        %852 = vmatpush1.xpose.msra.mxu0 0.0
        %853 = vmatprep.subr.mxu0 0.0
        %854 = vmatpush1.xpose.msra.mxu0 0.0
        %855 = vmatprep.subr.mxu0 0.0
        %856 = vmatpush1.xpose.msra.mxu0 0.0
        %857 = vmatprep.subr.mxu0 0.0
        %858 = vmatpush1.xpose.msra.mxu0 0.0
        %859 = vmatprep.subr.mxu0 0.0
        %860 = vmatpush1.xpose.msra.mxu0 0.0
        %861 = vmatprep.subr.mxu0 0.0
        %862 = vmatpush1.xpose.msra.mxu0 0.0
        %863 = vmatprep.subr.mxu0 0.0
        %864 = vmatpush1.xpose.msra.mxu0 0.0
        %865 = vmatprep.subr.mxu0 0.0
        %866 = vmatpush1.xpose.msra.mxu0 0.0
        %867 = vmatprep.subr.mxu0 0.0
        %868 = vmatpush1.xpose.msra.mxu0 0.0
        %869 = vmatprep.subr.mxu0 0.0
        %870 = vmatpush1.xpose.msra.mxu0 0.0
        %871 = vmatprep.subr.mxu0 0.0
        %872 = vmatpush1.xpose.msra.mxu0 0.0
        %873 = vmatprep.mubr.f32.mxu0 0.0
        %874 = vmatmul.mubr.f32.gmra.mrb[0].mxu0 %v804
        %v875 = vpop.f32.mrb[0].mxu0
        %v876 = vadd.f32 0.0, %v875
        %v877 = vpop.f32.mrb[0].mxu0
        %878 = vdwg.mxu0
        %v880 = vsel %vm802, %v503, 0
        %v883 = vsel %vm802, %v651, 0
        %885 = vmatprep.subr.mxu0 0.0
        %886 = vmatpush1.xpose.msra.mxu0 %v883
        %887 = vmatprep.subr.mxu0 0.0
        %888 = vmatpush1.xpose.msra.mxu0 0.0
        %889 = vmatprep.subr.mxu0 0.0
        %890 = vmatpush1.xpose.msra.mxu0 0.0
        %891 = vmatprep.subr.mxu0 0.0
        %892 = vmatpush1.xpose.msra.mxu0 0.0
        %893 = vmatprep.subr.mxu0 0.0
        %894 = vmatpush1.xpose.msra.mxu0 0.0
        %895 = vmatprep.subr.mxu0 0.0
        %896 = vmatpush1.xpose.msra.mxu0 0.0
        %897 = vmatprep.subr.mxu0 0.0
        %898 = vmatpush1.xpose.msra.mxu0 0.0
        %899 = vmatprep.subr.mxu0 0.0
        %900 = vmatpush1.xpose.msra.mxu0 0.0
        %901 = vmatprep.subr.mxu0 0.0
        %902 = vmatpush1.xpose.msra.mxu0 0.0
        %903 = vmatprep.subr.mxu0 0.0
        %904 = vmatpush1.xpose.msra.mxu0 0.0
        %905 = vmatprep.subr.mxu0 0.0
        %906 = vmatpush1.xpose.msra.mxu0 0.0
        %907 = vmatprep.subr.mxu0 0.0
        %908 = vmatpush1.xpose.msra.mxu0 0.0
        %909 = vmatprep.subr.mxu0 0.0
        %910 = vmatpush1.xpose.msra.mxu0 0.0
        %911 = vmatprep.subr.mxu0 0.0
        %912 = vmatpush1.xpose.msra.mxu0 0.0
        %913 = vmatprep.subr.mxu0 0.0
        %914 = vmatpush1.xpose.msra.mxu0 0.0
        %915 = vmatprep.subr.mxu0 0.0
        %916 = vmatpush1.xpose.msra.mxu0 0.0
        %917 = vmatprep.subr.mxu0 0.0
        %918 = vmatpush1.xpose.msra.mxu0 0.0
        %919 = vmatprep.subr.mxu0 0.0
        %920 = vmatpush1.xpose.msra.mxu0 0.0
        %921 = vmatprep.subr.mxu0 0.0
        %922 = vmatpush1.xpose.msra.mxu0 0.0
        %923 = vmatprep.subr.mxu0 0.0
        %924 = vmatpush1.xpose.msra.mxu0 0.0
        %925 = vmatprep.subr.mxu0 0.0
        %926 = vmatpush1.xpose.msra.mxu0 0.0
        %927 = vmatprep.subr.mxu0 0.0
        %928 = vmatpush1.xpose.msra.mxu0 0.0
        %929 = vmatprep.subr.mxu0 0.0
        %930 = vmatpush1.xpose.msra.mxu0 0.0
        %931 = vmatprep.subr.mxu0 0.0
        %932 = vmatpush1.xpose.msra.mxu0 0.0
        %933 = vmatprep.subr.mxu0 0.0
        %934 = vmatpush1.xpose.msra.mxu0 0.0
        %935 = vmatprep.subr.mxu0 0.0
        %936 = vmatpush1.xpose.msra.mxu0 0.0
        %937 = vmatprep.subr.mxu0 0.0
        %938 = vmatpush1.xpose.msra.mxu0 0.0
        %939 = vmatprep.subr.mxu0 0.0
        %940 = vmatpush1.xpose.msra.mxu0 0.0
        %941 = vmatprep.subr.mxu0 0.0
        %942 = vmatpush1.xpose.msra.mxu0 0.0
        %943 = vmatprep.subr.mxu0 0.0
        %944 = vmatpush1.xpose.msra.mxu0 0.0
        %945 = vmatprep.subr.mxu0 0.0
        %946 = vmatpush1.xpose.msra.mxu0 0.0
        %947 = vmatprep.subr.mxu0 0.0
        %948 = vmatpush1.xpose.msra.mxu0 0.0
        %949 = vmatprep.mubr.f32.mxu0 0.0
        %950 = vmatmul.mubr.f32.gmra.mrb[0].mxu0 %v880
        %v951 = vpop.f32.mrb[0].mxu0
        %v952 = vadd.f32 0.0, %v951
        %v953 = vpop.f32.mrb[0].mxu0
        %954 = vdwg.mxu0
        %v956 = vsel %vm802, %v504, 0
        %v959 = vsel %vm802, %v652, 0
        %961 = vmatprep.subr.mxu0 0.0
        %962 = vmatpush1.xpose.msra.mxu0 %v959
        %963 = vmatprep.subr.mxu0 0.0
        %964 = vmatpush1.xpose.msra.mxu0 0.0
        %965 = vmatprep.subr.mxu0 0.0
        %966 = vmatpush1.xpose.msra.mxu0 0.0
        %967 = vmatprep.subr.mxu0 0.0
        %968 = vmatpush1.xpose.msra.mxu0 0.0
        %969 = vmatprep.subr.mxu0 0.0
        %970 = vmatpush1.xpose.msra.mxu0 0.0
        %971 = vmatprep.subr.mxu0 0.0
        %972 = vmatpush1.xpose.msra.mxu0 0.0
        %973 = vmatprep.subr.mxu0 0.0
        %974 = vmatpush1.xpose.msra.mxu0 0.0
        %975 = vmatprep.subr.mxu0 0.0
        %976 = vmatpush1.xpose.msra.mxu0 0.0
        %977 = vmatprep.subr.mxu0 0.0
        %978 = vmatpush1.xpose.msra.mxu0 0.0
        %979 = vmatprep.subr.mxu0 0.0
        %980 = vmatpush1.xpose.msra.mxu0 0.0
        %981 = vmatprep.subr.mxu0 0.0
        %982 = vmatpush1.xpose.msra.mxu0 0.0
        %983 = vmatprep.subr.mxu0 0.0
        %984 = vmatpush1.xpose.msra.mxu0 0.0
        %985 = vmatprep.subr.mxu0 0.0
        %986 = vmatpush1.xpose.msra.mxu0 0.0
        %987 = vmatprep.subr.mxu0 0.0
        %988 = vmatpush1.xpose.msra.mxu0 0.0
        %989 = vmatprep.subr.mxu0 0.0
        %990 = vmatpush1.xpose.msra.mxu0 0.0
        %991 = vmatprep.subr.mxu0 0.0
        %992 = vmatpush1.xpose.msra.mxu0 0.0
        %993 = vmatprep.subr.mxu0 0.0
        %994 = vmatpush1.xpose.msra.mxu0 0.0
        %995 = vmatprep.subr.mxu0 0.0
        %996 = vmatpush1.xpose.msra.mxu0 0.0
        %997 = vmatprep.subr.mxu0 0.0
        %998 = vmatpush1.xpose.msra.mxu0 0.0
        %999 = vmatprep.subr.mxu0 0.0
        %1000 = vmatpush1.xpose.msra.mxu0 0.0
        %1001 = vmatprep.subr.mxu0 0.0
        %1002 = vmatpush1.xpose.msra.mxu0 0.0
        %1003 = vmatprep.subr.mxu0 0.0
        %1004 = vmatpush1.xpose.msra.mxu0 0.0
        %1005 = vmatprep.subr.mxu0 0.0
        %1006 = vmatpush1.xpose.msra.mxu0 0.0
        %1007 = vmatprep.subr.mxu0 0.0
        %1008 = vmatpush1.xpose.msra.mxu0 0.0
        %1009 = vmatprep.subr.mxu0 0.0
        %1010 = vmatpush1.xpose.msra.mxu0 0.0
        %1011 = vmatprep.subr.mxu0 0.0
        %1012 = vmatpush1.xpose.msra.mxu0 0.0
        %1013 = vmatprep.subr.mxu0 0.0
        %1014 = vmatpush1.xpose.msra.mxu0 0.0
        %1015 = vmatprep.subr.mxu0 0.0
        %1016 = vmatpush1.xpose.msra.mxu0 0.0
        %1017 = vmatprep.subr.mxu0 0.0
        %1018 = vmatpush1.xpose.msra.mxu0 0.0
        %1019 = vmatprep.subr.mxu0 0.0
        %1020 = vmatpush1.xpose.msra.mxu0 0.0
        %1021 = vmatprep.subr.mxu0 0.0
        %1022 = vmatpush1.xpose.msra.mxu0 0.0
        %1023 = vmatprep.subr.mxu0 0.0
        %1024 = vmatpush1.xpose.msra.mxu0 0.0
        %1025 = vmatprep.mubr.f32.mxu0 0.0
        %1026 = vmatmul.mubr.f32.gmra.mrb[0].mxu0 %v956
        %v1027 = vpop.f32.mrb[0].mxu0
        %v1028 = vadd.f32 0.0, %v1027
        %v1029 = vpop.f32.mrb[0].mxu0
        %1030 = vdwg.mxu0
        %v1032 = vsel %vm802, %v505, 0
        %v1035 = vsel %vm802, %v653, 0
        %1037 = vmatprep.subr.mxu0 0.0
        %1038 = vmatpush1.xpose.msra.mxu0 %v1035
        %1039 = vmatprep.subr.mxu0 0.0
        %1040 = vmatpush1.xpose.msra.mxu0 0.0
        %1041 = vmatprep.subr.mxu0 0.0
        %1042 = vmatpush1.xpose.msra.mxu0 0.0
        %1043 = vmatprep.subr.mxu0 0.0
        %1044 = vmatpush1.xpose.msra.mxu0 0.0
        %1045 = vmatprep.subr.mxu0 0.0
        %1046 = vmatpush1.xpose.msra.mxu0 0.0
        %1047 = vmatprep.subr.mxu0 0.0
        %1048 = vmatpush1.xpose.msra.mxu0 0.0
        %1049 = vmatprep.subr.mxu0 0.0
        %1050 = vmatpush1.xpose.msra.mxu0 0.0
        %1051 = vmatprep.subr.mxu0 0.0
        %1052 = vmatpush1.xpose.msra.mxu0 0.0
        %1053 = vmatprep.subr.mxu0 0.0
        %1054 = vmatpush1.xpose.msra.mxu0 0.0
        %1055 = vmatprep.subr.mxu0 0.0
        %1056 = vmatpush1.xpose.msra.mxu0 0.0
        %1057 = vmatprep.subr.mxu0 0.0
        %1058 = vmatpush1.xpose.msra.mxu0 0.0
        %1059 = vmatprep.subr.mxu0 0.0
        %1060 = vmatpush1.xpose.msra.mxu0 0.0
        %1061 = vmatprep.subr.mxu0 0.0
        %1062 = vmatpush1.xpose.msra.mxu0 0.0
        %1063 = vmatprep.subr.mxu0 0.0
        %1064 = vmatpush1.xpose.msra.mxu0 0.0
        %1065 = vmatprep.subr.mxu0 0.0
        %1066 = vmatpush1.xpose.msra.mxu0 0.0
        %1067 = vmatprep.subr.mxu0 0.0
        %1068 = vmatpush1.xpose.msra.mxu0 0.0
        %1069 = vmatprep.subr.mxu0 0.0
        %1070 = vmatpush1.xpose.msra.mxu0 0.0
        %1071 = vmatprep.subr.mxu0 0.0
        %1072 = vmatpush1.xpose.msra.mxu0 0.0
        %1073 = vmatprep.subr.mxu0 0.0
        %1074 = vmatpush1.xpose.msra.mxu0 0.0
        %1075 = vmatprep.subr.mxu0 0.0
        %1076 = vmatpush1.xpose.msra.mxu0 0.0
        %1077 = vmatprep.subr.mxu0 0.0
        %1078 = vmatpush1.xpose.msra.mxu0 0.0
        %1079 = vmatprep.subr.mxu0 0.0
        %1080 = vmatpush1.xpose.msra.mxu0 0.0
        %1081 = vmatprep.subr.mxu0 0.0
        %1082 = vmatpush1.xpose.msra.mxu0 0.0
        %1083 = vmatprep.subr.mxu0 0.0
        %1084 = vmatpush1.xpose.msra.mxu0 0.0
        %1085 = vmatprep.subr.mxu0 0.0
        %1086 = vmatpush1.xpose.msra.mxu0 0.0
        %1087 = vmatprep.subr.mxu0 0.0
        %1088 = vmatpush1.xpose.msra.mxu0 0.0
        %1089 = vmatprep.subr.mxu0 0.0
        %1090 = vmatpush1.xpose.msra.mxu0 0.0
        %1091 = vmatprep.subr.mxu0 0.0
        %1092 = vmatpush1.xpose.msra.mxu0 0.0
        %1093 = vmatprep.subr.mxu0 0.0
        %1094 = vmatpush1.xpose.msra.mxu0 0.0
        %1095 = vmatprep.subr.mxu0 0.0
        %1096 = vmatpush1.xpose.msra.mxu0 0.0
        %1097 = vmatprep.subr.mxu0 0.0
        %1098 = vmatpush1.xpose.msra.mxu0 0.0
        %1099 = vmatprep.subr.mxu0 0.0
        %1100 = vmatpush1.xpose.msra.mxu0 0.0
        %1101 = vmatprep.mubr.f32.mxu0 0.0
        %1102 = vmatmul.mubr.f32.gmra.mrb[0].mxu0 %v1032
        %v1103 = vpop.f32.mrb[0].mxu0
        %v1104 = vadd.f32 0.0, %v1103
        %v1105 = vpop.f32.mrb[0].mxu0
        %1106 = vdwg.mxu0
        %v1107 = vsel %vm802, %v876, -inf
        %1108 = vmax.xlane.f32.xlu0 %v1107
        %v1109 = vpop.xlane.xlu0 %1108
        %v1110 = vsel %vm802, %v952, -inf
        %1111 = vmax.xlane.f32.xlu0 %v1110
        %v1112 = vpop.xlane.xlu0 %1111
        %v1113 = vsel %vm802, %v1028, -inf
        %1114 = vmax.xlane.f32.xlu0 %v1113
        %v1115 = vpop.xlane.xlu0 %1114
        %v1116 = vsel %vm802, %v1104, -inf
        %1117 = vmax.xlane.f32.xlu0 %v1116
        %v1118 = vpop.xlane.xlu0 %1117
        %v1119 = vsub.f32 %v876, %v1109
        %v1120 = vsub.f32 %v952, %v1112
        %v1121 = vsub.f32 %v1028, %v1115
        %v1122 = vsub.f32 %v1104, %v1118
        %v1123 = vmul.f32 %v1119, 1.442695
        %v1124 = vpow.pop %v1123
        %v1125 = vmul.f32 %v1120, 1.442695
        %v1126 = vpow.pop %v1125
        %v1127 = vmul.f32 %v1121, 1.442695
        %v1128 = vpow.pop %v1127
        %v1129 = vmul.f32 %v1122, 1.442695
        %v1130 = vpow.pop %v1129
        %v1131 = vsel %vm802, %v1124, 0.0
        %1132 = vadd.xlane.f32.xlu0 %v1131
        %v1133 = vpop.xlane.xlu0 %1132
        %v1134 = vsel %vm802, %v1126, 0.0
        %1135 = vadd.xlane.f32.xlu0 %v1134
        %v1136 = vpop.xlane.xlu0 %1135
        %v1137 = vsel %vm802, %v1128, 0.0
        %1138 = vadd.xlane.f32.xlu0 %v1137
        %v1139 = vpop.xlane.xlu0 %1138
        %v1140 = vsel %vm802, %v1130, 0.0
        %1141 = vadd.xlane.f32.xlu0 %v1140
        %v1142 = vpop.xlane.xlu0 %1141
        %v1144 = vsel %vm802, %v1124, 0
        %1146 = vmatprep.subr.mxu0 0.0
        %1147 = vmatpush1.msra.mxu0 %v798
        %1148 = vmatprep.subr.mxu0 0.0
        %1149 = vmatpush1.msra.mxu0 0.0
        %1150 = vmatprep.subr.mxu0 0.0
        %1151 = vmatpush1.msra.mxu0 0.0
        %1152 = vmatprep.subr.mxu0 0.0
        %1153 = vmatpush1.msra.mxu0 0.0
        %1154 = vmatprep.subr.mxu0 0.0
        %1155 = vmatpush1.msra.mxu0 0.0
        %1156 = vmatprep.subr.mxu0 0.0
        %1157 = vmatpush1.msra.mxu0 0.0
        %1158 = vmatprep.subr.mxu0 0.0
        %1159 = vmatpush1.msra.mxu0 0.0
        %1160 = vmatprep.subr.mxu0 0.0
        %1161 = vmatpush1.msra.mxu0 0.0
        %1162 = vmatprep.subr.mxu0 0.0
        %1163 = vmatpush1.msra.mxu0 0.0
        %1164 = vmatprep.subr.mxu0 0.0
        %1165 = vmatpush1.msra.mxu0 0.0
        %1166 = vmatprep.subr.mxu0 0.0
        %1167 = vmatpush1.msra.mxu0 0.0
        %1168 = vmatprep.subr.mxu0 0.0
        %1169 = vmatpush1.msra.mxu0 0.0
        %1170 = vmatprep.subr.mxu0 0.0
        %1171 = vmatpush1.msra.mxu0 0.0
        %1172 = vmatprep.subr.mxu0 0.0
        %1173 = vmatpush1.msra.mxu0 0.0
        %1174 = vmatprep.subr.mxu0 0.0
        %1175 = vmatpush1.msra.mxu0 0.0
        %1176 = vmatprep.subr.mxu0 0.0
        %1177 = vmatpush1.msra.mxu0 0.0
        %1178 = vmatprep.subr.mxu0 0.0
        %1179 = vmatpush1.msra.mxu0 0.0
        %1180 = vmatprep.subr.mxu0 0.0
        %1181 = vmatpush1.msra.mxu0 0.0
        %1182 = vmatprep.subr.mxu0 0.0
        %1183 = vmatpush1.msra.mxu0 0.0
        %1184 = vmatprep.subr.mxu0 0.0
        %1185 = vmatpush1.msra.mxu0 0.0
        %1186 = vmatprep.subr.mxu0 0.0
        %1187 = vmatpush1.msra.mxu0 0.0
        %1188 = vmatprep.subr.mxu0 0.0
        %1189 = vmatpush1.msra.mxu0 0.0
        %1190 = vmatprep.subr.mxu0 0.0
        %1191 = vmatpush1.msra.mxu0 0.0
        %1192 = vmatprep.subr.mxu0 0.0
        %1193 = vmatpush1.msra.mxu0 0.0
        %1194 = vmatprep.subr.mxu0 0.0
        %1195 = vmatpush1.msra.mxu0 0.0
        %1196 = vmatprep.subr.mxu0 0.0
        %1197 = vmatpush1.msra.mxu0 0.0
        %1198 = vmatprep.subr.mxu0 0.0
        %1199 = vmatpush1.msra.mxu0 0.0
        %1200 = vmatprep.subr.mxu0 0.0
        %1201 = vmatpush1.msra.mxu0 0.0
        %1202 = vmatprep.subr.mxu0 0.0
        %1203 = vmatpush1.msra.mxu0 0.0
        %1204 = vmatprep.subr.mxu0 0.0
        %1205 = vmatpush1.msra.mxu0 0.0
        %1206 = vmatprep.subr.mxu0 0.0
        %1207 = vmatpush1.msra.mxu0 0.0
        %1208 = vmatprep.subr.mxu0 0.0
        %1209 = vmatpush1.msra.mxu0 0.0
        %1210 = vmatprep.mubr.f32.mxu0 0.0
        %1211 = vmatmul.mubr.f32.gmra.mrb[0].mxu0 %v1144
        %v1212 = vpop.f32.mrb[0].mxu0
        %v1213 = vadd.f32 0.0, %v1212
        %v1214 = vpop.f32.mrb[0].mxu0
        %1215 = vdwg.mxu0
        %v1217 = vsel %vm802, %v1126, 0
        %1219 = vmatprep.subr.mxu0 0.0
        %1220 = vmatpush1.msra.mxu0 %v799
        %1221 = vmatprep.subr.mxu0 0.0
        %1222 = vmatpush1.msra.mxu0 0.0
        %1223 = vmatprep.subr.mxu0 0.0
        %1224 = vmatpush1.msra.mxu0 0.0
        %1225 = vmatprep.subr.mxu0 0.0
        %1226 = vmatpush1.msra.mxu0 0.0
        %1227 = vmatprep.subr.mxu0 0.0
        %1228 = vmatpush1.msra.mxu0 0.0
        %1229 = vmatprep.subr.mxu0 0.0
        %1230 = vmatpush1.msra.mxu0 0.0
        %1231 = vmatprep.subr.mxu0 0.0
        %1232 = vmatpush1.msra.mxu0 0.0
        %1233 = vmatprep.subr.mxu0 0.0
        %1234 = vmatpush1.msra.mxu0 0.0
        %1235 = vmatprep.subr.mxu0 0.0
        %1236 = vmatpush1.msra.mxu0 0.0
        %1237 = vmatprep.subr.mxu0 0.0
        %1238 = vmatpush1.msra.mxu0 0.0
        %1239 = vmatprep.subr.mxu0 0.0
        %1240 = vmatpush1.msra.mxu0 0.0
        %1241 = vmatprep.subr.mxu0 0.0
        %1242 = vmatpush1.msra.mxu0 0.0
        %1243 = vmatprep.subr.mxu0 0.0
        %1244 = vmatpush1.msra.mxu0 0.0
        %1245 = vmatprep.subr.mxu0 0.0
        %1246 = vmatpush1.msra.mxu0 0.0
        %1247 = vmatprep.subr.mxu0 0.0
        %1248 = vmatpush1.msra.mxu0 0.0
        %1249 = vmatprep.subr.mxu0 0.0
        %1250 = vmatpush1.msra.mxu0 0.0
        %1251 = vmatprep.subr.mxu0 0.0
        %1252 = vmatpush1.msra.mxu0 0.0
        %1253 = vmatprep.subr.mxu0 0.0
        %1254 = vmatpush1.msra.mxu0 0.0
        %1255 = vmatprep.subr.mxu0 0.0
        %1256 = vmatpush1.msra.mxu0 0.0
        %1257 = vmatprep.subr.mxu0 0.0
        %1258 = vmatpush1.msra.mxu0 0.0
        %1259 = vmatprep.subr.mxu0 0.0
        %1260 = vmatpush1.msra.mxu0 0.0
        %1261 = vmatprep.subr.mxu0 0.0
        %1262 = vmatpush1.msra.mxu0 0.0
        %1263 = vmatprep.subr.mxu0 0.0
        %1264 = vmatpush1.msra.mxu0 0.0
        %1265 = vmatprep.subr.mxu0 0.0
        %1266 = vmatpush1.msra.mxu0 0.0
        %1267 = vmatprep.subr.mxu0 0.0
        %1268 = vmatpush1.msra.mxu0 0.0
        %1269 = vmatprep.subr.mxu0 0.0
        %1270 = vmatpush1.msra.mxu0 0.0
        %1271 = vmatprep.subr.mxu0 0.0
        %1272 = vmatpush1.msra.mxu0 0.0
        %1273 = vmatprep.subr.mxu0 0.0
        %1274 = vmatpush1.msra.mxu0 0.0
        %1275 = vmatprep.subr.mxu0 0.0
        %1276 = vmatpush1.msra.mxu0 0.0
        %1277 = vmatprep.subr.mxu0 0.0
        %1278 = vmatpush1.msra.mxu0 0.0
        %1279 = vmatprep.subr.mxu0 0.0
        %1280 = vmatpush1.msra.mxu0 0.0
        %1281 = vmatprep.subr.mxu0 0.0
        %1282 = vmatpush1.msra.mxu0 0.0
        %1283 = vmatprep.mubr.f32.mxu0 0.0
        %1284 = vmatmul.mubr.f32.gmra.mrb[0].mxu0 %v1217
        %v1285 = vpop.f32.mrb[0].mxu0
        %v1286 = vadd.f32 0.0, %v1285
        %v1287 = vpop.f32.mrb[0].mxu0
        %1288 = vdwg.mxu0
        %v1290 = vsel %vm802, %v1128, 0
        %1292 = vmatprep.subr.mxu0 0.0
        %1293 = vmatpush1.msra.mxu0 %v800
        %1294 = vmatprep.subr.mxu0 0.0
        %1295 = vmatpush1.msra.mxu0 0.0
        %1296 = vmatprep.subr.mxu0 0.0
        %1297 = vmatpush1.msra.mxu0 0.0
        %1298 = vmatprep.subr.mxu0 0.0
        %1299 = vmatpush1.msra.mxu0 0.0
        %1300 = vmatprep.subr.mxu0 0.0
        %1301 = vmatpush1.msra.mxu0 0.0
        %1302 = vmatprep.subr.mxu0 0.0
        %1303 = vmatpush1.msra.mxu0 0.0
        %1304 = vmatprep.subr.mxu0 0.0
        %1305 = vmatpush1.msra.mxu0 0.0
        %1306 = vmatprep.subr.mxu0 0.0
        %1307 = vmatpush1.msra.mxu0 0.0
        %1308 = vmatprep.subr.mxu0 0.0
        %1309 = vmatpush1.msra.mxu0 0.0
        %1310 = vmatprep.subr.mxu0 0.0
        %1311 = vmatpush1.msra.mxu0 0.0
        %1312 = vmatprep.subr.mxu0 0.0
        %1313 = vmatpush1.msra.mxu0 0.0
        %1314 = vmatprep.subr.mxu0 0.0
        %1315 = vmatpush1.msra.mxu0 0.0
        %1316 = vmatprep.subr.mxu0 0.0
        %1317 = vmatpush1.msra.mxu0 0.0
        %1318 = vmatprep.subr.mxu0 0.0
        %1319 = vmatpush1.msra.mxu0 0.0
        %1320 = vmatprep.subr.mxu0 0.0
        %1321 = vmatpush1.msra.mxu0 0.0
        %1322 = vmatprep.subr.mxu0 0.0
        %1323 = vmatpush1.msra.mxu0 0.0
        %1324 = vmatprep.subr.mxu0 0.0
        %1325 = vmatpush1.msra.mxu0 0.0
        %1326 = vmatprep.subr.mxu0 0.0
        %1327 = vmatpush1.msra.mxu0 0.0
        %1328 = vmatprep.subr.mxu0 0.0
        %1329 = vmatpush1.msra.mxu0 0.0
        %1330 = vmatprep.subr.mxu0 0.0
        %1331 = vmatpush1.msra.mxu0 0.0
        %1332 = vmatprep.subr.mxu0 0.0
        %1333 = vmatpush1.msra.mxu0 0.0
        %1334 = vmatprep.subr.mxu0 0.0
        %1335 = vmatpush1.msra.mxu0 0.0
        %1336 = vmatprep.subr.mxu0 0.0
        %1337 = vmatpush1.msra.mxu0 0.0
        %1338 = vmatprep.subr.mxu0 0.0
        %1339 = vmatpush1.msra.mxu0 0.0
        %1340 = vmatprep.subr.mxu0 0.0
        %1341 = vmatpush1.msra.mxu0 0.0
        %1342 = vmatprep.subr.mxu0 0.0
        %1343 = vmatpush1.msra.mxu0 0.0
        %1344 = vmatprep.subr.mxu0 0.0
        %1345 = vmatpush1.msra.mxu0 0.0
        %1346 = vmatprep.subr.mxu0 0.0
        %1347 = vmatpush1.msra.mxu0 0.0
        %1348 = vmatprep.subr.mxu0 0.0
        %1349 = vmatpush1.msra.mxu0 0.0
        %1350 = vmatprep.subr.mxu0 0.0
        %1351 = vmatpush1.msra.mxu0 0.0
        %1352 = vmatprep.subr.mxu0 0.0
        %1353 = vmatpush1.msra.mxu0 0.0
        %1354 = vmatprep.subr.mxu0 0.0
        %1355 = vmatpush1.msra.mxu0 0.0
        %1356 = vmatprep.mubr.f32.mxu0 0.0
        %1357 = vmatmul.mubr.f32.gmra.mrb[0].mxu0 %v1290
        %v1358 = vpop.f32.mrb[0].mxu0
        %v1359 = vadd.f32 0.0, %v1358
        %v1360 = vpop.f32.mrb[0].mxu0
        %1361 = vdwg.mxu0
        %v1363 = vsel %vm802, %v1130, 0
        %1365 = vmatprep.subr.mxu0 0.0
        %1366 = vmatpush1.msra.mxu0 %v801
        %1367 = vmatprep.subr.mxu0 0.0
        %1368 = vmatpush1.msra.mxu0 0.0
        %1369 = vmatprep.subr.mxu0 0.0
        %1370 = vmatpush1.msra.mxu0 0.0
        %1371 = vmatprep.subr.mxu0 0.0
        %1372 = vmatpush1.msra.mxu0 0.0
        %1373 = vmatprep.subr.mxu0 0.0
        %1374 = vmatpush1.msra.mxu0 0.0
        %1375 = vmatprep.subr.mxu0 0.0
        %1376 = vmatpush1.msra.mxu0 0.0
        %1377 = vmatprep.subr.mxu0 0.0
        %1378 = vmatpush1.msra.mxu0 0.0
        %1379 = vmatprep.subr.mxu0 0.0
        %1380 = vmatpush1.msra.mxu0 0.0
        %1381 = vmatprep.subr.mxu0 0.0
        %1382 = vmatpush1.msra.mxu0 0.0
        %1383 = vmatprep.subr.mxu0 0.0
        %1384 = vmatpush1.msra.mxu0 0.0
        %1385 = vmatprep.subr.mxu0 0.0
        %1386 = vmatpush1.msra.mxu0 0.0
        %1387 = vmatprep.subr.mxu0 0.0
        %1388 = vmatpush1.msra.mxu0 0.0
        %1389 = vmatprep.subr.mxu0 0.0
        %1390 = vmatpush1.msra.mxu0 0.0
        %1391 = vmatprep.subr.mxu0 0.0
        %1392 = vmatpush1.msra.mxu0 0.0
        %1393 = vmatprep.subr.mxu0 0.0
        %1394 = vmatpush1.msra.mxu0 0.0
        %1395 = vmatprep.subr.mxu0 0.0
        %1396 = vmatpush1.msra.mxu0 0.0
        %1397 = vmatprep.subr.mxu0 0.0
        %1398 = vmatpush1.msra.mxu0 0.0
        %1399 = vmatprep.subr.mxu0 0.0
        %1400 = vmatpush1.msra.mxu0 0.0
        %1401 = vmatprep.subr.mxu0 0.0
        %1402 = vmatpush1.msra.mxu0 0.0
        %1403 = vmatprep.subr.mxu0 0.0
        %1404 = vmatpush1.msra.mxu0 0.0
        %1405 = vmatprep.subr.mxu0 0.0
        %1406 = vmatpush1.msra.mxu0 0.0
        %1407 = vmatprep.subr.mxu0 0.0
        %1408 = vmatpush1.msra.mxu0 0.0
        %1409 = vmatprep.subr.mxu0 0.0
        %1410 = vmatpush1.msra.mxu0 0.0
        %1411 = vmatprep.subr.mxu0 0.0
        %1412 = vmatpush1.msra.mxu0 0.0
        %1413 = vmatprep.subr.mxu0 0.0
        %1414 = vmatpush1.msra.mxu0 0.0
        %1415 = vmatprep.subr.mxu0 0.0
        %1416 = vmatpush1.msra.mxu0 0.0
        %1417 = vmatprep.subr.mxu0 0.0
        %1418 = vmatpush1.msra.mxu0 0.0
        %1419 = vmatprep.subr.mxu0 0.0
        %1420 = vmatpush1.msra.mxu0 0.0
        %1421 = vmatprep.subr.mxu0 0.0
        %1422 = vmatpush1.msra.mxu0 0.0
        %1423 = vmatprep.subr.mxu0 0.0
        %1424 = vmatpush1.msra.mxu0 0.0
        %1425 = vmatprep.subr.mxu0 0.0
        %1426 = vmatpush1.msra.mxu0 0.0
        %1427 = vmatprep.subr.mxu0 0.0
        %1428 = vmatpush1.msra.mxu0 0.0
        %1429 = vmatprep.mubr.f32.mxu0 0.0
        %1430 = vmatmul.mubr.f32.gmra.mrb[0].mxu0 %v1363
        %v1431 = vpop.f32.mrb[0].mxu0
        %v1432 = vadd.f32 0.0, %v1431
        %v1433 = vpop.f32.mrb[0].mxu0
        %1434 = vdwg.mxu0
        %v1435 = vrcp.pop %v1133
        %v1436 = vrcp.pop %v1136
        %v1437 = vrcp.pop %v1139
        %v1438 = vrcp.pop %v1142
        %v1439 = vmul.f32 %v1213, %v1435
        %v1440 = vmul.f32 %v1286, %v1436
        %v1441 = vmul.f32 %v1359, %v1437
        %v1442 = vmul.f32 %v1432, %v1438
        %v1443 = vcombine.low %v1439, %v1441
        %v1444 = vcombine.high %v1439, %v1441
        %v1446 = vunpack.c.l.s4 1983009808
        %v1447 = vunpack.c.0.s8 %v1446
        %v1448 = vlaneseq
        %v1449 = vshrl.u32 %v1448, 7
        %v1450 = vsub.s32 %v1447, %v1449
        %v1451 = vrot.slane %v1443, %v1450
        %v1453 = vunpack.c.l.s4 1983009808
        %v1454 = vunpack.c.0.s8 %v1453
        %v1455 = vlaneseq
        %v1456 = vshrl.u32 %v1455, 7
        %v1457 = vsub.s32 %v1454, %v1456
        %v1458 = vrot.slane %v1444, %v1457
        %v1459 = vcombine.low %v1440, %v1442
        %v1460 = vcombine.high %v1440, %v1442
        %v1462 = vunpack.c.l.s4 1983009808
        %v1463 = vunpack.c.0.s8 %v1462
        %v1464 = vlaneseq
        %v1465 = vshrl.u32 %v1464, 7
        %v1466 = vsub.s32 %v1463, %v1465
        %v1467 = vrot.slane %v1459, %v1466
        %v1469 = vunpack.c.l.s4 1983009808
        %v1470 = vunpack.c.0.s8 %v1469
        %v1471 = vlaneseq
        %v1472 = vshrl.u32 %v1471, 7
        %v1473 = vsub.s32 %v1470, %v1472
        %v1474 = vrot.slane %v1460, %v1473
        %v1475 = vcombine.low %v1451, %v1467
        %v1476 = vcombine.high %v1451, %v1467
        %v1478 = vunpack.c.l.s4 1934713408
        %v1479 = vunpack.c.0.s8 %v1478
        %v1480 = vlaneseq
        %v1481 = vshrl.u32 %v1480, 7
        %v1482 = vsub.s32 %v1479, %v1481
        %v1483 = vrot.slane %v1475, %v1482
        %v1485 = vunpack.c.l.s4 1934713408
        %v1486 = vunpack.c.0.s8 %v1485
        %v1487 = vlaneseq
        %v1488 = vshrl.u32 %v1487, 7
        %v1489 = vsub.s32 %v1486, %v1488
        %v1490 = vrot.slane %v1476, %v1489
        %v1491 = vcombine.low %v1458, %v1474
        %v1492 = vcombine.high %v1458, %v1474
        %v1494 = vunpack.c.l.s4 1934713408
        %v1495 = vunpack.c.0.s8 %v1494
        %v1496 = vlaneseq
        %v1497 = vshrl.u32 %v1496, 7
        %v1498 = vsub.s32 %v1495, %v1497
        %v1499 = vrot.slane %v1491, %v1498
        %v1501 = vunpack.c.l.s4 1934713408
        %v1502 = vunpack.c.0.s8 %v1501
        %v1503 = vlaneseq
        %v1504 = vshrl.u32 %v1503, 7
        %v1505 = vsub.s32 %v1502, %v1504
        %v1506 = vrot.slane %v1492, %v1505
        %v1507 = vcombine.high %v1483, 0.0
        %v1508 = vcombine.high %v1490, 0.0
        %v1509 = vcombine.high %v1499, 0.0
        %v1510 = vcombine.high %v1506, 0.0
        %v1511 = vcombine.low %v1483, %v1490
        %v1513 = vunpack.c.l.s4 1983009808
        %v1514 = vunpack.c.0.s8 %v1513
        %v1515 = vlaneseq
        %v1516 = vshrl.u32 %v1515, 7
        %v1517 = vsub.s32 %v1514, %v1516
        %v1518 = vrot.slane %v1511, %v1517
        %v1519 = vcombine.low %v1507, %v1508
        %v1521 = vunpack.c.l.s4 1983009808
        %v1522 = vunpack.c.0.s8 %v1521
        %v1523 = vlaneseq
        %v1524 = vshrl.u32 %v1523, 7
        %v1525 = vsub.s32 %v1522, %v1524
        %v1526 = vrot.slane %v1519, %v1525
        %v1527 = vcombine.low %v1499, %v1506
        %v1529 = vunpack.c.l.s4 1983009808
        %v1530 = vunpack.c.0.s8 %v1529
        %v1531 = vlaneseq
        %v1532 = vshrl.u32 %v1531, 7
        %v1533 = vsub.s32 %v1530, %v1532
        %v1534 = vrot.slane %v1527, %v1533
        %v1535 = vcombine.low %v1509, %v1510
        %v1537 = vunpack.c.l.s4 1983009808
        %v1538 = vunpack.c.0.s8 %v1537
        %v1539 = vlaneseq
        %v1540 = vshrl.u32 %v1539, 7
        %v1541 = vsub.s32 %v1538, %v1540
        %v1542 = vrot.slane %v1535, %v1541
        %v1543 = vcombine.low %v1518, %v1526
        %v1544 = vcombine.high %v1518, %v1526
        %v1546 = vunpack.c.l.s4 1934713408
        %v1547 = vunpack.c.0.s8 %v1546
        %v1548 = vlaneseq
        %v1549 = vshrl.u32 %v1548, 7
        %v1550 = vsub.s32 %v1547, %v1549
        %v1551 = vrot.slane %v1543, %v1550
        %v1553 = vunpack.c.l.s4 1934713408
        %v1554 = vunpack.c.0.s8 %v1553
        %v1555 = vlaneseq
        %v1556 = vshrl.u32 %v1555, 7
        %v1557 = vsub.s32 %v1554, %v1556
        %v1558 = vrot.slane %v1544, %v1557
        %v1559 = vcombine.low %v1534, %v1542
        %v1560 = vcombine.high %v1534, %v1542
        %v1562 = vunpack.c.l.s4 1934713408
        %v1563 = vunpack.c.0.s8 %v1562
        %v1564 = vlaneseq
        %v1565 = vshrl.u32 %v1564, 7
        %v1566 = vsub.s32 %v1563, %v1565
        %v1567 = vrot.slane %v1559, %v1566
        %v1569 = vunpack.c.l.s4 1934713408
        %v1570 = vunpack.c.0.s8 %v1569
        %v1571 = vlaneseq
        %v1572 = vshrl.u32 %v1571, 7
        %v1573 = vsub.s32 %v1570, %v1572
        %v1574 = vrot.slane %v1560, %v1573
        %v1575 = vcombine.low %v1551, %v1567
        %v1576 = vcombine.high %v1551, %v1567
        %v1577 = vcombine.low %v1558, %v1574
        %v1578 = vcombine.high %v1558, %v1574
        %1580 = vrot.lane.b32.xlu0 %v1576, 8
        %v1581 = vpop.permute.xlu0 %1580
        %1584 = vrot.lane.b32.xlu0 %v1577, 16
        %v1585 = vpop.permute.xlu0 %1584
        %1588 = vrot.lane.b32.xlu0 %v1578, 24
        %v1589 = vpop.permute.xlu0 %1588
        %v1591 = vsel %vm802, %v1575, %v1581
        %vm1592 = vcmask 130048
        %v1593 = vsel %vm1592, %v1591, %v1585
        %vm1594 = vcmask 195584
        %v1595 = vsel %vm1594, %v1593, %v1589
        %v1596 = vadd.f32 %v274, %v1595
        %v1597 = vsel %vm286, %v1596, 0.0
        %1598 = vadd.xlane.f32.xlu0 %v1597
        %v1599 = vpop.xlane.xlu0 %1598
        %v1600 = vrot.slane %v1599, 4
        %v1601 = vadd.f32 %v1599, %v1600
        %v1602 = vrot.slane %v1601, 2
        %v1603 = vadd.f32 %v1601, %v1602
        %v1604 = vrot.slane %v1603, 1
        %v1605 = vadd.f32 %v1603, %v1604
        %s1606 = vtos %v1605
        %v1607 = vstv %s1606
        %v1608 = vrcp.pop 256.0
        %v1609 = vmul.f32 %v1607, %v1608
        %v1610 = vsub.f32 %v1596, %v1609
        %v1611 = vmul.f32 %v1610, %v1610
        %v1612 = vsel %vm286, %v1611, 0.0
        %1613 = vadd.xlane.f32.xlu0 %v1612
        %v1614 = vpop.xlane.xlu0 %1613
        %v1615 = vrot.slane %v1614, 4
        %v1616 = vadd.f32 %v1614, %v1615
        %v1617 = vrot.slane %v1616, 2
        %v1618 = vadd.f32 %v1616, %v1617
        %v1619 = vrot.slane %v1618, 1
        %v1620 = vadd.f32 %v1618, %v1619
        %s1621 = vtos %v1620
        %v1622 = vstv %s1621
        %v1623 = vmul.f32 %v1622, %v1608
        %v1624 = vadd.f32 %v1623, 1e-05
        %v1625 = vrsqrt.pop %v1624
        %v1626 = vmul.f32 %v1610, %v1625
        %v1627 = vld [vmem:[%s3] sm:$0xff]
        %v1628 = vld [vmem:[%s3 + $0x8] sm:$0xff]
        %v1629 = vld [vmem:[%s3 + $0x10] sm:$0xff]
        %v1630 = vld [vmem:[%s3 + $0x18] sm:$0xff]
        %v1631 = vld [vmem:[%s4] sm:$0x1]
        %v1633 = vlaneseq
        %v1634 = vshrl.u32 %v1633, 7
        %v1635 = vsub.s32 0, %v1634
        %v1636 = vrot.slane %v1631, %v1635
        %v1639 = vsel %vm286, %v1626, 0
        %1641 = vmatprep.subr.mxu0 0.0
        %1642 = vmatpush1.msra.mxu0 %v1627
        %1643 = vmatprep.subr.mxu0 0.0
        %1644 = vmatpush1.msra.mxu0 %v1628
        %1645 = vmatprep.subr.mxu0 0.0
        %1646 = vmatpush1.msra.mxu0 %v1629
        %1647 = vmatprep.subr.mxu0 0.0
        %1648 = vmatpush1.msra.mxu0 %v1630
        %1649 = vmatprep.subr.mxu0 0.0
        %1650 = vmatpush1.msra.mxu0 0.0
        %1651 = vmatprep.subr.mxu0 0.0
        %1652 = vmatpush1.msra.mxu0 0.0
        %1653 = vmatprep.subr.mxu0 0.0
        %1654 = vmatpush1.msra.mxu0 0.0
        %1655 = vmatprep.subr.mxu0 0.0
        %1656 = vmatpush1.msra.mxu0 0.0
        %1657 = vmatprep.subr.mxu0 0.0
        %1658 = vmatpush1.msra.mxu0 0.0
        %1659 = vmatprep.subr.mxu0 0.0
        %1660 = vmatpush1.msra.mxu0 0.0
        %1661 = vmatprep.subr.mxu0 0.0
        %1662 = vmatpush1.msra.mxu0 0.0
        %1663 = vmatprep.subr.mxu0 0.0
        %1664 = vmatpush1.msra.mxu0 0.0
        %1665 = vmatprep.subr.mxu0 0.0
        %1666 = vmatpush1.msra.mxu0 0.0
        %1667 = vmatprep.subr.mxu0 0.0
        %1668 = vmatpush1.msra.mxu0 0.0
        %1669 = vmatprep.subr.mxu0 0.0
        %1670 = vmatpush1.msra.mxu0 0.0
        %1671 = vmatprep.subr.mxu0 0.0
        %1672 = vmatpush1.msra.mxu0 0.0
        %1673 = vmatprep.subr.mxu0 0.0
        %1674 = vmatpush1.msra.mxu0 0.0
        %1675 = vmatprep.subr.mxu0 0.0
        %1676 = vmatpush1.msra.mxu0 0.0
        %1677 = vmatprep.subr.mxu0 0.0
        %1678 = vmatpush1.msra.mxu0 0.0
        %1679 = vmatprep.subr.mxu0 0.0
        %1680 = vmatpush1.msra.mxu0 0.0
        %1681 = vmatprep.subr.mxu0 0.0
        %1682 = vmatpush1.msra.mxu0 0.0
        %1683 = vmatprep.subr.mxu0 0.0
        %1684 = vmatpush1.msra.mxu0 0.0
        %1685 = vmatprep.subr.mxu0 0.0
        %1686 = vmatpush1.msra.mxu0 0.0
        %1687 = vmatprep.subr.mxu0 0.0
        %1688 = vmatpush1.msra.mxu0 0.0
        %1689 = vmatprep.subr.mxu0 0.0
        %1690 = vmatpush1.msra.mxu0 0.0
        %1691 = vmatprep.subr.mxu0 0.0
        %1692 = vmatpush1.msra.mxu0 0.0
        %1693 = vmatprep.subr.mxu0 0.0
        %1694 = vmatpush1.msra.mxu0 0.0
        %1695 = vmatprep.subr.mxu0 0.0
        %1696 = vmatpush1.msra.mxu0 0.0
        %1697 = vmatprep.subr.mxu0 0.0
        %1698 = vmatpush1.msra.mxu0 0.0
        %1699 = vmatprep.subr.mxu0 0.0
        %1700 = vmatpush1.msra.mxu0 0.0
        %1701 = vmatprep.subr.mxu0 0.0
        %1702 = vmatpush1.msra.mxu0 0.0
        %1703 = vmatprep.subr.mxu0 0.0
        %1704 = vmatpush1.msra.mxu0 0.0
        %1705 = vmatprep.mubr.f32.mxu0 0.0
        %1706 = vmatmul.mubr.f32.gmra.mrb[0].mxu0 %v1639
        %v1707 = vpop.f32.mrb[0].mxu0
        %v1708 = vadd.f32 %v1636, %v1707
        %v1709 = vpop.f32.mrb[0].mxu0
        %1710 = vdwg.mxu0
        %v1711 = vmax.f32 %v1708, 0.0
        %v1712 = vld [vmem:[%s5] sm:$0xff]
        %v1713 = vld [vmem:[%s5 + $0x8] sm:$0xff]
        %v1714 = vld [vmem:[%s5 + $0x10] sm:$0xff]
        %v1715 = vld [vmem:[%s5 + $0x18] sm:$0xff]
        %v1716 = vld [vmem:[%s5 + $0x20] sm:$0xff]
        %v1717 = vld [vmem:[%s5 + $0x28] sm:$0xff]
        %v1718 = vld [vmem:[%s5 + $0x30] sm:$0xff]
        %v1719 = vld [vmem:[%s5 + $0x38] sm:$0xff]
        %v1720 = vld [vmem:[%s6] sm:$0x1]
        %v1722 = vlaneseq
        %v1723 = vshrl.u32 %v1722, 7
        %v1724 = vsub.s32 0, %v1723
        %v1725 = vrot.slane %v1720, %v1724
        %vm1727 = vcmask 523264
        %v1729 = vsel %vm1727, %v1711, 0
        %1731 = vmatprep.subr.mxu0 0.0
        %1732 = vmatpush1.msra.mxu0 %v1712
        %1733 = vmatprep.subr.mxu0 0.0
        %1734 = vmatpush1.msra.mxu0 %v1713
        %1735 = vmatprep.subr.mxu0 0.0
        %1736 = vmatpush1.msra.mxu0 %v1714
        %1737 = vmatprep.subr.mxu0 0.0
        %1738 = vmatpush1.msra.mxu0 %v1715
        %1739 = vmatprep.subr.mxu0 0.0
        %1740 = vmatpush1.msra.mxu0 %v1716
        %1741 = vmatprep.subr.mxu0 0.0
        %1742 = vmatpush1.msra.mxu0 %v1717
        %1743 = vmatprep.subr.mxu0 0.0
        %1744 = vmatpush1.msra.mxu0 %v1718
        %1745 = vmatprep.subr.mxu0 0.0
        %1746 = vmatpush1.msra.mxu0 %v1719
        %1747 = vmatprep.subr.mxu0 0.0
        %1748 = vmatpush1.msra.mxu0 0.0
        %1749 = vmatprep.subr.mxu0 0.0
        %1750 = vmatpush1.msra.mxu0 0.0
        %1751 = vmatprep.subr.mxu0 0.0
        %1752 = vmatpush1.msra.mxu0 0.0
        %1753 = vmatprep.subr.mxu0 0.0
        %1754 = vmatpush1.msra.mxu0 0.0
        %1755 = vmatprep.subr.mxu0 0.0
        %1756 = vmatpush1.msra.mxu0 0.0
        %1757 = vmatprep.subr.mxu0 0.0
        %1758 = vmatpush1.msra.mxu0 0.0
        %1759 = vmatprep.subr.mxu0 0.0
        %1760 = vmatpush1.msra.mxu0 0.0
        %1761 = vmatprep.subr.mxu0 0.0
        %1762 = vmatpush1.msra.mxu0 0.0
        %1763 = vmatprep.subr.mxu0 0.0
        %1764 = vmatpush1.msra.mxu0 0.0
        %1765 = vmatprep.subr.mxu0 0.0
        %1766 = vmatpush1.msra.mxu0 0.0
        %1767 = vmatprep.subr.mxu0 0.0
        %1768 = vmatpush1.msra.mxu0 0.0
        %1769 = vmatprep.subr.mxu0 0.0
        %1770 = vmatpush1.msra.mxu0 0.0
        %1771 = vmatprep.subr.mxu0 0.0
        %1772 = vmatpush1.msra.mxu0 0.0
        %1773 = vmatprep.subr.mxu0 0.0
        %1774 = vmatpush1.msra.mxu0 0.0
        %1775 = vmatprep.subr.mxu0 0.0
        %1776 = vmatpush1.msra.mxu0 0.0
        %1777 = vmatprep.subr.mxu0 0.0
        %1778 = vmatpush1.msra.mxu0 0.0
        %1779 = vmatprep.subr.mxu0 0.0
        %1780 = vmatpush1.msra.mxu0 0.0
        %1781 = vmatprep.subr.mxu0 0.0
        %1782 = vmatpush1.msra.mxu0 0.0
        %1783 = vmatprep.subr.mxu0 0.0
        %1784 = vmatpush1.msra.mxu0 0.0
        %1785 = vmatprep.subr.mxu0 0.0
        %1786 = vmatpush1.msra.mxu0 0.0
        %1787 = vmatprep.subr.mxu0 0.0
        %1788 = vmatpush1.msra.mxu0 0.0
        %1789 = vmatprep.subr.mxu0 0.0
        %1790 = vmatpush1.msra.mxu0 0.0
        %1791 = vmatprep.subr.mxu0 0.0
        %1792 = vmatpush1.msra.mxu0 0.0
        %1793 = vmatprep.subr.mxu0 0.0
        %1794 = vmatpush1.msra.mxu0 0.0
        %1795 = vmatprep.mubr.f32.mxu0 0.0
        %1796 = vmatmul.mubr.f32.gmra.mrb[0].mxu0 %v1729
        %v1797 = vpop.f32.mrb[0].mxu0
        %v1798 = vadd.f32 %v1725, %v1797
        %v1799 = vpop.f32.mrb[0].mxu0
        %1800 = vdwg.mxu0
        %v1801 = vadd.f32 %v1626, %v1798
        %v1802 = vsel %vm286, %v1801, 0.0
        %1803 = vadd.xlane.f32.xlu0 %v1802
        %v1804 = vpop.xlane.xlu0 %1803
        %v1805 = vrot.slane %v1804, 4
        %v1806 = vadd.f32 %v1804, %v1805
        %v1807 = vrot.slane %v1806, 2
        %v1808 = vadd.f32 %v1806, %v1807
        %v1809 = vrot.slane %v1808, 1
        %v1810 = vadd.f32 %v1808, %v1809
        %s1811 = vtos %v1810
        %v1812 = vstv %s1811
        %v1813 = vmul.f32 %v1812, %v1608
        %v1814 = vsub.f32 %v1801, %v1813
        %v1815 = vmul.f32 %v1814, %v1814
        %v1816 = vsel %vm286, %v1815, 0.0
        %1817 = vadd.xlane.f32.xlu0 %v1816
        %v1818 = vpop.xlane.xlu0 %1817
        %v1819 = vrot.slane %v1818, 4
        %v1820 = vadd.f32 %v1818, %v1819
        %v1821 = vrot.slane %v1820, 2
        %v1822 = vadd.f32 %v1820, %v1821
        %v1823 = vrot.slane %v1822, 1
        %v1824 = vadd.f32 %v1822, %v1823
        %s1825 = vtos %v1824
        %v1826 = vstv %s1825
        %v1827 = vmul.f32 %v1826, %v1608
        %v1828 = vadd.f32 %v1827, 1e-05
        %v1829 = vrsqrt.pop %v1828
        %v1830 = vmul.f32 %v1814, %v1829
        %1831 = vst.msk [vmem:[%s269] sm:$0xff] %vm286, %v1830
        %s1832 = sand.u32 %s181, 1
        %s1833 = scalar_lea.sflag [#allocation3], %s1832
        %s1834 = sand.u32 %s181, 1
        %s1835 = smul.addr %s1834, 8
        %s1836 = scalar_lea.vmem [#allocation2], %s1835
        // Predicated region
        $region49: #{tpu_custom_call.1} parent=47 // pred_check
          %p1837 = pneg %p191
        $region50: #{tpu_custom_call.1} parent=47 // pred_check_branch
          %1839 = sbr.rel (%p1837) target = $region52
        $region51: #{tpu_custom_call.1} parent=47 // pred_region
          %s1841 = ssub.s32 128, 128
          %1842 = vsyncadd %s1833, %s1841
          %s1843 = smul.addr %s21, 128
          %s1844 = scalar_lea.hbm %s7, %s1843
          %s1846 = sshll.u32 %s1836, 4
          %s1847 = int_to_ptr.vmem [resolvable:$true] %s1846
          %1849 = dma.vmem_to_hbm [thread:$0]  %s1847, 128, %s1844, %s1833
        $region52: #{tpu_custom_call.1} parent=47 // pred_fallthru
          _
      $region48: #{tpu_custom_call.1} parent=5 // pred_fallthru
        _
      %p1850 = scmp.le.s32.totalorder 2, %s16
      // Predicated region
      $region53: #{tpu_custom_call.1} parent=5 // pred_check
        %p1851 = pneg %p1850
      $region54: #{tpu_custom_call.1} parent=5 // pred_check_branch
        %1853 = sbr.rel (%p1851) target = $region56
      $region55: #{tpu_custom_call.1} parent=5 // pred_region
        %s1854 = ssub.s32 %s16, 2
        // Predicated region
        $region57: #{tpu_custom_call.1} parent=55 // pred_check
          %p1855 = pneg %p197
        $region58: #{tpu_custom_call.1} parent=55 // pred_check_branch
          %1857 = sbr.rel (%p1855) target = $region60
        $region59: #{tpu_custom_call.1} parent=55 // pred_region
          %s1858 = sand.u32 %s182, 1
          %s1859 = scalar_lea.sflag [#allocation3], %s1858
          %s1860 = sand.u32 %s182, 1
          %s1861 = smul.addr %s1860, 8
          %s1862 = scalar_lea.vmem [#allocation2], %s1861
          %1863 = dma.done %s1859, 128
        $region60: #{tpu_custom_call.1} parent=55 // pred_fallthru
          _
      $region56: #{tpu_custom_call.1} parent=5 // pred_fallthru
        _
    $region6: #{tpu_custom_call.1} parent=1 // loop_footer
      %s20 = sadd.s32 1, %s16
    $region7: #{tpu_custom_call.1} parent=1 // loop_footer_branch
      %15 = sbr.rel target = $region3
    $region8: #{tpu_custom_call.1} parent=1 // loop_exit
      _
    %1864 = vsyncpa [#allocation3], 1
    %s1865 = scalar_lea.sflag [#allocation3], 1
    %1866 = vsyncpa %s1865, 1

</llo_original>
